<compile_context>
chip_gen: v7x
topology: tpu7x:2x2x1
jax: 0.10.0
libtpu: 0.0.40
codegen_flags: <defaults>
</compile_context>

<pallas_src>
import functools

import jax
import jax.numpy as jnp
from jax.experimental import pallas as pl
from jax.experimental.pallas import tpu as pltpu

EMB_PAD = 128     # embedding width 2 padded to a full lane group
HEAD_PAD = 128    # classifier logits padded to a full lane group
NEG_BIG = -1e30   # finite "-inf" bias for padded logit columns


def _round_up(x, m):
    return (x + m - 1) // m * m


# ----------------------------- Pallas kernels ------------------------------ #

def _conv_prelu_pool_kernel(x_ref, w_ref, b_ref, a_ref, o_ref, *, ipb, pos):
    """Fused conv-as-matmul + bias + PReLU + 2x2 max-pool.

    x_ref: (ipb*4*pos, K) bf16 patches, rows ordered [image, window(4), pooled-pos]
    w_ref: (K, C) bf16;  b_ref: (1, C) f32;  a_ref: (1,) f32 in SMEM
    o_ref: (ipb*pos, C) bf16, rows ordered [image, pooled-pos]
    """
    y = jnp.dot(x_ref[...], w_ref[...], preferred_element_type=jnp.float32)
    y = y + b_ref[...]
    alpha = a_ref[0]
    y = jnp.where(y >= 0.0, y, alpha * y)            # PReLU (shared alpha), f32
    c = y.shape[-1]
    y = y.reshape(ipb, 4, pos, c)                    # free reshape (pos % 8 == 0)
    y = jnp.max(y, axis=1)                           # 2x2 max-pool (leading dim)
    o_ref[...] = y.reshape(ipb * pos, c).astype(o_ref.dtype)


def _fc_stack_kernel(x_ref, w1_ref, b1_ref, w2_ref, b2_ref, w3_ref, b3_ref,
                     w4_ref, b4_ref, a_ref, o_ref):
    """fc1+PReLU, fc2+PReLU, fc3 (2-d embedding, padded to 128), head PReLU,
    classifier Linear, log_softmax — all fused; weights stay in VMEM."""
    a1, a2, a3 = a_ref[0], a_ref[1], a_ref[2]
    h = jnp.dot(x_ref[...], w1_ref[...], preferred_element_type=jnp.float32)
    h = h + b1_ref[...]
    h = jnp.where(h >= 0.0, h, a1 * h)
    h = jnp.dot(h.astype(jnp.bfloat16), w2_ref[...],
                preferred_element_type=jnp.float32) + b2_ref[...]
    h = jnp.where(h >= 0.0, h, a2 * h)
    e = jnp.dot(h, w3_ref[...], preferred_element_type=jnp.float32) + b3_ref[...]
    e = jnp.where(e >= 0.0, e, a3 * e)               # ClassificationNet.nonlinear
    logits = jnp.dot(e, w4_ref[...], preferred_element_type=jnp.float32) + b4_ref[...]
    m = jnp.max(logits, axis=-1, keepdims=True)
    lse = jnp.log(jnp.sum(jnp.exp(logits - m), axis=-1, keepdims=True)) + m
    o_ref[...] = logits - lse                        # log_softmax(dim=-1)


# ------------------------------- wrappers ----------------------------------- #

def _images_per_block(n, rows_per_image, target_rows=1024):
    """Pick images per grid step: amortize per-step overhead (~512-1024 rows)
    while keeping >= 2 grid steps so megacore / pipelining can engage."""
    ipb = max(1, min(n, target_rows // max(rows_per_image, 1)))
    if n >= 2:
        ipb = min(ipb, n // 2)
    ipb = max(ipb, 1)
    while n % ipb:
        ipb -= 1
    return ipb


def conv_prelu_pool(patches, w_mat, bias, alpha):
    """patches: (n, 4, pos, K) window-reordered im2col. Returns (n*pos, C) bf16."""
    n, four, pos, K = patches.shape
    assert four == 4
    C = w_mat.shape[1]
    ipb = _images_per_block(n, 4 * pos)
    x2 = patches.reshape(n * 4 * pos, K).astype(jnp.bfloat16)
    b2 = bias.reshape(1, C).astype(jnp.float32)
    bm_in, bm_out = ipb * 4 * pos, ipb * pos
    return pl.pallas_call(
        functools.partial(_conv_prelu_pool_kernel, ipb=ipb, pos=pos),
        out_shape=jax.ShapeDtypeStruct((n * pos, C), jnp.bfloat16),
        grid=(n // ipb,),
        in_specs=[
            pl.BlockSpec((bm_in, K), lambda i: (i, 0)),
            pl.BlockSpec((K, C), lambda i: (0, 0)),
            pl.BlockSpec((1, C), lambda i: (0, 0)),
            pl.BlockSpec(memory_space=pltpu.MemorySpace.SMEM),
        ],
        out_specs=pl.BlockSpec((bm_out, C), lambda i: (i, 0)),
        compiler_params=pltpu.CompilerParams(dimension_semantics=("parallel",)),
    )(x2, w_mat, b2, alpha)


def fc_stack_log_softmax(feats, kp, n_classes):
    """feats: (M, 1024) in NHWC-flatten order (fc1_w rows are pre-permuted)."""
    M, K = feats.shape
    block_m = 256 if M >= 256 else _round_up(M, 8)
    Mp = _round_up(M, block_m)
    x = feats.astype(jnp.bfloat16)
    if Mp != M:
        x = jnp.pad(x, ((0, Mp - M), (0, 0)))
    out = pl.pallas_call(
        _fc_stack_kernel,
        out_shape=jax.ShapeDtypeStruct((Mp, HEAD_PAD), jnp.float32),
        grid=(Mp // block_m,),
        in_specs=[
            pl.BlockSpec((block_m, K), lambda i: (i, 0)),
            pl.BlockSpec((K, 256), lambda i: (0, 0)),
            pl.BlockSpec((1, 256), lambda i: (0, 0)),
            pl.BlockSpec((256, 256), lambda i: (0, 0)),
            pl.BlockSpec((1, 256), lambda i: (0, 0)),
            pl.BlockSpec((256, EMB_PAD), lambda i: (0, 0)),
            pl.BlockSpec((1, EMB_PAD), lambda i: (0, 0)),
            pl.BlockSpec((EMB_PAD, HEAD_PAD), lambda i: (0, 0)),
            pl.BlockSpec((1, HEAD_PAD), lambda i: (0, 0)),
            pl.BlockSpec(memory_space=pltpu.MemorySpace.SMEM),
        ],
        out_specs=pl.BlockSpec((block_m, HEAD_PAD), lambda i: (i, 0)),
        compiler_params=pltpu.CompilerParams(dimension_semantics=("parallel",)),
    )(x, kp["fc1_w"], kp["fc1_b"], kp["fc2_w"], kp["fc2_b"],
      kp["fc3_w"], kp["fc3_b"], kp["head_w"], kp["head_b"], kp["fc_alphas"])
    return out[:M, :n_classes]


# ------------------------------- JAX glue ----------------------------------- #

def _im2col_pool_reorder(x_nhwc, kh, kw):
    """Valid-padding im2col, rows reordered so the 2x2 pool window index is a
    leading dim: returns (n, 4, (oh//2)*(ow//2), kh*kw*c), feature order (kh,kw,cin)."""
    n, h, w, c = x_nhwc.shape
    oh, ow = h - kh + 1, w - kw + 1
    oh2, ow2 = oh // 2, ow // 2
    cols = [x_nhwc[:, i:i + oh, j:j + ow, :] for i in range(kh) for j in range(kw)]
    p = jnp.concatenate(cols, axis=-1)                       # (n, oh, ow, K)
    K = kh * kw * c
    p = p.reshape(n, oh2, 2, ow2, 2, K)
    p = jnp.transpose(p, (0, 2, 4, 1, 3, 5))                 # (n, 2, 2, oh2, ow2, K)
    return p.reshape(n, 4, oh2 * ow2, K)


def _conv_weight_to_matrix(w_oihw):
    """PyTorch (cout, cin, kh, kw) -> (kh*kw*cin, cout), matching im2col order."""
    co, ci, kh, kw = w_oihw.shape
    return jnp.transpose(w_oihw, (2, 3, 1, 0)).reshape(kh * kw * ci, co)


def init_params(key, n_classes=10):
    """PyTorch-layout parameters (ClassificationNet wrapping EmbeddingNet)."""
    ks = jax.random.split(key, 12)
    return {
        "conv1_w": jax.random.normal(ks[0], (32, 1, 5, 5), jnp.float32) * 0.10,
        "conv1_b": jax.random.normal(ks[1], (32,), jnp.float32) * 0.01,
        "conv2_w": jax.random.normal(ks[2], (64, 32, 5, 5), jnp.float32) * 0.05,
        "conv2_b": jax.random.normal(ks[3], (64,), jnp.float32) * 0.01,
        "fc1_w": jax.random.normal(ks[4], (64 * 4 * 4, 256), jnp.float32) * 0.03,
        "fc1_b": jax.random.normal(ks[5], (256,), jnp.float32) * 0.01,
        "fc2_w": jax.random.normal(ks[6], (256, 256), jnp.float32) * 0.06,
        "fc2_b": jax.random.normal(ks[7], (256,), jnp.float32) * 0.01,
        "fc3_w": jax.random.normal(ks[8], (256, 2), jnp.float32) * 0.06,
        "fc3_b": jax.random.normal(ks[9], (2,), jnp.float32) * 0.01,
        "head_w": jax.random.normal(ks[10], (2, n_classes), jnp.float32) * 0.5,
        "head_b": jax.random.normal(ks[11], (n_classes,), jnp.float32) * 0.01,
        # nn.PReLU() defaults: single shared parameter initialised to 0.25
        "a1": jnp.float32(0.25), "a2": jnp.float32(0.25), "a3": jnp.float32(0.25),
        "a4": jnp.float32(0.25), "a5": jnp.float32(0.25),
    }


def prepare_params(p, n_classes):
    """One-time host-side param prep: conv weights as matrices (bf16), fc1 rows
    permuted from NCHW-flatten to NHWC-flatten order, fc3/head padded to
    lane-dense widths, alphas packed for SMEM."""
    fc1_perm = (p["fc1_w"].reshape(64, 4, 4, 256)          # rows were (c, h, w)
                .transpose(1, 2, 0, 3).reshape(1024, 256))  # now (h, w, c) = NHWC
    fc3_w = jnp.zeros((256, EMB_PAD), jnp.float32).at[:, :2].set(p["fc3_w"])
    fc3_b = jnp.zeros((EMB_PAD,), jnp.float32).at[:2].set(p["fc3_b"])
    head_w = jnp.zeros((EMB_PAD, HEAD_PAD), jnp.float32).at[:2, :n_classes].set(p["head_w"])
    head_b = jnp.full((HEAD_PAD,), NEG_BIG, jnp.float32).at[:n_classes].set(p["head_b"])
    return {
        "conv1_wm": _conv_weight_to_matrix(p["conv1_w"]).astype(jnp.bfloat16),
        "conv1_b": p["conv1_b"].astype(jnp.float32),
        "conv2_wm": _conv_weight_to_matrix(p["conv2_w"]).astype(jnp.bfloat16),
        "conv2_b": p["conv2_b"].astype(jnp.float32),
        "fc1_w": fc1_perm.astype(jnp.bfloat16),
        "fc1_b": p["fc1_b"].reshape(1, 256).astype(jnp.float32),
        "fc2_w": p["fc2_w"].astype(jnp.bfloat16),
        "fc2_b": p["fc2_b"].reshape(1, 256).astype(jnp.float32),
        "fc3_w": fc3_w,
        "fc3_b": fc3_b.reshape(1, EMB_PAD),
        "head_w": head_w,
        "head_b": head_b.reshape(1, HEAD_PAD),
        "a1": p["a1"].reshape(1).astype(jnp.float32),
        "a2": p["a2"].reshape(1).astype(jnp.float32),
        "fc_alphas": jnp.stack([p["a3"], p["a4"], p["a5"]]).astype(jnp.float32),
    }


def classification_net_forward(kp, x_nchw, *, n_classes):
    n = x_nchw.shape[0]
    x = jnp.transpose(x_nchw, (0, 2, 3, 1)).astype(jnp.bfloat16)    # NCHW -> NHWC

    # conv1(1->32, 5x5) + PReLU + MaxPool2d(2): 28x28 -> 24x24 -> 12x12
    p1 = _im2col_pool_reorder(x, 5, 5)                               # (n, 4, 144, 25)
    y1 = conv_prelu_pool(p1, kp["conv1_wm"], kp["conv1_b"], kp["a1"])
    y1 = y1.reshape(n, 12, 12, 32)

    # conv2(32->64, 5x5) + PReLU + MaxPool2d(2): 12x12 -> 8x8 -> 4x4
    p2 = _im2col_pool_reorder(y1, 5, 5)                              # (n, 4, 16, 800)
    y2 = conv_prelu_pool(p2, kp["conv2_wm"], kp["conv2_b"], kp["a2"])

    # NHWC flatten (fc1 rows pre-permuted, so no runtime transpose needed)
    feats = y2.reshape(n, 4 * 4 * 64)

    # fc stack + head PReLU + classifier + log_softmax (single fused kernel)
    return fc_stack_log_softmax(feats, kp, n_classes)                # (n, n_classes)


if __name__ == "__main__":
    n_classes = 10
    key = jax.random.PRNGKey(0)
    pkey, xkey = jax.random.split(key)
    params = init_params(pkey, n_classes=n_classes)
    kparams = prepare_params(params, n_classes)
    x = jax.random.normal(xkey, (2, 1, 28, 28), jnp.float32)         # NCHW like PyTorch

    fwd = jax.jit(functools.partial(classification_net_forward, n_classes=n_classes))
    out = fwd(kparams, x)
    jax.block_until_ready(out)

    assert out.shape == (2, n_classes), out.shape
    assert bool(jnp.all(jnp.isfinite(out)))
    probs = jnp.exp(out)                                             # log_softmax sanity
    assert bool(jnp.all(jnp.abs(jnp.sum(probs, axis=-1) - 1.0) < 1e-3))
    print("KERNEL_OK")
</pallas_src>

<mosaic_0001>
module attributes {stable_mosaic.version = 11 : i64} {
  func.func @_conv_prelu_pool_kernel(%arg0: i32, %arg1: memref<576x25xbf16, #tpu.memory_space<vmem>>, %arg2: memref<25x32xbf16, #tpu.memory_space<vmem>>, %arg3: memref<1x32xf32, #tpu.memory_space<vmem>>, %arg4: memref<1xf32, #tpu.memory_space<smem>>, %arg5: memref<144x32xbf16, #tpu.memory_space<vmem>>) attributes {dimension_semantics = [#tpu.dimension_semantics<parallel>], iteration_bounds = array<i64: 2>, scalar_prefetch = 0 : i64, scratch_operands = 0 : i64, tpu.core_type = #tpu.core_type<tc>, window_params = [{transform_indices = @transform_0, window_bounds = array<i64: 576, 25>}, {pipeline_mode = #tpu.pipeline_mode<synchronous>, transform_indices = @transform_1, window_bounds = array<i64: 25, 32>}, {pipeline_mode = #tpu.pipeline_mode<synchronous>, transform_indices = @transform_2, window_bounds = array<i64: 1, 32>}, {transform_indices = @transform_3, window_bounds = array<i64: 1>}, {transform_indices = @transform_4, window_bounds = array<i64: 144, 32>}]} {
    %c0 = arith.constant 0 : index
    %c0_0 = arith.constant 0 : index
    %0 = vector.load %arg1[%c0, %c0_0] : memref<576x25xbf16, #tpu.memory_space<vmem>>, vector<576x25xbf16>
    %c0_1 = arith.constant 0 : index
    %c0_2 = arith.constant 0 : index
    %1 = vector.load %arg2[%c0_1, %c0_2] : memref<25x32xbf16, #tpu.memory_space<vmem>>, vector<25x32xbf16>
    %cst = arith.constant dense<0.000000e+00> : vector<576x32xf32>
    %2 = tpu.matmul %0, %1, %cst {dimension_numbers = #tpu.dot_dimension_numbers<[1], [0], [0], [1], [0, 0, 1, 1], [], []>} : vector<576x25xbf16>, vector<25x32xbf16>, vector<576x32xf32> -> vector<576x32xf32>
    %c0_3 = arith.constant 0 : index
    %c0_4 = arith.constant 0 : index
    %3 = vector.load %arg3[%c0_3, %c0_4] : memref<1x32xf32, #tpu.memory_space<vmem>>, vector<1x32xf32>
    %4 = vector.broadcast %3 : vector<1x32xf32> to vector<576x32xf32>
    %5 = arith.addf %2, %4 : vector<576x32xf32>
    %c0_5 = arith.constant 0 : index
    %6 = memref.load %arg4[%c0_5] : memref<1xf32, #tpu.memory_space<smem>>
    %cst_6 = arith.constant 0.000000e+00 : f32
    %7 = vector.broadcast %cst_6 : f32 to vector<576x32xf32>
    %8 = arith.cmpf oge, %5, %7 : vector<576x32xf32>
    %9 = vector.broadcast %6 : f32 to vector<576x32xf32>
    %10 = arith.mulf %9, %5 : vector<576x32xf32>
    %11 = arith.select %8, %5, %10 : vector<576x32xi1>, vector<576x32xf32>
    %12 = vector.shape_cast %11 : vector<576x32xf32> to vector<1x4x144x32xf32>
    %cst_7 = arith.constant dense<0xFF800000> : vector<1x144x32xf32>
    %13 = vector.multi_reduction <maximumf>, %12, %cst_7 [1] : vector<1x4x144x32xf32> to vector<1x144x32xf32>
    %14 = vector.shape_cast %13 : vector<1x144x32xf32> to vector<144x32xf32>
    %15 = arith.truncf %14 : vector<144x32xf32> to vector<144x32xbf16>
    %c0_8 = arith.constant 0 : index
    %c0_9 = arith.constant 0 : index
    %16 = vector.load %arg5[%c0_8, %c0_9] : memref<144x32xbf16, #tpu.memory_space<vmem>>, vector<144x32xbf16>
    tpu.vector_store %arg5[%c0_8, %c0_9], %15 {strides = array<i32>} : memref<144x32xbf16, #tpu.memory_space<vmem>>, vector<144x32xbf16>,
    return
  }
  func.func @transform_0(%arg0: i32) -> (i32, i32) {
    %c0_i32 = arith.constant 0 : i32
    %c0_i32_0 = arith.constant 0 : i32
    return %arg0, %c0_i32 : i32, i32
  }
  func.func @transform_1(%arg0: i32) -> (i32, i32) {
    %c0_i32 = arith.constant 0 : i32
    %c0_i32_0 = arith.constant 0 : i32
    %c0_i32_1 = arith.constant 0 : i32
    return %c0_i32, %c0_i32_0 : i32, i32
  }
  func.func @transform_2(%arg0: i32) -> (i32, i32) {
    %c0_i32 = arith.constant 0 : i32
    %c0_i32_0 = arith.constant 0 : i32
    %c0_i32_1 = arith.constant 0 : i32
    return %c0_i32, %c0_i32_0 : i32, i32
  }
  func.func @transform_3(%arg0: i32) -> i32 {
    %c0_i32 = arith.constant 0 : i32
    %c0_i32_0 = arith.constant 0 : i32
    return %c0_i32 : i32
  }
  func.func @transform_4(%arg0: i32) -> (i32, i32) {
    %c0_i32 = arith.constant 0 : i32
    %c0_i32_0 = arith.constant 0 : i32
    return %arg0, %c0_i32 : i32, i32
  }
}

module attributes {stable_mosaic.version = 11 : i64} {
  func.func @_conv_prelu_pool_kernel(%arg0: i32, %arg1: memref<64x800xbf16, #tpu.memory_space<vmem>>, %arg2: memref<800x64xbf16, #tpu.memory_space<vmem>>, %arg3: memref<1x64xf32, #tpu.memory_space<vmem>>, %arg4: memref<1xf32, #tpu.memory_space<smem>>, %arg5: memref<16x64xbf16, #tpu.memory_space<vmem>>) attributes {dimension_semantics = [#tpu.dimension_semantics<parallel>], iteration_bounds = array<i64: 2>, scalar_prefetch = 0 : i64, scratch_operands = 0 : i64, tpu.core_type = #tpu.core_type<tc>, window_params = [{transform_indices = @transform_0, window_bounds = array<i64: 64, 800>}, {pipeline_mode = #tpu.pipeline_mode<synchronous>, transform_indices = @transform_1, window_bounds = array<i64: 800, 64>}, {pipeline_mode = #tpu.pipeline_mode<synchronous>, transform_indices = @transform_2, window_bounds = array<i64: 1, 64>}, {transform_indices = @transform_3, window_bounds = array<i64: 1>}, {transform_indices = @transform_4, window_bounds = array<i64: 16, 64>}]} {
    %c0 = arith.constant 0 : index
    %c0_0 = arith.constant 0 : index
    %0 = vector.load %arg1[%c0, %c0_0] : memref<64x800xbf16, #tpu.memory_space<vmem>>, vector<64x800xbf16>
    %c0_1 = arith.constant 0 : index
    %c0_2 = arith.constant 0 : index
    %1 = vector.load %arg2[%c0_1, %c0_2] : memref<800x64xbf16, #tpu.memory_space<vmem>>, vector<800x64xbf16>
    %cst = arith.constant dense<0.000000e+00> : vector<64x64xf32>
    %2 = tpu.matmul %0, %1, %cst {dimension_numbers = #tpu.dot_dimension_numbers<[1], [0], [0], [1], [0, 0, 1, 1], [], []>} : vector<64x800xbf16>, vector<800x64xbf16>, vector<64x64xf32> -> vector<64x64xf32>
    %c0_3 = arith.constant 0 : index
    %c0_4 = arith.constant 0 : index
    %3 = vector.load %arg3[%c0_3, %c0_4] : memref<1x64xf32, #tpu.memory_space<vmem>>, vector<1x64xf32>
    %4 = vector.broadcast %3 : vector<1x64xf32> to vector<64x64xf32>
    %5 = arith.addf %2, %4 : vector<64x64xf32>
    %c0_5 = arith.constant 0 : index
    %6 = memref.load %arg4[%c0_5] : memref<1xf32, #tpu.memory_space<smem>>
    %cst_6 = arith.constant 0.000000e+00 : f32
    %7 = vector.broadcast %cst_6 : f32 to vector<64x64xf32>
    %8 = arith.cmpf oge, %5, %7 : vector<64x64xf32>
    %9 = vector.broadcast %6 : f32 to vector<64x64xf32>
    %10 = arith.mulf %9, %5 : vector<64x64xf32>
    %11 = arith.select %8, %5, %10 : vector<64x64xi1>, vector<64x64xf32>
    %12 = vector.shape_cast %11 : vector<64x64xf32> to vector<1x4x16x64xf32>
    %cst_7 = arith.constant dense<0xFF800000> : vector<1x16x64xf32>
    %13 = vector.multi_reduction <maximumf>, %12, %cst_7 [1] : vector<1x4x16x64xf32> to vector<1x16x64xf32>
    %14 = vector.shape_cast %13 : vector<1x16x64xf32> to vector<16x64xf32>
    %15 = arith.truncf %14 : vector<16x64xf32> to vector<16x64xbf16>
    %c0_8 = arith.constant 0 : index
    %c0_9 = arith.constant 0 : index
    %16 = vector.load %arg5[%c0_8, %c0_9] : memref<16x64xbf16, #tpu.memory_space<vmem>>, vector<16x64xbf16>
    tpu.vector_store %arg5[%c0_8, %c0_9], %15 {strides = array<i32>} : memref<16x64xbf16, #tpu.memory_space<vmem>>, vector<16x64xbf16>,
    return
  }
  func.func @transform_0(%arg0: i32) -> (i32, i32) {
    %c0_i32 = arith.constant 0 : i32
    %c0_i32_0 = arith.constant 0 : i32
    return %arg0, %c0_i32 : i32, i32
  }
  func.func @transform_1(%arg0: i32) -> (i32, i32) {
    %c0_i32 = arith.constant 0 : i32
    %c0_i32_0 = arith.constant 0 : i32
    %c0_i32_1 = arith.constant 0 : i32
    return %c0_i32, %c0_i32_0 : i32, i32
  }
  func.func @transform_2(%arg0: i32) -> (i32, i32) {
    %c0_i32 = arith.constant 0 : i32
    %c0_i32_0 = arith.constant 0 : i32
    %c0_i32_1 = arith.constant 0 : i32
    return %c0_i32, %c0_i32_0 : i32, i32
  }
  func.func @transform_3(%arg0: i32) -> i32 {
    %c0_i32 = arith.constant 0 : i32
    %c0_i32_0 = arith.constant 0 : i32
    return %c0_i32 : i32
  }
  func.func @transform_4(%arg0: i32) -> (i32, i32) {
    %c0_i32 = arith.constant 0 : i32
    %c0_i32_0 = arith.constant 0 : i32
    return %arg0, %c0_i32 : i32, i32
  }
}

module attributes {stable_mosaic.version = 11 : i64} {
  func.func @_fc_stack_kernel(%arg0: i32, %arg1: memref<8x1024xbf16, #tpu.memory_space<vmem>>, %arg2: memref<1024x256xbf16, #tpu.memory_space<vmem>>, %arg3: memref<1x256xf32, #tpu.memory_space<vmem>>, %arg4: memref<256x256xbf16, #tpu.memory_space<vmem>>, %arg5: memref<1x256xf32, #tpu.memory_space<vmem>>, %arg6: memref<256x128xf32, #tpu.memory_space<vmem>>, %arg7: memref<1x128xf32, #tpu.memory_space<vmem>>, %arg8: memref<128x128xf32, #tpu.memory_space<vmem>>, %arg9: memref<1x128xf32, #tpu.memory_space<vmem>>, %arg10: memref<3xf32, #tpu.memory_space<smem>>, %arg11: memref<8x128xf32, #tpu.memory_space<vmem>>) attributes {dimension_semantics = [#tpu.dimension_semantics<parallel>], iteration_bounds = array<i64: 1>, scalar_prefetch = 0 : i64, scratch_operands = 0 : i64, tpu.core_type = #tpu.core_type<tc>, window_params = [{transform_indices = @transform_0, window_bounds = array<i64: 8, 1024>}, {pipeline_mode = #tpu.pipeline_mode<synchronous>, transform_indices = @transform_1, window_bounds = array<i64: 1024, 256>}, {pipeline_mode = #tpu.pipeline_mode<synchronous>, transform_indices = @transform_2, window_bounds = array<i64: 1, 256>}, {pipeline_mode = #tpu.pipeline_mode<synchronous>, transform_indices = @transform_3, window_bounds = array<i64: 256, 256>}, {pipeline_mode = #tpu.pipeline_mode<synchronous>, transform_indices = @transform_4, window_bounds = array<i64: 1, 256>}, {pipeline_mode = #tpu.pipeline_mode<synchronous>, transform_indices = @transform_5, window_bounds = array<i64: 256, 128>}, {pipeline_mode = #tpu.pipeline_mode<synchronous>, transform_indices = @transform_6, window_bounds = array<i64: 1, 128>}, {pipeline_mode = #tpu.pipeline_mode<synchronous>, transform_indices = @transform_7, window_bounds = array<i64: 128, 128>}, {pipeline_mode = #tpu.pipeline_mode<synchronous>, transform_indices = @transform_8, window_bounds = array<i64: 1, 128>}, {transform_indices = @transform_9, window_bounds = array<i64: 3>}, {transform_indices = @transform_10, window_bounds = array<i64: 8, 128>}]} {
    %c0 = arith.constant 0 : index
    %0 = memref.load %arg10[%c0] : memref<3xf32, #tpu.memory_space<smem>>
    %c1 = arith.constant 1 : index
    %1 = memref.load %arg10[%c1] : memref<3xf32, #tpu.memory_space<smem>>
    %c2 = arith.constant 2 : index
    %2 = memref.load %arg10[%c2] : memref<3xf32, #tpu.memory_space<smem>>
    %c0_0 = arith.constant 0 : index
    %c0_1 = arith.constant 0 : index
    %3 = vector.load %arg1[%c0_0, %c0_1] : memref<8x1024xbf16, #tpu.memory_space<vmem>>, vector<8x1024xbf16>
    %c0_2 = arith.constant 0 : index
    %c0_3 = arith.constant 0 : index
    %4 = vector.load %arg2[%c0_2, %c0_3] : memref<1024x256xbf16, #tpu.memory_space<vmem>>, vector<1024x256xbf16>
    %cst = arith.constant dense<0.000000e+00> : vector<8x256xf32>
    %5 = tpu.matmul %3, %4, %cst {dimension_numbers = #tpu.dot_dimension_numbers<[1], [0], [0], [1], [0, 0, 1, 1], [], []>} : vector<8x1024xbf16>, vector<1024x256xbf16>, vector<8x256xf32> -> vector<8x256xf32>
    %c0_4 = arith.constant 0 : index
    %c0_5 = arith.constant 0 : index
    %6 = vector.load %arg3[%c0_4, %c0_5] : memref<1x256xf32, #tpu.memory_space<vmem>>, vector<1x256xf32>
    %7 = vector.broadcast %6 : vector<1x256xf32> to vector<8x256xf32>
    %8 = arith.addf %5, %7 : vector<8x256xf32>
    %cst_6 = arith.constant 0.000000e+00 : f32
    %9 = vector.broadcast %cst_6 : f32 to vector<8x256xf32>
    %10 = arith.cmpf oge, %8, %9 : vector<8x256xf32>
    %11 = vector.broadcast %0 : f32 to vector<8x256xf32>
    %12 = arith.mulf %11, %8 : vector<8x256xf32>
    %13 = arith.select %10, %8, %12 : vector<8x256xi1>, vector<8x256xf32>
    %14 = arith.truncf %13 : vector<8x256xf32> to vector<8x256xbf16>
    %c0_7 = arith.constant 0 : index
    %c0_8 = arith.constant 0 : index
    %15 = vector.load %arg4[%c0_7, %c0_8] : memref<256x256xbf16, #tpu.memory_space<vmem>>, vector<256x256xbf16>
    %cst_9 = arith.constant dense<0.000000e+00> : vector<8x256xf32>
    %16 = tpu.matmul %14, %15, %cst_9 {dimension_numbers = #tpu.dot_dimension_numbers<[1], [0], [0], [1], [0, 0, 1, 1], [], []>} : vector<8x256xbf16>, vector<256x256xbf16>, vector<8x256xf32> -> vector<8x256xf32>
    %c0_10 = arith.constant 0 : index
    %c0_11 = arith.constant 0 : index
    %17 = vector.load %arg5[%c0_10, %c0_11] : memref<1x256xf32, #tpu.memory_space<vmem>>, vector<1x256xf32>
    %18 = vector.broadcast %17 : vector<1x256xf32> to vector<8x256xf32>
    %19 = arith.addf %16, %18 : vector<8x256xf32>
    %cst_12 = arith.constant 0.000000e+00 : f32
    %20 = vector.broadcast %cst_12 : f32 to vector<8x256xf32>
    %21 = arith.cmpf oge, %19, %20 : vector<8x256xf32>
    %22 = vector.broadcast %1 : f32 to vector<8x256xf32>
    %23 = arith.mulf %22, %19 : vector<8x256xf32>
    %24 = arith.select %21, %19, %23 : vector<8x256xi1>, vector<8x256xf32>
    %c0_13 = arith.constant 0 : index
    %c0_14 = arith.constant 0 : index
    %25 = vector.load %arg6[%c0_13, %c0_14] : memref<256x128xf32, #tpu.memory_space<vmem>>, vector<256x128xf32>
    %cst_15 = arith.constant dense<0.000000e+00> : vector<8x128xf32>
    %26 = tpu.matmul %24, %25, %cst_15 {dimension_numbers = #tpu.dot_dimension_numbers<[1], [0], [0], [1], [0, 0, 1, 1], [], []>} : vector<8x256xf32>, vector<256x128xf32>, vector<8x128xf32> -> vector<8x128xf32>
    %c0_16 = arith.constant 0 : index
    %c0_17 = arith.constant 0 : index
    %27 = vector.load %arg7[%c0_16, %c0_17] : memref<1x128xf32, #tpu.memory_space<vmem>>, vector<1x128xf32>
    %28 = vector.broadcast %27 : vector<1x128xf32> to vector<8x128xf32>
    %29 = arith.addf %26, %28 : vector<8x128xf32>
    %cst_18 = arith.constant 0.000000e+00 : f32
    %30 = vector.broadcast %cst_18 : f32 to vector<8x128xf32>
    %31 = arith.cmpf oge, %29, %30 : vector<8x128xf32>
    %32 = vector.broadcast %2 : f32 to vector<8x128xf32>
    %33 = arith.mulf %32, %29 : vector<8x128xf32>
    %34 = arith.select %31, %29, %33 : vector<8x128xi1>, vector<8x128xf32>
    %c0_19 = arith.constant 0 : index
    %c0_20 = arith.constant 0 : index
    %35 = vector.load %arg8[%c0_19, %c0_20] : memref<128x128xf32, #tpu.memory_space<vmem>>, vector<128x128xf32>
    %cst_21 = arith.constant dense<0.000000e+00> : vector<8x128xf32>
    %36 = tpu.matmul %34, %35, %cst_21 {dimension_numbers = #tpu.dot_dimension_numbers<[1], [0], [0], [1], [0, 0, 1, 1], [], []>} : vector<8x128xf32>, vector<128x128xf32>, vector<8x128xf32> -> vector<8x128xf32>
    %c0_22 = arith.constant 0 : index
    %c0_23 = arith.constant 0 : index
    %37 = vector.load %arg9[%c0_22, %c0_23] : memref<1x128xf32, #tpu.memory_space<vmem>>, vector<1x128xf32>
    %38 = vector.broadcast %37 : vector<1x128xf32> to vector<8x128xf32>
    %39 = arith.addf %36, %38 : vector<8x128xf32>
    %cst_24 = arith.constant dense<0xFF800000> : vector<8xf32>
    %40 = vector.multi_reduction <maximumf>, %39, %cst_24 [1] : vector<8x128xf32> to vector<8xf32>
    %41 = vector.shape_cast %40 : vector<8xf32> to vector<8x1xf32>
    %42 = vector.broadcast %41 : vector<8x1xf32> to vector<8x128xf32>
    %43 = arith.subf %39, %42 : vector<8x128xf32>
    %44 = math.exp %43 : vector<8x128xf32>
    %cst_25 = arith.constant dense<0.000000e+00> : vector<8xf32>
    %45 = vector.multi_reduction <add>, %44, %cst_25 [1] : vector<8x128xf32> to vector<8xf32>
    %46 = vector.shape_cast %45 : vector<8xf32> to vector<8x1xf32>
    %47 = math.log %46 : vector<8x1xf32>
    %48 = arith.addf %47, %41 : vector<8x1xf32>
    %49 = vector.broadcast %48 : vector<8x1xf32> to vector<8x128xf32>
    %50 = arith.subf %39, %49 : vector<8x128xf32>
    %c0_26 = arith.constant 0 : index
    %c0_27 = arith.constant 0 : index
    %51 = vector.load %arg11[%c0_26, %c0_27] : memref<8x128xf32, #tpu.memory_space<vmem>>, vector<8x128xf32>
    tpu.vector_store %arg11[%c0_26, %c0_27], %50 {strides = array<i32>} : memref<8x128xf32, #tpu.memory_space<vmem>>, vector<8x128xf32>,
    return
  }
  func.func @transform_0(%arg0: i32) -> (i32, i32) {
    %c0_i32 = arith.constant 0 : i32
    %c0_i32_0 = arith.constant 0 : i32
    return %arg0, %c0_i32 : i32, i32
  }
  func.func @transform_1(%arg0: i32) -> (i32, i32) {
    %c0_i32 = arith.constant 0 : i32
    %c0_i32_0 = arith.constant 0 : i32
    %c0_i32_1 = arith.constant 0 : i32
    return %c0_i32, %c0_i32_0 : i32, i32
  }
  func.func @transform_2(%arg0: i32) -> (i32, i32) {
    %c0_i32 = arith.constant 0 : i32
    %c0_i32_0 = arith.constant 0 : i32
    %c0_i32_1 = arith.constant 0 : i32
    return %c0_i32, %c0_i32_0 : i32, i32
  }
  func.func @transform_3(%arg0: i32) -> (i32, i32) {
    %c0_i32 = arith.constant 0 : i32
    %c0_i32_0 = arith.constant 0 : i32
    %c0_i32_1 = arith.constant 0 : i32
    return %c0_i32, %c0_i32_0 : i32, i32
  }
  func.func @transform_4(%arg0: i32) -> (i32, i32) {
    %c0_i32 = arith.constant 0 : i32
    %c0_i32_0 = arith.constant 0 : i32
    %c0_i32_1 = arith.constant 0 : i32
    return %c0_i32, %c0_i32_0 : i32, i32
  }
  func.func @transform_5(%arg0: i32) -> (i32, i32) {
    %c0_i32 = arith.constant 0 : i32
    %c0_i32_0 = arith.constant 0 : i32
    %c0_i32_1 = arith.constant 0 : i32
    return %c0_i32, %c0_i32_0 : i32, i32
  }
  func.func @transform_6(%arg0: i32) -> (i32, i32) {
    %c0_i32 = arith.constant 0 : i32
    %c0_i32_0 = arith.constant 0 : i32
    %c0_i32_1 = arith.constant 0 : i32
    return %c0_i32, %c0_i32_0 : i32, i32
  }
  func.func @transform_7(%arg0: i32) -> (i32, i32) {
    %c0_i32 = arith.constant 0 : i32
    %c0_i32_0 = arith.constant 0 : i32
    %c0_i32_1 = arith.constant 0 : i32
    return %c0_i32, %c0_i32_0 : i32, i32
  }
  func.func @transform_8(%arg0: i32) -> (i32, i32) {
    %c0_i32 = arith.constant 0 : i32
    %c0_i32_0 = arith.constant 0 : i32
    %c0_i32_1 = arith.constant 0 : i32
    return %c0_i32, %c0_i32_0 : i32, i32
  }
  func.func @transform_9(%arg0: i32) -> i32 {
    %c0_i32 = arith.constant 0 : i32
    %c0_i32_0 = arith.constant 0 : i32
    return %c0_i32 : i32
  }
  func.func @transform_10(%arg0: i32) -> (i32, i32) {
    %c0_i32 = arith.constant 0 : i32
    %c0_i32_0 = arith.constant 0 : i32
    return %arg0, %c0_i32 : i32, i32
  }
}

</mosaic_0001>

<llo_original>
// kernel: classification_net_forward.3
$region0: #{classification_net_forward.3}
  #allocation0 [shape = 'u32[]', space=smem, size = 0x4, offset = 0x4, fixed_abs, tag = 'smem constant byte address 0x4 - core index']
  #allocation1 [shape = 'u32[144,128]{1,0:T(1,128)}', space=vmem, size = 0x12000, scoped, tag = 'internal scratch']
  #allocation2 [shape = 'f32[1]{0:T(128)S(6)}', space=smem, size = 0x200, scoped, tag = 'scoped memory for classification_net_forward.3']
  %s0 = inlined_call_operand.vmem [shape: bf16[1152,25], index: 0, kind: input, shape index: {}]
  %s1 = inlined_call_operand.vmem [shape: bf16[25,32], index: 1, kind: input, shape index: {}]
  %s2 = inlined_call_operand.vmem [shape: f32[1,32], index: 2, kind: input, shape index: {}]
  %s3 = inlined_call_operand.<no memory space> [shape: f32[1], index: 3, kind: input, shape index: {}]
  %s4 = inlined_call_operand.vmem [shape: bf16[288,32], index: 4, kind: output, shape index: {}]
  %s5 = sld [smem:[#allocation0]]
  $region49: #{classification_net_forward.3} parent=0
    _
  %s7 = ssub.s32 1, %s5
  %s8 = scalar_select 0, %s7, %s5
  %9 = sst [smem:[#allocation2]] %s3
  loop: start=0, step=1, limit=4
  $region2: #{classification_net_forward.3} parent=0 // loop_pre_header
    _
  $region3: #{classification_net_forward.3} parent=0 // loop_header
    %s11 = sphi 0, %s15
    %p12 = scmp.ge.s32.totalorder %s11, 4
    %s21 = sphi 0, %s23
    %s24 = sphi 0, %s21
    %s25 = sphi 0, %s24
    %s41 = sphi 0, %s25
    %s45 = sphi 0, %s45
    %s47 = sphi 0, %s45
    %s48 = sphi 0, %s47
    %s62 = sphi 0, %s48
    %s66 = sphi 0, %s66
    %s68 = sphi 0, %s66
    %s69 = sphi 0, %s68
    %s83 = sphi 0, %s69
    %s87 = sphi 0, %s87
    %s89 = sphi 0, %s87
    %s90 = sphi 0, %s89
    %s104 = sphi 0, %s90
    %s110 = sphi 0, %s112
    %s113 = sphi 0, %s110
    %s114 = sphi 0, %s113
    %s130 = sphi 0, %s114
  $region4: #{classification_net_forward.3} parent=0 // loop_header_branch
    %14 = sbr.rel (%p12) target = $region8
  $region5: #{classification_net_forward.3} parent=0 // loop_body
    %s16 = ssub.s32 %s11, 1
    %s17 = ssub.s32 %s11, 2
    %s18 = sadd.s32 %s11, 1
    %s19 = ssub.s32 %s11, %s18
    %p20 = scmp.eq.s32.totalorder %s19, 0
    %s22 = sadd.s32 %s21, 1
    %s23 = scalar_select %p20, %s21, %s22
    %p26 = pneg %p20
    %p27 = scmp.eq.s32.totalorder %s11, 1
    %p28 = por %p26, %p27
    %p29 = scmp.ne.s32.totalorder %s21, %s24
    %p30 = scmp.eq.s32.totalorder %s11, 0
    %p31 = por %p29, %p30
    %p32 = scmp.ne.s32.totalorder %s21, %s24
    %p33 = scmp.eq.s32.totalorder %s16, 1
    %p34 = por %p32, %p33
    %p35 = scmp.ne.s32.totalorder %s24, %s25
    %p36 = scmp.eq.s32.totalorder %s16, 0
    %p37 = por %p35, %p36
    %p38 = scmp.ne.s32.totalorder %s24, %s25
    %p39 = scmp.eq.s32.totalorder %s17, 1
    %p40 = por %p38, %p39
    %p42 = scmp.ne.s32.totalorder %s25, %s41
    %p43 = scmp.eq.s32.totalorder %s17, 0
    %p44 = por %p42, %p43
    %s46 = sadd.s32 %s45, 1
    %p49 = scmp.eq.s32.totalorder %s11, 1
    %p50 = scmp.ne.s32.totalorder %s45, %s47
    %p51 = scmp.eq.s32.totalorder %s11, 0
    %p52 = por %p50, %p51
    %p53 = scmp.ne.s32.totalorder %s45, %s47
    %p54 = scmp.eq.s32.totalorder %s16, 1
    %p55 = por %p53, %p54
    %p56 = scmp.ne.s32.totalorder %s47, %s48
    %p57 = scmp.eq.s32.totalorder %s16, 0
    %p58 = por %p56, %p57
    %p59 = scmp.ne.s32.totalorder %s47, %s48
    %p60 = scmp.eq.s32.totalorder %s17, 1
    %p61 = por %p59, %p60
    %p63 = scmp.ne.s32.totalorder %s48, %s62
    %p64 = scmp.eq.s32.totalorder %s17, 0
    %p65 = por %p63, %p64
    %s67 = sadd.s32 %s66, 1
    %p70 = scmp.eq.s32.totalorder %s11, 1
    %p71 = scmp.ne.s32.totalorder %s66, %s68
    %p72 = scmp.eq.s32.totalorder %s11, 0
    %p73 = por %p71, %p72
    %p74 = scmp.ne.s32.totalorder %s66, %s68
    %p75 = scmp.eq.s32.totalorder %s16, 1
    %p76 = por %p74, %p75
    %p77 = scmp.ne.s32.totalorder %s68, %s69
    %p78 = scmp.eq.s32.totalorder %s16, 0
    %p79 = por %p77, %p78
    %p80 = scmp.ne.s32.totalorder %s68, %s69
    %p81 = scmp.eq.s32.totalorder %s17, 1
    %p82 = por %p80, %p81
    %p84 = scmp.ne.s32.totalorder %s69, %s83
    %p85 = scmp.eq.s32.totalorder %s17, 0
    %p86 = por %p84, %p85
    %s88 = sadd.s32 %s87, 1
    %p91 = scmp.eq.s32.totalorder %s11, 1
    %p92 = scmp.ne.s32.totalorder %s87, %s89
    %p93 = scmp.eq.s32.totalorder %s11, 0
    %p94 = por %p92, %p93
    %p95 = scmp.ne.s32.totalorder %s87, %s89
    %p96 = scmp.eq.s32.totalorder %s16, 1
    %p97 = por %p95, %p96
    %p98 = scmp.ne.s32.totalorder %s89, %s90
    %p99 = scmp.eq.s32.totalorder %s16, 0
    %p100 = por %p98, %p99
    %p101 = scmp.ne.s32.totalorder %s89, %s90
    %p102 = scmp.eq.s32.totalorder %s17, 1
    %p103 = por %p101, %p102
    %p105 = scmp.ne.s32.totalorder %s90, %s104
    %p106 = scmp.eq.s32.totalorder %s17, 0
    %p107 = por %p105, %p106
    %s108 = ssub.s32 %s11, %s18
    %p109 = scmp.eq.s32.totalorder %s108, 0
    %s111 = sadd.s32 %s110, 1
    %s112 = scalar_select %p109, %s110, %s111
    %p115 = pneg %p109
    %p116 = scmp.eq.s32.totalorder %s11, 1
    %p117 = por %p115, %p116
    %p118 = scmp.ne.s32.totalorder %s110, %s113
    %p119 = scmp.eq.s32.totalorder %s11, 0
    %p120 = por %p118, %p119
    %p121 = scmp.ne.s32.totalorder %s110, %s113
    %p122 = scmp.eq.s32.totalorder %s16, 1
    %p123 = por %p121, %p122
    %p124 = scmp.ne.s32.totalorder %s113, %s114
    %p125 = scmp.eq.s32.totalorder %s16, 0
    %p126 = por %p124, %p125
    %p127 = scmp.ne.s32.totalorder %s113, %s114
    %p128 = scmp.eq.s32.totalorder %s17, 1
    %p129 = por %p127, %p128
    %p131 = scmp.ne.s32.totalorder %s114, %s130
    %p132 = scmp.eq.s32.totalorder %s17, 0
    %p133 = por %p131, %p132
    %p134 = scmp.le.s32.totalorder 1, %s11
    %p135 = scmp.lt.s32.totalorder %s11, 3
    %p136 = pnand %p134, %p135
    %p137 = pneg %p136
    // Predicated region
    $region9: #{classification_net_forward.3} parent=5 // pred_check
      _
    $region10: #{classification_net_forward.3} parent=5 // pred_check_branch
      %139 = sbr.rel (%p136) target = $region12
    $region11: #{classification_net_forward.3} parent=5 // pred_region
      %s140 = ssub.s32 %s11, 1
      // Predicated region
      $region13: #{classification_net_forward.3} parent=11 // pred_check
        %p141 = pneg %p58
      $region14: #{classification_net_forward.3} parent=11 // pred_check_branch
        %143 = sbr.rel (%p141) target = $region16
      $region15: #{classification_net_forward.3} parent=11 // pred_region
        _
      $region16: #{classification_net_forward.3} parent=11 // pred_fallthru
        _
      // Predicated region
      $region17: #{classification_net_forward.3} parent=11 // pred_check
        %p144 = pneg %p79
      $region18: #{classification_net_forward.3} parent=11 // pred_check_branch
        %146 = sbr.rel (%p144) target = $region20
      $region19: #{classification_net_forward.3} parent=11 // pred_region
        _
      $region20: #{classification_net_forward.3} parent=11 // pred_fallthru
        _
      // Predicated region
      $region21: #{classification_net_forward.3} parent=11 // pred_check
        %p147 = pneg %p100
      $region22: #{classification_net_forward.3} parent=11 // pred_check_branch
        %149 = sbr.rel (%p147) target = $region24
      $region23: #{classification_net_forward.3} parent=11 // pred_region
        _
      $region24: #{classification_net_forward.3} parent=11 // pred_fallthru
        _
    $region12: #{classification_net_forward.3} parent=5 // pred_fallthru
      _
    %p150 = scmp.lt.s32.totalorder %s11, 2
    // Predicated region
    $region25: #{classification_net_forward.3} parent=5 // pred_check
      %p151 = pneg %p150
    $region26: #{classification_net_forward.3} parent=5 // pred_check_branch
      %153 = sbr.rel (%p151) target = $region28
    $region27: #{classification_net_forward.3} parent=5 // pred_region
      // Predicated region
      $region29: #{classification_net_forward.3} parent=27 // pred_check
        %p154 = pneg %p31
      $region30: #{classification_net_forward.3} parent=27 // pred_check_branch
        %156 = sbr.rel (%p154) target = $region32
      $region31: #{classification_net_forward.3} parent=27 // pred_region
        %s157 = smul.u32 72, %s11
        %p158 = scmp.lt.s32.totalorder %s157, 143
        %s159 = scalar_select %p158, %s157, 143
        %s160 = smul.addr %s159, 4
        %s161 = scalar_lea.vmem %s0, %s160
        %s162 = smul.u32 72, %s11
      $region32: #{classification_net_forward.3} parent=27 // pred_fallthru
        _
    $region28: #{classification_net_forward.3} parent=5 // pred_fallthru
      _
    %p163 = scmp.le.s32.totalorder 1, %s11
    %p164 = scmp.lt.s32.totalorder %s11, 3
    %p165 = pnand %p163, %p164
    %p166 = pneg %p165
    // Predicated region
    $region33: #{classification_net_forward.3} parent=5 // pred_check
      _
    $region34: #{classification_net_forward.3} parent=5 // pred_check_branch
      %168 = sbr.rel (%p165) target = $region36
    $region35: #{classification_net_forward.3} parent=5 // pred_region
      %s169 = ssub.s32 %s11, 1
      %s170 = smul.u32 72, %s16
      %p171 = scmp.lt.s32.totalorder %s170, 143
      %s172 = scalar_select %p171, %s170, 143
      %s173 = smul.addr %s172, 4
      %s174 = scalar_lea.vmem %s0, %s173
      %p175 = pneg %p37
      %p176 = pneg %p34
      %p177 = pneg %p58
      %p178 = pneg %p55
      %p179 = pneg %p79
      %p180 = pneg %p76
      %p181 = pneg %p100
      %p182 = pneg %p97
      %p183 = pneg %p126
      %p184 = pneg %p123
      %s185 = smul.u32 18, %s16
      %p186 = scmp.lt.s32.totalorder %s185, 35
      %s187 = scalar_select %p186, %s185, 35
      %s188 = smul.addr %s187, 4
      %s189 = scalar_lea.vmem %s4, %s188
      %s190 = smul.u32 72, %s16
      %p191 = scmp.lt.s32.totalorder %s190, 143
      %s192 = scalar_select %p191, %s190, 143
      %s193 = smul.addr %s192, 4
      %s194 = scalar_lea.vmem %s0, %s193
      %s195 = smul.u32 72, %s16
      %s196 = smul.u32 18, %s16
      %p197 = scmp.lt.s32.totalorder %s196, 35
      %s198 = scalar_select %p197, %s196, 35
      %s199 = smul.addr %s198, 4
      %s200 = scalar_lea.vmem %s4, %s199
      %s201 = smul.u32 18, %s16
      %v203 = vld [vmem:[%s194] sm:$0xf]
      %v204 = vld [vmem:[%s194 + $0x4] sm:$0xf]
      %v205 = vld [vmem:[%s194 + $0x8] sm:$0xf]
      %v206 = vld [vmem:[%s194 + $0xc] sm:$0xf]
      %v207 = vld [vmem:[%s194 + $0x10] sm:$0xf]
      %v208 = vld [vmem:[%s194 + $0x14] sm:$0xf]
      %v209 = vld [vmem:[%s194 + $0x18] sm:$0xf]
      %v210 = vld [vmem:[%s194 + $0x1c] sm:$0xf]
      %v211 = vld [vmem:[%s194 + $0x20] sm:$0xf]
      %v212 = vld [vmem:[%s194 + $0x24] sm:$0xf]
      %v213 = vld [vmem:[%s194 + $0x28] sm:$0xf]
      %v214 = vld [vmem:[%s194 + $0x2c] sm:$0xf]
      %v215 = vld [vmem:[%s194 + $0x30] sm:$0xf]
      %v216 = vld [vmem:[%s194 + $0x34] sm:$0xf]
      %v217 = vld [vmem:[%s194 + $0x38] sm:$0xf]
      %v218 = vld [vmem:[%s194 + $0x3c] sm:$0xf]
      %v219 = vld [vmem:[%s194 + $0x40] sm:$0xf]
      %v220 = vld [vmem:[%s194 + $0x44] sm:$0xf]
      %v221 = vld [vmem:[%s194 + $0x48] sm:$0xf]
      %v222 = vld [vmem:[%s194 + $0x4c] sm:$0xf]
      %v223 = vld [vmem:[%s194 + $0x50] sm:$0xf]
      %v224 = vld [vmem:[%s194 + $0x54] sm:$0xf]
      %v225 = vld [vmem:[%s194 + $0x58] sm:$0xf]
      %v226 = vld [vmem:[%s194 + $0x5c] sm:$0xf]
      %v227 = vld [vmem:[%s194 + $0x60] sm:$0xf]
      %v228 = vld [vmem:[%s194 + $0x64] sm:$0xf]
      %v229 = vld [vmem:[%s194 + $0x68] sm:$0xf]
      %v230 = vld [vmem:[%s194 + $0x6c] sm:$0xf]
      %v231 = vld [vmem:[%s194 + $0x70] sm:$0xf]
      %v232 = vld [vmem:[%s194 + $0x74] sm:$0xf]
      %v233 = vld [vmem:[%s194 + $0x78] sm:$0xf]
      %v234 = vld [vmem:[%s194 + $0x7c] sm:$0xf]
      %v235 = vld [vmem:[%s194 + $0x80] sm:$0xf]
      %v236 = vld [vmem:[%s194 + $0x84] sm:$0xf]
      %v237 = vld [vmem:[%s194 + $0x88] sm:$0xf]
      %v238 = vld [vmem:[%s194 + $0x8c] sm:$0xf]
      %v239 = vld [vmem:[%s194 + $0x90] sm:$0xf]
      %v240 = vld [vmem:[%s194 + $0x94] sm:$0xf]
      %v241 = vld [vmem:[%s194 + $0x98] sm:$0xf]
      %v242 = vld [vmem:[%s194 + $0x9c] sm:$0xf]
      %v243 = vld [vmem:[%s194 + $0xa0] sm:$0xf]
      %v244 = vld [vmem:[%s194 + $0xa4] sm:$0xf]
      %v245 = vld [vmem:[%s194 + $0xa8] sm:$0xf]
      %v246 = vld [vmem:[%s194 + $0xac] sm:$0xf]
      %v247 = vld [vmem:[%s194 + $0xb0] sm:$0xf]
      %v248 = vld [vmem:[%s194 + $0xb4] sm:$0xf]
      %v249 = vld [vmem:[%s194 + $0xb8] sm:$0xf]
      %v250 = vld [vmem:[%s194 + $0xbc] sm:$0xf]
      %v251 = vld [vmem:[%s194 + $0xc0] sm:$0xf]
      %v252 = vld [vmem:[%s194 + $0xc4] sm:$0xf]
      %v253 = vld [vmem:[%s194 + $0xc8] sm:$0xf]
      %v254 = vld [vmem:[%s194 + $0xcc] sm:$0xf]
      %v255 = vld [vmem:[%s194 + $0xd0] sm:$0xf]
      %v256 = vld [vmem:[%s194 + $0xd4] sm:$0xf]
      %v257 = vld [vmem:[%s194 + $0xd8] sm:$0xf]
      %v258 = vld [vmem:[%s194 + $0xdc] sm:$0xf]
      %v259 = vld [vmem:[%s194 + $0xe0] sm:$0xf]
      %v260 = vld [vmem:[%s194 + $0xe4] sm:$0xf]
      %v261 = vld [vmem:[%s194 + $0xe8] sm:$0xf]
      %v262 = vld [vmem:[%s194 + $0xec] sm:$0xf]
      %v263 = vld [vmem:[%s194 + $0xf0] sm:$0xf]
      %v264 = vld [vmem:[%s194 + $0xf4] sm:$0xf]
      %v265 = vld [vmem:[%s194 + $0xf8] sm:$0xf]
      %v266 = vld [vmem:[%s194 + $0xfc] sm:$0xf]
      %v267 = vld [vmem:[%s194 + $0x100] sm:$0xf]
      %v268 = vld [vmem:[%s194 + $0x104] sm:$0xf]
      %v269 = vld [vmem:[%s194 + $0x108] sm:$0xf]
      %v270 = vld [vmem:[%s194 + $0x10c] sm:$0xf]
      %v271 = vld [vmem:[%s194 + $0x110] sm:$0xf]
      %v272 = vld [vmem:[%s194 + $0x114] sm:$0xf]
      %v273 = vld [vmem:[%s194 + $0x118] sm:$0xf]
      %v274 = vld [vmem:[%s194 + $0x11c] sm:$0xf]
      %v275 = vld [vmem:[%s1] sm:$0xf]
      %v276 = vld [vmem:[%s1 + $0x4] sm:$0xf]
      %v277 = vld [vmem:[%s1 + $0x8] sm:$0xf]
      %v278 = vld [vmem:[%s1 + $0xc] sm:$0x1]
      %v279 = vld [vmem:[%s2] sm:$0x1]
      %v281 = vlaneseq
      %v282 = vshrl.u32 %v281, 7
      %v283 = vsub.s32 0, %v282
      %v284 = vrot.slane %v279, %v283
      %v358 = vunpack.c.l.b16 %v203
      %v359 = vunpack.c.l.b16 %v204
      %v360 = vunpack.c.l.b16 %v205
      %v361 = vunpack.c.l.b16 %v206
      %v362 = vunpack.c.l.b16 %v207
      %v363 = vunpack.c.l.b16 %v208
      %v364 = vunpack.c.l.b16 %v209
      %v365 = vunpack.c.l.b16 %v210
      %v366 = vunpack.c.l.b16 %v211
      %v367 = vunpack.c.l.b16 %v212
      %v368 = vunpack.c.l.b16 %v213
      %v369 = vunpack.c.l.b16 %v214
      %v370 = vunpack.c.l.b16 %v215
      %v371 = vunpack.c.l.b16 %v216
      %v372 = vunpack.c.l.b16 %v217
      %v373 = vunpack.c.l.b16 %v218
      %v374 = vunpack.c.l.b16 %v219
      %v375 = vunpack.c.l.b16 %v220
      %v376 = vunpack.c.l.b16 %v221
      %v377 = vunpack.c.l.b16 %v222
      %v378 = vunpack.c.l.b16 %v223
      %v379 = vunpack.c.l.b16 %v224
      %v380 = vunpack.c.l.b16 %v225
      %v381 = vunpack.c.l.b16 %v226
      %v382 = vunpack.c.l.b16 %v227
      %v383 = vunpack.c.l.b16 %v228
      %v384 = vunpack.c.l.b16 %v229
      %v385 = vunpack.c.l.b16 %v230
      %v386 = vunpack.c.l.b16 %v231
      %v387 = vunpack.c.l.b16 %v232
      %v388 = vunpack.c.l.b16 %v233
      %v389 = vunpack.c.l.b16 %v234
      %v390 = vunpack.c.l.b16 %v235
      %v391 = vunpack.c.l.b16 %v236
      %v392 = vunpack.c.l.b16 %v237
      %v393 = vunpack.c.l.b16 %v238
      %v394 = vunpack.c.l.b16 %v239
      %v395 = vunpack.c.l.b16 %v240
      %v396 = vunpack.c.l.b16 %v241
      %v397 = vunpack.c.l.b16 %v242
      %v398 = vunpack.c.l.b16 %v243
      %v399 = vunpack.c.l.b16 %v244
      %v400 = vunpack.c.l.b16 %v245
      %v401 = vunpack.c.l.b16 %v246
      %v402 = vunpack.c.l.b16 %v247
      %v403 = vunpack.c.l.b16 %v248
      %v404 = vunpack.c.l.b16 %v249
      %v405 = vunpack.c.l.b16 %v250
      %v406 = vunpack.c.l.b16 %v251
      %v407 = vunpack.c.l.b16 %v252
      %v408 = vunpack.c.l.b16 %v253
      %v409 = vunpack.c.l.b16 %v254
      %v410 = vunpack.c.l.b16 %v255
      %v411 = vunpack.c.l.b16 %v256
      %v412 = vunpack.c.l.b16 %v257
      %v413 = vunpack.c.l.b16 %v258
      %v414 = vunpack.c.l.b16 %v259
      %v415 = vunpack.c.l.b16 %v260
      %v416 = vunpack.c.l.b16 %v261
      %v417 = vunpack.c.l.b16 %v262
      %v418 = vunpack.c.l.b16 %v263
      %v419 = vunpack.c.l.b16 %v264
      %v420 = vunpack.c.l.b16 %v265
      %v421 = vunpack.c.l.b16 %v266
      %v422 = vunpack.c.l.b16 %v267
      %v423 = vunpack.c.l.b16 %v268
      %v424 = vunpack.c.l.b16 %v269
      %v425 = vunpack.c.l.b16 %v270
      %v426 = vunpack.c.l.b16 %v271
      %v427 = vunpack.c.l.b16 %v272
      %v428 = vunpack.c.l.b16 %v273
      %v429 = vunpack.c.l.b16 %v274
      %v430 = vpack.c.b16 %v359, %v358
      %v431 = vpack.c.b16 %v361, %v360
      %v432 = vpack.c.b16 %v363, %v362
      %v433 = vpack.c.b16 %v365, %v364
      %v434 = vpack.c.b16 %v367, %v366
      %v435 = vpack.c.b16 %v369, %v368
      %v436 = vpack.c.b16 %v371, %v370
      %v437 = vpack.c.b16 %v373, %v372
      %v438 = vpack.c.b16 %v375, %v374
      %v439 = vpack.c.b16 %v377, %v376
      %v440 = vpack.c.b16 %v379, %v378
      %v441 = vpack.c.b16 %v381, %v380
      %v442 = vpack.c.b16 %v383, %v382
      %v443 = vpack.c.b16 %v385, %v384
      %v444 = vpack.c.b16 %v387, %v386
      %v445 = vpack.c.b16 %v389, %v388
      %v446 = vpack.c.b16 %v391, %v390
      %v447 = vpack.c.b16 %v393, %v392
      %v448 = vpack.c.b16 %v395, %v394
      %v449 = vpack.c.b16 %v397, %v396
      %v450 = vpack.c.b16 %v399, %v398
      %v451 = vpack.c.b16 %v401, %v400
      %v452 = vpack.c.b16 %v403, %v402
      %v453 = vpack.c.b16 %v405, %v404
      %v454 = vpack.c.b16 %v407, %v406
      %v455 = vpack.c.b16 %v409, %v408
      %v456 = vpack.c.b16 %v411, %v410
      %v457 = vpack.c.b16 %v413, %v412
      %v458 = vpack.c.b16 %v415, %v414
      %v459 = vpack.c.b16 %v417, %v416
      %v460 = vpack.c.b16 %v419, %v418
      %v461 = vpack.c.b16 %v421, %v420
      %v462 = vpack.c.b16 %v423, %v422
      %v463 = vpack.c.b16 %v425, %v424
      %v464 = vpack.c.b16 %v427, %v426
      %v465 = vpack.c.b16 %v429, %v428
      %v470 = vunpack.c.l.b16 %v275
      %v471 = vunpack.c.l.b16 %v276
      %v472 = vunpack.c.l.b16 %v277
      %v473 = vunpack.c.l.b16 %v278
      %v474 = vpack.c.b16 %v471, %v470
      %v475 = vpack.c.b16 %v473, %v472
      %vm477 = vcmask 203776
      %v479 = vsel %vm477, %v430, 0
      %v482 = vsel %vm477, %v431, 0
      %v485 = vsel %vm477, %v432, 0
      %v488 = vsel %vm477, %v433, 0
      %v491 = vsel %vm477, %v434, 0
      %v494 = vsel %vm477, %v435, 0
      %v497 = vsel %vm477, %v436, 0
      %v500 = vsel %vm477, %v437, 0
      %v503 = vsel %vm477, %v438, 0
      %v506 = vsel %vm477, %v439, 0
      %v509 = vsel %vm477, %v440, 0
      %v512 = vsel %vm477, %v441, 0
      %v515 = vsel %vm477, %v442, 0
      %v518 = vsel %vm477, %v443, 0
      %v521 = vsel %vm477, %v444, 0
      %v524 = vsel %vm477, %v445, 0
      %v527 = vsel %vm477, %v446, 0
      %v530 = vsel %vm477, %v447, 0
      %v533 = vsel %vm477, %v448, 0
      %v536 = vsel %vm477, %v449, 0
      %v539 = vsel %vm477, %v450, 0
      %v542 = vsel %vm477, %v451, 0
      %v545 = vsel %vm477, %v452, 0
      %v548 = vsel %vm477, %v453, 0
      %v551 = vsel %vm477, %v454, 0
      %v554 = vsel %vm477, %v455, 0
      %v557 = vsel %vm477, %v456, 0
      %v560 = vsel %vm477, %v457, 0
      %v563 = vsel %vm477, %v458, 0
      %v566 = vsel %vm477, %v459, 0
      %v569 = vsel %vm477, %v460, 0
      %v572 = vsel %vm477, %v461, 0
      %v575 = vsel %vm477, %v462, 0
      %v578 = vsel %vm477, %v463, 0
      %v581 = vsel %vm477, %v464, 0
      %v584 = vsel %vm477, %v465, 0
      %vm586 = vcmask 1043456
      %vm587 = vcmask 1044480
      %v588 = vsel %vm586, 4294967295, 65535
      %v589 = vsel %vm587, %v588, 0
      %v591 = vand.u32 %v475, %v589
      %593 = vmatprep.subr.bf16.mxu0 0
      %594 = vmatpush1.bf16.msra.mxu0 %v474
      %595 = vmatprep.subr.bf16.mxu0 0
      %596 = vmatpush1.bf16.msra.mxu0 %v591
      %597 = vmatprep.subr.bf16.mxu0 0
      %598 = vmatpush1.bf16.msra.mxu0 0
      %599 = vmatprep.subr.bf16.mxu0 0
      %600 = vmatpush1.bf16.msra.mxu0 0
      %601 = vmatprep.subr.bf16.mxu0 0
      %602 = vmatpush1.bf16.msra.mxu0 0
      %603 = vmatprep.subr.bf16.mxu0 0
      %604 = vmatpush1.bf16.msra.mxu0 0
      %605 = vmatprep.subr.bf16.mxu0 0
      %606 = vmatpush1.bf16.msra.mxu0 0
      %607 = vmatprep.subr.bf16.mxu0 0
      %608 = vmatpush1.bf16.msra.mxu0 0
      %609 = vmatprep.subr.bf16.mxu0 0
      %610 = vmatpush1.bf16.msra.mxu0 0
      %611 = vmatprep.subr.bf16.mxu0 0
      %612 = vmatpush1.bf16.msra.mxu0 0
      %613 = vmatprep.subr.bf16.mxu0 0
      %614 = vmatpush1.bf16.msra.mxu0 0
      %615 = vmatprep.subr.bf16.mxu0 0
      %616 = vmatpush1.bf16.msra.mxu0 0
      %617 = vmatprep.subr.bf16.mxu0 0
      %618 = vmatpush1.bf16.msra.mxu0 0
      %619 = vmatprep.subr.bf16.mxu0 0
      %620 = vmatpush1.bf16.msra.mxu0 0
      %621 = vmatprep.subr.bf16.mxu0 0
      %622 = vmatpush1.bf16.msra.mxu0 0
      %623 = vmatprep.subr.bf16.mxu0 0
      %624 = vmatpush1.bf16.msra.mxu0 0
      %625 = vmatprep.mubr.bf16.mxu0 0
      %626 = vmatmul.mubr.bf16.gmra.mrb[0].mxu0 %v479
      %v627 = vpop.f32.mrb[0].mxu0
      %v628 = vadd.f32 %v284, %v627
      %v629 = vpop.f32.mrb[0].mxu0
      %v630 = vpop.f32.mrb[0].mxu0
      %v631 = vadd.f32 %v284, %v630
      %v632 = vpop.f32.mrb[0].mxu0
      %633 = vmatprep.mubr.bf16.mxu0 0
      %634 = vmatmul.mubr.bf16.gmra.mrb[0].mxu0 %v482
      %v635 = vpop.f32.mrb[0].mxu0
      %v636 = vadd.f32 %v284, %v635
      %v637 = vpop.f32.mrb[0].mxu0
      %v638 = vpop.f32.mrb[0].mxu0
      %v639 = vadd.f32 %v284, %v638
      %v640 = vpop.f32.mrb[0].mxu0
      %641 = vmatprep.mubr.bf16.mxu0 0
      %642 = vmatmul.mubr.bf16.gmra.mrb[0].mxu0 %v485
      %v643 = vpop.f32.mrb[0].mxu0
      %v644 = vadd.f32 %v284, %v643
      %v645 = vpop.f32.mrb[0].mxu0
      %v646 = vpop.f32.mrb[0].mxu0
      %v647 = vadd.f32 %v284, %v646
      %v648 = vpop.f32.mrb[0].mxu0
      %649 = vmatprep.mubr.bf16.mxu0 0
      %650 = vmatmul.mubr.bf16.gmra.mrb[0].mxu0 %v488
      %v651 = vpop.f32.mrb[0].mxu0
      %v652 = vadd.f32 %v284, %v651
      %v653 = vpop.f32.mrb[0].mxu0
      %v654 = vpop.f32.mrb[0].mxu0
      %v655 = vadd.f32 %v284, %v654
      %v656 = vpop.f32.mrb[0].mxu0
      %657 = vmatprep.mubr.bf16.mxu0 0
      %658 = vmatmul.mubr.bf16.gmra.mrb[0].mxu0 %v491
      %v659 = vpop.f32.mrb[0].mxu0
      %v660 = vadd.f32 %v284, %v659
      %v661 = vpop.f32.mrb[0].mxu0
      %v662 = vpop.f32.mrb[0].mxu0
      %v663 = vadd.f32 %v284, %v662
      %v664 = vpop.f32.mrb[0].mxu0
      %665 = vmatprep.mubr.bf16.mxu0 0
      %666 = vmatmul.mubr.bf16.gmra.mrb[0].mxu0 %v494
      %v667 = vpop.f32.mrb[0].mxu0
      %v668 = vadd.f32 %v284, %v667
      %v669 = vpop.f32.mrb[0].mxu0
      %v670 = vpop.f32.mrb[0].mxu0
      %v671 = vadd.f32 %v284, %v670
      %v672 = vpop.f32.mrb[0].mxu0
      %673 = vmatprep.mubr.bf16.mxu0 0
      %674 = vmatmul.mubr.bf16.gmra.mrb[0].mxu0 %v497
      %v675 = vpop.f32.mrb[0].mxu0
      %v676 = vadd.f32 %v284, %v675
      %v677 = vpop.f32.mrb[0].mxu0
      %v678 = vpop.f32.mrb[0].mxu0
      %v679 = vadd.f32 %v284, %v678
      %v680 = vpop.f32.mrb[0].mxu0
      %681 = vmatprep.mubr.bf16.mxu0 0
      %682 = vmatmul.mubr.bf16.gmra.mrb[0].mxu0 %v500
      %v683 = vpop.f32.mrb[0].mxu0
      %v684 = vadd.f32 %v284, %v683
      %v685 = vpop.f32.mrb[0].mxu0
      %v686 = vpop.f32.mrb[0].mxu0
      %v687 = vadd.f32 %v284, %v686
      %v688 = vpop.f32.mrb[0].mxu0
      %689 = vmatprep.mubr.bf16.mxu0 0
      %690 = vmatmul.mubr.bf16.gmra.mrb[0].mxu0 %v503
      %v691 = vpop.f32.mrb[0].mxu0
      %v692 = vadd.f32 %v284, %v691
      %v693 = vpop.f32.mrb[0].mxu0
      %v694 = vpop.f32.mrb[0].mxu0
      %v695 = vadd.f32 %v284, %v694
      %v696 = vpop.f32.mrb[0].mxu0
      %697 = vmatprep.mubr.bf16.mxu0 0
      %698 = vmatmul.mubr.bf16.gmra.mrb[0].mxu0 %v506
      %v699 = vpop.f32.mrb[0].mxu0
      %v700 = vadd.f32 %v284, %v699
      %v701 = vpop.f32.mrb[0].mxu0
      %v702 = vpop.f32.mrb[0].mxu0
      %v703 = vadd.f32 %v284, %v702
      %v704 = vpop.f32.mrb[0].mxu0
      %705 = vmatprep.mubr.bf16.mxu0 0
      %706 = vmatmul.mubr.bf16.gmra.mrb[0].mxu0 %v509
      %v707 = vpop.f32.mrb[0].mxu0
      %v708 = vadd.f32 %v284, %v707
      %v709 = vpop.f32.mrb[0].mxu0
      %v710 = vpop.f32.mrb[0].mxu0
      %v711 = vadd.f32 %v284, %v710
      %v712 = vpop.f32.mrb[0].mxu0
      %713 = vmatprep.mubr.bf16.mxu0 0
      %714 = vmatmul.mubr.bf16.gmra.mrb[0].mxu0 %v512
      %v715 = vpop.f32.mrb[0].mxu0
      %v716 = vadd.f32 %v284, %v715
      %v717 = vpop.f32.mrb[0].mxu0
      %v718 = vpop.f32.mrb[0].mxu0
      %v719 = vadd.f32 %v284, %v718
      %v720 = vpop.f32.mrb[0].mxu0
      %721 = vmatprep.mubr.bf16.mxu0 0
      %722 = vmatmul.mubr.bf16.gmra.mrb[0].mxu0 %v515
      %v723 = vpop.f32.mrb[0].mxu0
      %v724 = vadd.f32 %v284, %v723
      %v725 = vpop.f32.mrb[0].mxu0
      %v726 = vpop.f32.mrb[0].mxu0
      %v727 = vadd.f32 %v284, %v726
      %v728 = vpop.f32.mrb[0].mxu0
      %729 = vmatprep.mubr.bf16.mxu0 0
      %730 = vmatmul.mubr.bf16.gmra.mrb[0].mxu0 %v518
      %v731 = vpop.f32.mrb[0].mxu0
      %v732 = vadd.f32 %v284, %v731
      %v733 = vpop.f32.mrb[0].mxu0
      %v734 = vpop.f32.mrb[0].mxu0
      %v735 = vadd.f32 %v284, %v734
      %v736 = vpop.f32.mrb[0].mxu0
      %737 = vmatprep.mubr.bf16.mxu0 0
      %738 = vmatmul.mubr.bf16.gmra.mrb[0].mxu0 %v521
      %v739 = vpop.f32.mrb[0].mxu0
      %v740 = vadd.f32 %v284, %v739
      %v741 = vpop.f32.mrb[0].mxu0
      %v742 = vpop.f32.mrb[0].mxu0
      %v743 = vadd.f32 %v284, %v742
      %v744 = vpop.f32.mrb[0].mxu0
      %745 = vmatprep.mubr.bf16.mxu0 0
      %746 = vmatmul.mubr.bf16.gmra.mrb[0].mxu0 %v524
      %v747 = vpop.f32.mrb[0].mxu0
      %v748 = vadd.f32 %v284, %v747
      %v749 = vpop.f32.mrb[0].mxu0
      %v750 = vpop.f32.mrb[0].mxu0
      %v751 = vadd.f32 %v284, %v750
      %v752 = vpop.f32.mrb[0].mxu0
      %753 = vmatprep.mubr.bf16.mxu0 0
      %754 = vmatmul.mubr.bf16.gmra.mrb[0].mxu0 %v527
      %v755 = vpop.f32.mrb[0].mxu0
      %v756 = vadd.f32 %v284, %v755
      %v757 = vpop.f32.mrb[0].mxu0
      %v758 = vpop.f32.mrb[0].mxu0
      %v759 = vadd.f32 %v284, %v758
      %v760 = vpop.f32.mrb[0].mxu0
      %761 = vmatprep.mubr.bf16.mxu0 0
      %762 = vmatmul.mubr.bf16.gmra.mrb[0].mxu0 %v530
      %v763 = vpop.f32.mrb[0].mxu0
      %v764 = vadd.f32 %v284, %v763
      %v765 = vpop.f32.mrb[0].mxu0
      %v766 = vpop.f32.mrb[0].mxu0
      %v767 = vadd.f32 %v284, %v766
      %v768 = vpop.f32.mrb[0].mxu0
      %769 = vmatprep.mubr.bf16.mxu0 0
      %770 = vmatmul.mubr.bf16.gmra.mrb[0].mxu0 %v533
      %v771 = vpop.f32.mrb[0].mxu0
      %v772 = vadd.f32 %v284, %v771
      %v773 = vpop.f32.mrb[0].mxu0
      %v774 = vpop.f32.mrb[0].mxu0
      %v775 = vadd.f32 %v284, %v774
      %v776 = vpop.f32.mrb[0].mxu0
      %777 = vmatprep.mubr.bf16.mxu0 0
      %778 = vmatmul.mubr.bf16.gmra.mrb[0].mxu0 %v536
      %v779 = vpop.f32.mrb[0].mxu0
      %v780 = vadd.f32 %v284, %v779
      %v781 = vpop.f32.mrb[0].mxu0
      %v782 = vpop.f32.mrb[0].mxu0
      %v783 = vadd.f32 %v284, %v782
      %v784 = vpop.f32.mrb[0].mxu0
      %785 = vmatprep.mubr.bf16.mxu0 0
      %786 = vmatmul.mubr.bf16.gmra.mrb[0].mxu0 %v539
      %v787 = vpop.f32.mrb[0].mxu0
      %v788 = vadd.f32 %v284, %v787
      %v789 = vpop.f32.mrb[0].mxu0
      %v790 = vpop.f32.mrb[0].mxu0
      %v791 = vadd.f32 %v284, %v790
      %v792 = vpop.f32.mrb[0].mxu0
      %793 = vmatprep.mubr.bf16.mxu0 0
      %794 = vmatmul.mubr.bf16.gmra.mrb[0].mxu0 %v542
      %v795 = vpop.f32.mrb[0].mxu0
      %v796 = vadd.f32 %v284, %v795
      %v797 = vpop.f32.mrb[0].mxu0
      %v798 = vpop.f32.mrb[0].mxu0
      %v799 = vadd.f32 %v284, %v798
      %v800 = vpop.f32.mrb[0].mxu0
      %801 = vmatprep.mubr.bf16.mxu0 0
      %802 = vmatmul.mubr.bf16.gmra.mrb[0].mxu0 %v545
      %v803 = vpop.f32.mrb[0].mxu0
      %v804 = vadd.f32 %v284, %v803
      %v805 = vpop.f32.mrb[0].mxu0
      %v806 = vpop.f32.mrb[0].mxu0
      %v807 = vadd.f32 %v284, %v806
      %v808 = vpop.f32.mrb[0].mxu0
      %809 = vmatprep.mubr.bf16.mxu0 0
      %810 = vmatmul.mubr.bf16.gmra.mrb[0].mxu0 %v548
      %v811 = vpop.f32.mrb[0].mxu0
      %v812 = vadd.f32 %v284, %v811
      %v813 = vpop.f32.mrb[0].mxu0
      %v814 = vpop.f32.mrb[0].mxu0
      %v815 = vadd.f32 %v284, %v814
      %v816 = vpop.f32.mrb[0].mxu0
      %817 = vmatprep.mubr.bf16.mxu0 0
      %818 = vmatmul.mubr.bf16.gmra.mrb[0].mxu0 %v551
      %v819 = vpop.f32.mrb[0].mxu0
      %v820 = vadd.f32 %v284, %v819
      %v821 = vpop.f32.mrb[0].mxu0
      %v822 = vpop.f32.mrb[0].mxu0
      %v823 = vadd.f32 %v284, %v822
      %v824 = vpop.f32.mrb[0].mxu0
      %825 = vmatprep.mubr.bf16.mxu0 0
      %826 = vmatmul.mubr.bf16.gmra.mrb[0].mxu0 %v554
      %v827 = vpop.f32.mrb[0].mxu0
      %v828 = vadd.f32 %v284, %v827
      %v829 = vpop.f32.mrb[0].mxu0
      %v830 = vpop.f32.mrb[0].mxu0
      %v831 = vadd.f32 %v284, %v830
      %v832 = vpop.f32.mrb[0].mxu0
      %833 = vmatprep.mubr.bf16.mxu0 0
      %834 = vmatmul.mubr.bf16.gmra.mrb[0].mxu0 %v557
      %v835 = vpop.f32.mrb[0].mxu0
      %v836 = vadd.f32 %v284, %v835
      %v837 = vpop.f32.mrb[0].mxu0
      %v838 = vpop.f32.mrb[0].mxu0
      %v839 = vadd.f32 %v284, %v838
      %v840 = vpop.f32.mrb[0].mxu0
      %841 = vmatprep.mubr.bf16.mxu0 0
      %842 = vmatmul.mubr.bf16.gmra.mrb[0].mxu0 %v560
      %v843 = vpop.f32.mrb[0].mxu0
      %v844 = vadd.f32 %v284, %v843
      %v845 = vpop.f32.mrb[0].mxu0
      %v846 = vpop.f32.mrb[0].mxu0
      %v847 = vadd.f32 %v284, %v846
      %v848 = vpop.f32.mrb[0].mxu0
      %849 = vmatprep.mubr.bf16.mxu0 0
      %850 = vmatmul.mubr.bf16.gmra.mrb[0].mxu0 %v563
      %v851 = vpop.f32.mrb[0].mxu0
      %v852 = vadd.f32 %v284, %v851
      %v853 = vpop.f32.mrb[0].mxu0
      %v854 = vpop.f32.mrb[0].mxu0
      %v855 = vadd.f32 %v284, %v854
      %v856 = vpop.f32.mrb[0].mxu0
      %857 = vmatprep.mubr.bf16.mxu0 0
      %858 = vmatmul.mubr.bf16.gmra.mrb[0].mxu0 %v566
      %v859 = vpop.f32.mrb[0].mxu0
      %v860 = vadd.f32 %v284, %v859
      %v861 = vpop.f32.mrb[0].mxu0
      %v862 = vpop.f32.mrb[0].mxu0
      %v863 = vadd.f32 %v284, %v862
      %v864 = vpop.f32.mrb[0].mxu0
      %865 = vmatprep.mubr.bf16.mxu0 0
      %866 = vmatmul.mubr.bf16.gmra.mrb[0].mxu0 %v569
      %v867 = vpop.f32.mrb[0].mxu0
      %v868 = vadd.f32 %v284, %v867
      %v869 = vpop.f32.mrb[0].mxu0
      %v870 = vpop.f32.mrb[0].mxu0
      %v871 = vadd.f32 %v284, %v870
      %v872 = vpop.f32.mrb[0].mxu0
      %873 = vmatprep.mubr.bf16.mxu0 0
      %874 = vmatmul.mubr.bf16.gmra.mrb[0].mxu0 %v572
      %v875 = vpop.f32.mrb[0].mxu0
      %v876 = vadd.f32 %v284, %v875
      %v877 = vpop.f32.mrb[0].mxu0
      %v878 = vpop.f32.mrb[0].mxu0
      %v879 = vadd.f32 %v284, %v878
      %v880 = vpop.f32.mrb[0].mxu0
      %881 = vmatprep.mubr.bf16.mxu0 0
      %882 = vmatmul.mubr.bf16.gmra.mrb[0].mxu0 %v575
      %v883 = vpop.f32.mrb[0].mxu0
      %v884 = vadd.f32 %v284, %v883
      %v885 = vpop.f32.mrb[0].mxu0
      %v886 = vpop.f32.mrb[0].mxu0
      %v887 = vadd.f32 %v284, %v886
      %v888 = vpop.f32.mrb[0].mxu0
      %889 = vmatprep.mubr.bf16.mxu0 0
      %890 = vmatmul.mubr.bf16.gmra.mrb[0].mxu0 %v578
      %v891 = vpop.f32.mrb[0].mxu0
      %v892 = vadd.f32 %v284, %v891
      %v893 = vpop.f32.mrb[0].mxu0
      %v894 = vpop.f32.mrb[0].mxu0
      %v895 = vadd.f32 %v284, %v894
      %v896 = vpop.f32.mrb[0].mxu0
      %897 = vmatprep.mubr.bf16.mxu0 0
      %898 = vmatmul.mubr.bf16.gmra.mrb[0].mxu0 %v581
      %v899 = vpop.f32.mrb[0].mxu0
      %v900 = vadd.f32 %v284, %v899
      %v901 = vpop.f32.mrb[0].mxu0
      %v902 = vpop.f32.mrb[0].mxu0
      %v903 = vadd.f32 %v284, %v902
      %v904 = vpop.f32.mrb[0].mxu0
      %905 = vmatprep.mubr.bf16.mxu0 0
      %906 = vmatmul.mubr.bf16.gmra.mrb[0].mxu0 %v584
      %v907 = vpop.f32.mrb[0].mxu0
      %v908 = vadd.f32 %v284, %v907
      %v909 = vpop.f32.mrb[0].mxu0
      %v910 = vpop.f32.mrb[0].mxu0
      %v911 = vadd.f32 %v284, %v910
      %v912 = vpop.f32.mrb[0].mxu0
      %913 = vdwg.mxu0
      %s914 = sld [smem:[#allocation2]]
      %vm915 = vcmp.ge.f32.partialorder %v628, 0.0
      %vm916 = vcmp.ge.f32.partialorder %v631, 0.0
      %vm917 = vcmp.ge.f32.partialorder %v636, 0.0
      %vm918 = vcmp.ge.f32.partialorder %v639, 0.0
      %vm919 = vcmp.ge.f32.partialorder %v644, 0.0
      %vm920 = vcmp.ge.f32.partialorder %v647, 0.0
      %vm921 = vcmp.ge.f32.partialorder %v652, 0.0
      %vm922 = vcmp.ge.f32.partialorder %v655, 0.0
      %vm923 = vcmp.ge.f32.partialorder %v660, 0.0
      %vm924 = vcmp.ge.f32.partialorder %v663, 0.0
      %vm925 = vcmp.ge.f32.partialorder %v668, 0.0
      %vm926 = vcmp.ge.f32.partialorder %v671, 0.0
      %vm927 = vcmp.ge.f32.partialorder %v676, 0.0
      %vm928 = vcmp.ge.f32.partialorder %v679, 0.0
      %vm929 = vcmp.ge.f32.partialorder %v684, 0.0
      %vm930 = vcmp.ge.f32.partialorder %v687, 0.0
      %vm931 = vcmp.ge.f32.partialorder %v692, 0.0
      %vm932 = vcmp.ge.f32.partialorder %v695, 0.0
      %vm933 = vcmp.ge.f32.partialorder %v700, 0.0
      %vm934 = vcmp.ge.f32.partialorder %v703, 0.0
      %vm935 = vcmp.ge.f32.partialorder %v708, 0.0
      %vm936 = vcmp.ge.f32.partialorder %v711, 0.0
      %vm937 = vcmp.ge.f32.partialorder %v716, 0.0
      %vm938 = vcmp.ge.f32.partialorder %v719, 0.0
      %vm939 = vcmp.ge.f32.partialorder %v724, 0.0
      %vm940 = vcmp.ge.f32.partialorder %v727, 0.0
      %vm941 = vcmp.ge.f32.partialorder %v732, 0.0
      %vm942 = vcmp.ge.f32.partialorder %v735, 0.0
      %vm943 = vcmp.ge.f32.partialorder %v740, 0.0
      %vm944 = vcmp.ge.f32.partialorder %v743, 0.0
      %vm945 = vcmp.ge.f32.partialorder %v748, 0.0
      %vm946 = vcmp.ge.f32.partialorder %v751, 0.0
      %vm947 = vcmp.ge.f32.partialorder %v756, 0.0
      %vm948 = vcmp.ge.f32.partialorder %v759, 0.0
      %vm949 = vcmp.ge.f32.partialorder %v764, 0.0
      %vm950 = vcmp.ge.f32.partialorder %v767, 0.0
      %vm951 = vcmp.ge.f32.partialorder %v772, 0.0
      %vm952 = vcmp.ge.f32.partialorder %v775, 0.0
      %vm953 = vcmp.ge.f32.partialorder %v780, 0.0
      %vm954 = vcmp.ge.f32.partialorder %v783, 0.0
      %vm955 = vcmp.ge.f32.partialorder %v788, 0.0
      %vm956 = vcmp.ge.f32.partialorder %v791, 0.0
      %vm957 = vcmp.ge.f32.partialorder %v796, 0.0
      %vm958 = vcmp.ge.f32.partialorder %v799, 0.0
      %vm959 = vcmp.ge.f32.partialorder %v804, 0.0
      %vm960 = vcmp.ge.f32.partialorder %v807, 0.0
      %vm961 = vcmp.ge.f32.partialorder %v812, 0.0
      %vm962 = vcmp.ge.f32.partialorder %v815, 0.0
      %vm963 = vcmp.ge.f32.partialorder %v820, 0.0
      %vm964 = vcmp.ge.f32.partialorder %v823, 0.0
      %vm965 = vcmp.ge.f32.partialorder %v828, 0.0
      %vm966 = vcmp.ge.f32.partialorder %v831, 0.0
      %vm967 = vcmp.ge.f32.partialorder %v836, 0.0
      %vm968 = vcmp.ge.f32.partialorder %v839, 0.0
      %vm969 = vcmp.ge.f32.partialorder %v844, 0.0
      %vm970 = vcmp.ge.f32.partialorder %v847, 0.0
      %vm971 = vcmp.ge.f32.partialorder %v852, 0.0
      %vm972 = vcmp.ge.f32.partialorder %v855, 0.0
      %vm973 = vcmp.ge.f32.partialorder %v860, 0.0
      %vm974 = vcmp.ge.f32.partialorder %v863, 0.0
      %vm975 = vcmp.ge.f32.partialorder %v868, 0.0
      %vm976 = vcmp.ge.f32.partialorder %v871, 0.0
      %vm977 = vcmp.ge.f32.partialorder %v876, 0.0
      %vm978 = vcmp.ge.f32.partialorder %v879, 0.0
      %vm979 = vcmp.ge.f32.partialorder %v884, 0.0
      %vm980 = vcmp.ge.f32.partialorder %v887, 0.0
      %vm981 = vcmp.ge.f32.partialorder %v892, 0.0
      %vm982 = vcmp.ge.f32.partialorder %v895, 0.0
      %vm983 = vcmp.ge.f32.partialorder %v900, 0.0
      %vm984 = vcmp.ge.f32.partialorder %v903, 0.0
      %vm985 = vcmp.ge.f32.partialorder %v908, 0.0
      %vm986 = vcmp.ge.f32.partialorder %v911, 0.0
      %v987 = vstv %s914
      %v988 = vmul.f32 %v987, %v628
      %v989 = vmul.f32 %v987, %v631
      %v990 = vmul.f32 %v987, %v636
      %v991 = vmul.f32 %v987, %v639
      %v992 = vmul.f32 %v987, %v644
      %v993 = vmul.f32 %v987, %v647
      %v994 = vmul.f32 %v987, %v652
      %v995 = vmul.f32 %v987, %v655
      %v996 = vmul.f32 %v987, %v660
      %v997 = vmul.f32 %v987, %v663
      %v998 = vmul.f32 %v987, %v668
      %v999 = vmul.f32 %v987, %v671
      %v1000 = vmul.f32 %v987, %v676
      %v1001 = vmul.f32 %v987, %v679
      %v1002 = vmul.f32 %v987, %v684
      %v1003 = vmul.f32 %v987, %v687
      %v1004 = vmul.f32 %v987, %v692
      %v1005 = vmul.f32 %v987, %v695
      %v1006 = vmul.f32 %v987, %v700
      %v1007 = vmul.f32 %v987, %v703
      %v1008 = vmul.f32 %v987, %v708
      %v1009 = vmul.f32 %v987, %v711
      %v1010 = vmul.f32 %v987, %v716
      %v1011 = vmul.f32 %v987, %v719
      %v1012 = vmul.f32 %v987, %v724
      %v1013 = vmul.f32 %v987, %v727
      %v1014 = vmul.f32 %v987, %v732
      %v1015 = vmul.f32 %v987, %v735
      %v1016 = vmul.f32 %v987, %v740
      %v1017 = vmul.f32 %v987, %v743
      %v1018 = vmul.f32 %v987, %v748
      %v1019 = vmul.f32 %v987, %v751
      %v1020 = vmul.f32 %v987, %v756
      %v1021 = vmul.f32 %v987, %v759
      %v1022 = vmul.f32 %v987, %v764
      %v1023 = vmul.f32 %v987, %v767
      %v1024 = vmul.f32 %v987, %v772
      %v1025 = vmul.f32 %v987, %v775
      %v1026 = vmul.f32 %v987, %v780
      %v1027 = vmul.f32 %v987, %v783
      %v1028 = vmul.f32 %v987, %v788
      %v1029 = vmul.f32 %v987, %v791
      %v1030 = vmul.f32 %v987, %v796
      %v1031 = vmul.f32 %v987, %v799
      %v1032 = vmul.f32 %v987, %v804
      %v1033 = vmul.f32 %v987, %v807
      %v1034 = vmul.f32 %v987, %v812
      %v1035 = vmul.f32 %v987, %v815
      %v1036 = vmul.f32 %v987, %v820
      %v1037 = vmul.f32 %v987, %v823
      %v1038 = vmul.f32 %v987, %v828
      %v1039 = vmul.f32 %v987, %v831
      %v1040 = vmul.f32 %v987, %v836
      %v1041 = vmul.f32 %v987, %v839
      %v1042 = vmul.f32 %v987, %v844
      %v1043 = vmul.f32 %v987, %v847
      %v1044 = vmul.f32 %v987, %v852
      %v1045 = vmul.f32 %v987, %v855
      %v1046 = vmul.f32 %v987, %v860
      %v1047 = vmul.f32 %v987, %v863
      %v1048 = vmul.f32 %v987, %v868
      %v1049 = vmul.f32 %v987, %v871
      %v1050 = vmul.f32 %v987, %v876
      %v1051 = vmul.f32 %v987, %v879
      %v1052 = vmul.f32 %v987, %v884
      %v1053 = vmul.f32 %v987, %v887
      %v1054 = vmul.f32 %v987, %v892
      %v1055 = vmul.f32 %v987, %v895
      %v1056 = vmul.f32 %v987, %v900
      %v1057 = vmul.f32 %v987, %v903
      %v1058 = vmul.f32 %v987, %v908
      %v1059 = vmul.f32 %v987, %v911
      %v1060 = vsel %vm915, %v628, %v988
      %v1061 = vsel %vm916, %v631, %v989
      %v1062 = vsel %vm917, %v636, %v990
      %v1063 = vsel %vm918, %v639, %v991
      %v1064 = vsel %vm919, %v644, %v992
      %v1065 = vsel %vm920, %v647, %v993
      %v1066 = vsel %vm921, %v652, %v994
      %v1067 = vsel %vm922, %v655, %v995
      %v1068 = vsel %vm923, %v660, %v996
      %v1069 = vsel %vm924, %v663, %v997
      %v1070 = vsel %vm925, %v668, %v998
      %v1071 = vsel %vm926, %v671, %v999
      %v1072 = vsel %vm927, %v676, %v1000
      %v1073 = vsel %vm928, %v679, %v1001
      %v1074 = vsel %vm929, %v684, %v1002
      %v1075 = vsel %vm930, %v687, %v1003
      %v1076 = vsel %vm931, %v692, %v1004
      %v1077 = vsel %vm932, %v695, %v1005
      %v1078 = vsel %vm933, %v700, %v1006
      %v1079 = vsel %vm934, %v703, %v1007
      %v1080 = vsel %vm935, %v708, %v1008
      %v1081 = vsel %vm936, %v711, %v1009
      %v1082 = vsel %vm937, %v716, %v1010
      %v1083 = vsel %vm938, %v719, %v1011
      %v1084 = vsel %vm939, %v724, %v1012
      %v1085 = vsel %vm940, %v727, %v1013
      %v1086 = vsel %vm941, %v732, %v1014
      %v1087 = vsel %vm942, %v735, %v1015
      %v1088 = vsel %vm943, %v740, %v1016
      %v1089 = vsel %vm944, %v743, %v1017
      %v1090 = vsel %vm945, %v748, %v1018
      %v1091 = vsel %vm946, %v751, %v1019
      %v1092 = vsel %vm947, %v756, %v1020
      %v1093 = vsel %vm948, %v759, %v1021
      %v1094 = vsel %vm949, %v764, %v1022
      %v1095 = vsel %vm950, %v767, %v1023
      %v1096 = vsel %vm951, %v772, %v1024
      %v1097 = vsel %vm952, %v775, %v1025
      %v1098 = vsel %vm953, %v780, %v1026
      %v1099 = vsel %vm954, %v783, %v1027
      %v1100 = vsel %vm955, %v788, %v1028
      %v1101 = vsel %vm956, %v791, %v1029
      %v1102 = vsel %vm957, %v796, %v1030
      %v1103 = vsel %vm958, %v799, %v1031
      %v1104 = vsel %vm959, %v804, %v1032
      %v1105 = vsel %vm960, %v807, %v1033
      %v1106 = vsel %vm961, %v812, %v1034
      %v1107 = vsel %vm962, %v815, %v1035
      %v1108 = vsel %vm963, %v820, %v1036
      %v1109 = vsel %vm964, %v823, %v1037
      %v1110 = vsel %vm965, %v828, %v1038
      %v1111 = vsel %vm966, %v831, %v1039
      %v1112 = vsel %vm967, %v836, %v1040
      %v1113 = vsel %vm968, %v839, %v1041
      %v1114 = vsel %vm969, %v844, %v1042
      %v1115 = vsel %vm970, %v847, %v1043
      %v1116 = vsel %vm971, %v852, %v1044
      %v1117 = vsel %vm972, %v855, %v1045
      %v1118 = vsel %vm973, %v860, %v1046
      %v1119 = vsel %vm974, %v863, %v1047
      %v1120 = vsel %vm975, %v868, %v1048
      %v1121 = vsel %vm976, %v871, %v1049
      %v1122 = vsel %vm977, %v876, %v1050
      %v1123 = vsel %vm978, %v879, %v1051
      %v1124 = vsel %vm979, %v884, %v1052
      %v1125 = vsel %vm980, %v887, %v1053
      %v1126 = vsel %vm981, %v892, %v1054
      %v1127 = vsel %vm982, %v895, %v1055
      %v1128 = vsel %vm983, %v900, %v1056
      %v1129 = vsel %vm984, %v903, %v1057
      %v1130 = vsel %vm985, %v908, %v1058
      %v1131 = vsel %vm986, %v911, %v1059
      %vm1132 = vcmask 261120
      %v1133 = vsel %vm1132, %v1060, -inf
      %v1134 = vsel %vm1132, %v1078, -inf
      %v1135 = vmax.f32 %v1133, %v1134
      %v1136 = vsel %vm1132, %v1096, -inf
      %v1137 = vmax.f32 %v1135, %v1136
      %v1138 = vsel %vm1132, %v1114, -inf
      %v1139 = vmax.f32 %v1137, %v1138
      %v1140 = vsel %vm1132, %v1061, -inf
      %v1141 = vsel %vm1132, %v1079, -inf
      %v1142 = vmax.f32 %v1140, %v1141
      %v1143 = vsel %vm1132, %v1097, -inf
      %v1144 = vmax.f32 %v1142, %v1143
      %v1145 = vsel %vm1132, %v1115, -inf
      %v1146 = vmax.f32 %v1144, %v1145
      %v1147 = vsel %vm1132, %v1062, -inf
      %v1148 = vsel %vm1132, %v1080, -inf
      %v1149 = vmax.f32 %v1147, %v1148
      %v1150 = vsel %vm1132, %v1098, -inf
      %v1151 = vmax.f32 %v1149, %v1150
      %v1152 = vsel %vm1132, %v1116, -inf
      %v1153 = vmax.f32 %v1151, %v1152
      %v1154 = vsel %vm1132, %v1063, -inf
      %v1155 = vsel %vm1132, %v1081, -inf
      %v1156 = vmax.f32 %v1154, %v1155
      %v1157 = vsel %vm1132, %v1099, -inf
      %v1158 = vmax.f32 %v1156, %v1157
      %v1159 = vsel %vm1132, %v1117, -inf
      %v1160 = vmax.f32 %v1158, %v1159
      %v1161 = vsel %vm1132, %v1064, -inf
      %v1162 = vsel %vm1132, %v1082, -inf
      %v1163 = vmax.f32 %v1161, %v1162
      %v1164 = vsel %vm1132, %v1100, -inf
      %v1165 = vmax.f32 %v1163, %v1164
      %v1166 = vsel %vm1132, %v1118, -inf
      %v1167 = vmax.f32 %v1165, %v1166
      %v1168 = vsel %vm1132, %v1065, -inf
      %v1169 = vsel %vm1132, %v1083, -inf
      %v1170 = vmax.f32 %v1168, %v1169
      %v1171 = vsel %vm1132, %v1101, -inf
      %v1172 = vmax.f32 %v1170, %v1171
      %v1173 = vsel %vm1132, %v1119, -inf
      %v1174 = vmax.f32 %v1172, %v1173
      %v1175 = vsel %vm1132, %v1066, -inf
      %v1176 = vsel %vm1132, %v1084, -inf
      %v1177 = vmax.f32 %v1175, %v1176
      %v1178 = vsel %vm1132, %v1102, -inf
      %v1179 = vmax.f32 %v1177, %v1178
      %v1180 = vsel %vm1132, %v1120, -inf
      %v1181 = vmax.f32 %v1179, %v1180
      %v1182 = vsel %vm1132, %v1067, -inf
      %v1183 = vsel %vm1132, %v1085, -inf
      %v1184 = vmax.f32 %v1182, %v1183
      %v1185 = vsel %vm1132, %v1103, -inf
      %v1186 = vmax.f32 %v1184, %v1185
      %v1187 = vsel %vm1132, %v1121, -inf
      %v1188 = vmax.f32 %v1186, %v1187
      %v1189 = vsel %vm1132, %v1068, -inf
      %v1190 = vsel %vm1132, %v1086, -inf
      %v1191 = vmax.f32 %v1189, %v1190
      %v1192 = vsel %vm1132, %v1104, -inf
      %v1193 = vmax.f32 %v1191, %v1192
      %v1194 = vsel %vm1132, %v1122, -inf
      %v1195 = vmax.f32 %v1193, %v1194
      %v1196 = vsel %vm1132, %v1069, -inf
      %v1197 = vsel %vm1132, %v1087, -inf
      %v1198 = vmax.f32 %v1196, %v1197
      %v1199 = vsel %vm1132, %v1105, -inf
      %v1200 = vmax.f32 %v1198, %v1199
      %v1201 = vsel %vm1132, %v1123, -inf
      %v1202 = vmax.f32 %v1200, %v1201
      %v1203 = vsel %vm1132, %v1070, -inf
      %v1204 = vsel %vm1132, %v1088, -inf
      %v1205 = vmax.f32 %v1203, %v1204
      %v1206 = vsel %vm1132, %v1106, -inf
      %v1207 = vmax.f32 %v1205, %v1206
      %v1208 = vsel %vm1132, %v1124, -inf
      %v1209 = vmax.f32 %v1207, %v1208
      %v1210 = vsel %vm1132, %v1071, -inf
      %v1211 = vsel %vm1132, %v1089, -inf
      %v1212 = vmax.f32 %v1210, %v1211
      %v1213 = vsel %vm1132, %v1107, -inf
      %v1214 = vmax.f32 %v1212, %v1213
      %v1215 = vsel %vm1132, %v1125, -inf
      %v1216 = vmax.f32 %v1214, %v1215
      %v1217 = vsel %vm1132, %v1072, -inf
      %v1218 = vsel %vm1132, %v1090, -inf
      %v1219 = vmax.f32 %v1217, %v1218
      %v1220 = vsel %vm1132, %v1108, -inf
      %v1221 = vmax.f32 %v1219, %v1220
      %v1222 = vsel %vm1132, %v1126, -inf
      %v1223 = vmax.f32 %v1221, %v1222
      %v1224 = vsel %vm1132, %v1073, -inf
      %v1225 = vsel %vm1132, %v1091, -inf
      %v1226 = vmax.f32 %v1224, %v1225
      %v1227 = vsel %vm1132, %v1109, -inf
      %v1228 = vmax.f32 %v1226, %v1227
      %v1229 = vsel %vm1132, %v1127, -inf
      %v1230 = vmax.f32 %v1228, %v1229
      %v1231 = vsel %vm1132, %v1074, -inf
      %v1232 = vsel %vm1132, %v1092, -inf
      %v1233 = vmax.f32 %v1231, %v1232
      %v1234 = vsel %vm1132, %v1110, -inf
      %v1235 = vmax.f32 %v1233, %v1234
      %v1236 = vsel %vm1132, %v1128, -inf
      %v1237 = vmax.f32 %v1235, %v1236
      %v1238 = vsel %vm1132, %v1075, -inf
      %v1239 = vsel %vm1132, %v1093, -inf
      %v1240 = vmax.f32 %v1238, %v1239
      %v1241 = vsel %vm1132, %v1111, -inf
      %v1242 = vmax.f32 %v1240, %v1241
      %v1243 = vsel %vm1132, %v1129, -inf
      %v1244 = vmax.f32 %v1242, %v1243
      %v1245 = vsel %vm1132, %v1076, -inf
      %v1246 = vsel %vm1132, %v1094, -inf
      %v1247 = vmax.f32 %v1245, %v1246
      %v1248 = vsel %vm1132, %v1112, -inf
      %v1249 = vmax.f32 %v1247, %v1248
      %v1250 = vsel %vm1132, %v1130, -inf
      %v1251 = vmax.f32 %v1249, %v1250
      %v1252 = vsel %vm1132, %v1077, -inf
      %v1253 = vsel %vm1132, %v1095, -inf
      %v1254 = vmax.f32 %v1252, %v1253
      %v1255 = vsel %vm1132, %v1113, -inf
      %v1256 = vmax.f32 %v1254, %v1255
      %v1257 = vsel %vm1132, %v1131, -inf
      %v1258 = vmax.f32 %v1256, %v1257
      %v1259 = vpack.c.bf16 %v1146, %v1139
      %v1260 = vpack.c.bf16 %v1160, %v1153
      %v1261 = vpack.c.bf16 %v1174, %v1167
      %v1262 = vpack.c.bf16 %v1188, %v1181
      %v1263 = vpack.c.bf16 %v1202, %v1195
      %v1264 = vpack.c.bf16 %v1216, %v1209
      %v1265 = vpack.c.bf16 %v1230, %v1223
      %v1266 = vpack.c.bf16 %v1244, %v1237
      %v1267 = vpack.c.bf16 %v1258, %v1251
      %v1277 = vunpack.c.l.b16 %v1259
      %v1278 = vunpack.c.h.b16 %v1259
      %v1279 = vunpack.c.l.b16 %v1260
      %v1280 = vunpack.c.h.b16 %v1260
      %v1281 = vunpack.c.l.b16 %v1261
      %v1282 = vunpack.c.h.b16 %v1261
      %v1283 = vunpack.c.l.b16 %v1262
      %v1284 = vunpack.c.h.b16 %v1262
      %v1285 = vunpack.c.l.b16 %v1263
      %v1286 = vunpack.c.h.b16 %v1263
      %v1287 = vunpack.c.l.b16 %v1264
      %v1288 = vunpack.c.h.b16 %v1264
      %v1289 = vunpack.c.l.b16 %v1265
      %v1290 = vunpack.c.h.b16 %v1265
      %v1291 = vunpack.c.l.b16 %v1266
      %v1292 = vunpack.c.h.b16 %v1266
      %v1293 = vunpack.c.l.b16 %v1267
      %v1294 = vunpack.c.h.b16 %v1267
      %v1295 = vpack.c.b16 %v1277, %v1277
      %v1296 = vpack.c.b16 %v1278, %v1278
      %v1297 = vpack.c.b16 %v1279, %v1279
      %v1298 = vpack.c.b16 %v1280, %v1280
      %v1299 = vpack.c.b16 %v1281, %v1281
      %v1300 = vpack.c.b16 %v1282, %v1282
      %v1301 = vpack.c.b16 %v1283, %v1283
      %v1302 = vpack.c.b16 %v1284, %v1284
      %v1303 = vpack.c.b16 %v1285, %v1285
      %v1304 = vpack.c.b16 %v1286, %v1286
      %v1305 = vpack.c.b16 %v1287, %v1287
      %v1306 = vpack.c.b16 %v1288, %v1288
      %v1307 = vpack.c.b16 %v1289, %v1289
      %v1308 = vpack.c.b16 %v1290, %v1290
      %v1309 = vpack.c.b16 %v1291, %v1291
      %v1310 = vpack.c.b16 %v1292, %v1292
      %v1311 = vpack.c.b16 %v1293, %v1293
      %v1312 = vpack.c.b16 %v1294, %v1294
      %vm1331 = vcmask 257024
      %1332 = vst.msk [vmem:[%s200] sm:$0xf] %vm1331, %v1295
      %1333 = vst.msk [vmem:[%s200 + $0x4] sm:$0xf] %vm1331, %v1296
      %1334 = vst.msk [vmem:[%s200 + $0x8] sm:$0xf] %vm1331, %v1297
      %1335 = vst.msk [vmem:[%s200 + $0xc] sm:$0xf] %vm1331, %v1298
      %1336 = vst.msk [vmem:[%s200 + $0x10] sm:$0xf] %vm1331, %v1299
      %1337 = vst.msk [vmem:[%s200 + $0x14] sm:$0xf] %vm1331, %v1300
      %1338 = vst.msk [vmem:[%s200 + $0x18] sm:$0xf] %vm1331, %v1301
      %1339 = vst.msk [vmem:[%s200 + $0x1c] sm:$0xf] %vm1331, %v1302
      %1340 = vst.msk [vmem:[%s200 + $0x20] sm:$0xf] %vm1331, %v1303
      %1341 = vst.msk [vmem:[%s200 + $0x24] sm:$0xf] %vm1331, %v1304
      %1342 = vst.msk [vmem:[%s200 + $0x28] sm:$0xf] %vm1331, %v1305
      %1343 = vst.msk [vmem:[%s200 + $0x2c] sm:$0xf] %vm1331, %v1306
      %1344 = vst.msk [vmem:[%s200 + $0x30] sm:$0xf] %vm1331, %v1307
      %1345 = vst.msk [vmem:[%s200 + $0x34] sm:$0xf] %vm1331, %v1308
      %1346 = vst.msk [vmem:[%s200 + $0x38] sm:$0xf] %vm1331, %v1309
      %1347 = vst.msk [vmem:[%s200 + $0x3c] sm:$0xf] %vm1331, %v1310
      %1348 = vst.msk [vmem:[%s200 + $0x40] sm:$0xf] %vm1331, %v1311
      %1349 = vst.msk [vmem:[%s200 + $0x44] sm:$0xf] %vm1331, %v1312
      %s1350 = smul.u32 18, %s16
      %p1351 = scmp.lt.s32.totalorder %s1350, 35
      %s1352 = scalar_select %p1351, %s1350, 35
      %s1353 = smul.addr %s1352, 4
      %s1354 = scalar_lea.vmem %s4, %s1353
      // Predicated region
      $region37: #{classification_net_forward.3} parent=35 // pred_check
        %p1355 = pneg %p123
      $region38: #{classification_net_forward.3} parent=35 // pred_check_branch
        %1357 = sbr.rel (%p1355) target = $region40
      $region39: #{classification_net_forward.3} parent=35 // pred_region
        %s1358 = smul.u32 18, %s16
      $region40: #{classification_net_forward.3} parent=35 // pred_fallthru
        _
    $region36: #{classification_net_forward.3} parent=5 // pred_fallthru
      _
    %p1359 = scmp.le.s32.totalorder 2, %s11
    // Predicated region
    $region41: #{classification_net_forward.3} parent=5 // pred_check
      %p1360 = pneg %p1359
    $region42: #{classification_net_forward.3} parent=5 // pred_check_branch
      %1362 = sbr.rel (%p1360) target = $region44
    $region43: #{classification_net_forward.3} parent=5 // pred_region
      %s1363 = ssub.s32 %s11, 2
      // Predicated region
      $region45: #{classification_net_forward.3} parent=43 // pred_check
        %p1364 = pneg %p129
      $region46: #{classification_net_forward.3} parent=43 // pred_check_branch
        %1366 = sbr.rel (%p1364) target = $region48
      $region47: #{classification_net_forward.3} parent=43 // pred_region
        %s1367 = smul.u32 18, %s17
        %p1368 = scmp.lt.s32.totalorder %s1367, 35
        %s1369 = scalar_select %p1368, %s1367, 35
        %s1370 = smul.addr %s1369, 4
        %s1371 = scalar_lea.vmem %s4, %s1370
      $region48: #{classification_net_forward.3} parent=43 // pred_fallthru
        _
    $region44: #{classification_net_forward.3} parent=5 // pred_fallthru
      _
  $region6: #{classification_net_forward.3} parent=0 // loop_footer
    %s15 = sadd.s32 1, %s11
  $region7: #{classification_net_forward.3} parent=0 // loop_footer_branch
    %10 = sbr.rel target = $region3
  $region8: #{classification_net_forward.3} parent=0 // loop_exit
    _

// kernel: classification_net_forward.4
$region0: #{classification_net_forward.4}
  #allocation0 [shape = 'u32[]', space=smem, size = 0x4, offset = 0x4, fixed_abs, tag = 'smem constant byte address 0x4 - core index']
  #allocation1 [shape = 'u32[144,128]{1,0:T(1,128)}', space=vmem, size = 0x12000, scoped, tag = 'internal scratch']
  #allocation2 [shape = 'f32[1]{0:T(128)S(6)}', space=smem, size = 0x200, scoped, tag = 'scoped memory for classification_net_forward.4']
  %s0 = inlined_call_operand.vmem [shape: bf16[128,800], index: 0, kind: input, shape index: {}]
  %s1 = inlined_call_operand.vmem [shape: bf16[800,64], index: 1, kind: input, shape index: {}]
  %s2 = inlined_call_operand.vmem [shape: f32[1,64], index: 2, kind: input, shape index: {}]
  %s3 = inlined_call_operand.<no memory space> [shape: f32[1], index: 3, kind: input, shape index: {}]
  %s4 = inlined_call_operand.vmem [shape: bf16[32,64], index: 4, kind: output, shape index: {}]
  %s5 = sld [smem:[#allocation0]]
  $region49: #{classification_net_forward.4} parent=0
    _
  %s7 = ssub.s32 1, %s5
  %s8 = scalar_select 0, %s7, %s5
  %9 = sst [smem:[#allocation2]] %s3
  loop: start=0, step=1, limit=4
  $region2: #{classification_net_forward.4} parent=0 // loop_pre_header
    _
  $region3: #{classification_net_forward.4} parent=0 // loop_header
    %s11 = sphi 0, %s15
    %p12 = scmp.ge.s32.totalorder %s11, 4
    %s21 = sphi 0, %s23
    %s24 = sphi 0, %s21
    %s25 = sphi 0, %s24
    %s41 = sphi 0, %s25
    %s45 = sphi 0, %s45
    %s47 = sphi 0, %s45
    %s48 = sphi 0, %s47
    %s62 = sphi 0, %s48
    %s66 = sphi 0, %s66
    %s68 = sphi 0, %s66
    %s69 = sphi 0, %s68
    %s83 = sphi 0, %s69
    %s87 = sphi 0, %s87
    %s89 = sphi 0, %s87
    %s90 = sphi 0, %s89
    %s104 = sphi 0, %s90
    %s110 = sphi 0, %s112
    %s113 = sphi 0, %s110
    %s114 = sphi 0, %s113
    %s130 = sphi 0, %s114
  $region4: #{classification_net_forward.4} parent=0 // loop_header_branch
    %14 = sbr.rel (%p12) target = $region8
  $region5: #{classification_net_forward.4} parent=0 // loop_body
    %s16 = ssub.s32 %s11, 1
    %s17 = ssub.s32 %s11, 2
    %s18 = sadd.s32 %s11, 1
    %s19 = ssub.s32 %s11, %s18
    %p20 = scmp.eq.s32.totalorder %s19, 0
    %s22 = sadd.s32 %s21, 1
    %s23 = scalar_select %p20, %s21, %s22
    %p26 = pneg %p20
    %p27 = scmp.eq.s32.totalorder %s11, 1
    %p28 = por %p26, %p27
    %p29 = scmp.ne.s32.totalorder %s21, %s24
    %p30 = scmp.eq.s32.totalorder %s11, 0
    %p31 = por %p29, %p30
    %p32 = scmp.ne.s32.totalorder %s21, %s24
    %p33 = scmp.eq.s32.totalorder %s16, 1
    %p34 = por %p32, %p33
    %p35 = scmp.ne.s32.totalorder %s24, %s25
    %p36 = scmp.eq.s32.totalorder %s16, 0
    %p37 = por %p35, %p36
    %p38 = scmp.ne.s32.totalorder %s24, %s25
    %p39 = scmp.eq.s32.totalorder %s17, 1
    %p40 = por %p38, %p39
    %p42 = scmp.ne.s32.totalorder %s25, %s41
    %p43 = scmp.eq.s32.totalorder %s17, 0
    %p44 = por %p42, %p43
    %s46 = sadd.s32 %s45, 1
    %p49 = scmp.eq.s32.totalorder %s11, 1
    %p50 = scmp.ne.s32.totalorder %s45, %s47
    %p51 = scmp.eq.s32.totalorder %s11, 0
    %p52 = por %p50, %p51
    %p53 = scmp.ne.s32.totalorder %s45, %s47
    %p54 = scmp.eq.s32.totalorder %s16, 1
    %p55 = por %p53, %p54
    %p56 = scmp.ne.s32.totalorder %s47, %s48
    %p57 = scmp.eq.s32.totalorder %s16, 0
    %p58 = por %p56, %p57
    %p59 = scmp.ne.s32.totalorder %s47, %s48
    %p60 = scmp.eq.s32.totalorder %s17, 1
    %p61 = por %p59, %p60
    %p63 = scmp.ne.s32.totalorder %s48, %s62
    %p64 = scmp.eq.s32.totalorder %s17, 0
    %p65 = por %p63, %p64
    %s67 = sadd.s32 %s66, 1
    %p70 = scmp.eq.s32.totalorder %s11, 1
    %p71 = scmp.ne.s32.totalorder %s66, %s68
    %p72 = scmp.eq.s32.totalorder %s11, 0
    %p73 = por %p71, %p72
    %p74 = scmp.ne.s32.totalorder %s66, %s68
    %p75 = scmp.eq.s32.totalorder %s16, 1
    %p76 = por %p74, %p75
    %p77 = scmp.ne.s32.totalorder %s68, %s69
    %p78 = scmp.eq.s32.totalorder %s16, 0
    %p79 = por %p77, %p78
    %p80 = scmp.ne.s32.totalorder %s68, %s69
    %p81 = scmp.eq.s32.totalorder %s17, 1
    %p82 = por %p80, %p81
    %p84 = scmp.ne.s32.totalorder %s69, %s83
    %p85 = scmp.eq.s32.totalorder %s17, 0
    %p86 = por %p84, %p85
    %s88 = sadd.s32 %s87, 1
    %p91 = scmp.eq.s32.totalorder %s11, 1
    %p92 = scmp.ne.s32.totalorder %s87, %s89
    %p93 = scmp.eq.s32.totalorder %s11, 0
    %p94 = por %p92, %p93
    %p95 = scmp.ne.s32.totalorder %s87, %s89
    %p96 = scmp.eq.s32.totalorder %s16, 1
    %p97 = por %p95, %p96
    %p98 = scmp.ne.s32.totalorder %s89, %s90
    %p99 = scmp.eq.s32.totalorder %s16, 0
    %p100 = por %p98, %p99
    %p101 = scmp.ne.s32.totalorder %s89, %s90
    %p102 = scmp.eq.s32.totalorder %s17, 1
    %p103 = por %p101, %p102
    %p105 = scmp.ne.s32.totalorder %s90, %s104
    %p106 = scmp.eq.s32.totalorder %s17, 0
    %p107 = por %p105, %p106
    %s108 = ssub.s32 %s11, %s18
    %p109 = scmp.eq.s32.totalorder %s108, 0
    %s111 = sadd.s32 %s110, 1
    %s112 = scalar_select %p109, %s110, %s111
    %p115 = pneg %p109
    %p116 = scmp.eq.s32.totalorder %s11, 1
    %p117 = por %p115, %p116
    %p118 = scmp.ne.s32.totalorder %s110, %s113
    %p119 = scmp.eq.s32.totalorder %s11, 0
    %p120 = por %p118, %p119
    %p121 = scmp.ne.s32.totalorder %s110, %s113
    %p122 = scmp.eq.s32.totalorder %s16, 1
    %p123 = por %p121, %p122
    %p124 = scmp.ne.s32.totalorder %s113, %s114
    %p125 = scmp.eq.s32.totalorder %s16, 0
    %p126 = por %p124, %p125
    %p127 = scmp.ne.s32.totalorder %s113, %s114
    %p128 = scmp.eq.s32.totalorder %s17, 1
    %p129 = por %p127, %p128
    %p131 = scmp.ne.s32.totalorder %s114, %s130
    %p132 = scmp.eq.s32.totalorder %s17, 0
    %p133 = por %p131, %p132
    %p134 = scmp.le.s32.totalorder 1, %s11
    %p135 = scmp.lt.s32.totalorder %s11, 3
    %p136 = pnand %p134, %p135
    %p137 = pneg %p136
    // Predicated region
    $region9: #{classification_net_forward.4} parent=5 // pred_check
      _
    $region10: #{classification_net_forward.4} parent=5 // pred_check_branch
      %139 = sbr.rel (%p136) target = $region12
    $region11: #{classification_net_forward.4} parent=5 // pred_region
      %s140 = ssub.s32 %s11, 1
      // Predicated region
      $region13: #{classification_net_forward.4} parent=11 // pred_check
        %p141 = pneg %p58
      $region14: #{classification_net_forward.4} parent=11 // pred_check_branch
        %143 = sbr.rel (%p141) target = $region16
      $region15: #{classification_net_forward.4} parent=11 // pred_region
        _
      $region16: #{classification_net_forward.4} parent=11 // pred_fallthru
        _
      // Predicated region
      $region17: #{classification_net_forward.4} parent=11 // pred_check
        %p144 = pneg %p79
      $region18: #{classification_net_forward.4} parent=11 // pred_check_branch
        %146 = sbr.rel (%p144) target = $region20
      $region19: #{classification_net_forward.4} parent=11 // pred_region
        _
      $region20: #{classification_net_forward.4} parent=11 // pred_fallthru
        _
      // Predicated region
      $region21: #{classification_net_forward.4} parent=11 // pred_check
        %p147 = pneg %p100
      $region22: #{classification_net_forward.4} parent=11 // pred_check_branch
        %149 = sbr.rel (%p147) target = $region24
      $region23: #{classification_net_forward.4} parent=11 // pred_region
        _
      $region24: #{classification_net_forward.4} parent=11 // pred_fallthru
        _
    $region12: #{classification_net_forward.4} parent=5 // pred_fallthru
      _
    %p150 = scmp.lt.s32.totalorder %s11, 2
    // Predicated region
    $region25: #{classification_net_forward.4} parent=5 // pred_check
      %p151 = pneg %p150
    $region26: #{classification_net_forward.4} parent=5 // pred_check_branch
      %153 = sbr.rel (%p151) target = $region28
    $region27: #{classification_net_forward.4} parent=5 // pred_region
      // Predicated region
      $region29: #{classification_net_forward.4} parent=27 // pred_check
        %p154 = pneg %p31
      $region30: #{classification_net_forward.4} parent=27 // pred_check_branch
        %156 = sbr.rel (%p154) target = $region32
      $region31: #{classification_net_forward.4} parent=27 // pred_region
        %s157 = smul.u32 8, %s11
        %p158 = scmp.lt.s32.totalorder %s157, 15
        %s159 = scalar_select %p158, %s157, 15
        %s160 = smul.addr %s159, 7
        %s161 = smul.addr %s160, 4
        %s162 = scalar_lea.vmem %s0, %s161
        %s163 = smul.u32 8, %s11
      $region32: #{classification_net_forward.4} parent=27 // pred_fallthru
        _
    $region28: #{classification_net_forward.4} parent=5 // pred_fallthru
      _
    %p164 = scmp.le.s32.totalorder 1, %s11
    %p165 = scmp.lt.s32.totalorder %s11, 3
    %p166 = pnand %p164, %p165
    %p167 = pneg %p166
    // Predicated region
    $region33: #{classification_net_forward.4} parent=5 // pred_check
      _
    $region34: #{classification_net_forward.4} parent=5 // pred_check_branch
      %169 = sbr.rel (%p166) target = $region36
    $region35: #{classification_net_forward.4} parent=5 // pred_region
      %s170 = ssub.s32 %s11, 1
      %s171 = smul.u32 8, %s16
      %p172 = scmp.lt.s32.totalorder %s171, 15
      %s173 = scalar_select %p172, %s171, 15
      %s174 = smul.addr %s173, 7
      %s175 = smul.addr %s174, 4
      %s176 = scalar_lea.vmem %s0, %s175
      %p177 = pneg %p37
      %p178 = pneg %p34
      %p179 = pneg %p58
      %p180 = pneg %p55
      %p181 = pneg %p79
      %p182 = pneg %p76
      %p183 = pneg %p100
      %p184 = pneg %p97
      %p185 = pneg %p126
      %p186 = pneg %p123
      %s187 = smul.u32 2, %s16
      %p188 = scmp.lt.s32.totalorder %s187, 3
      %s189 = scalar_select %p188, %s187, 3
      %s190 = smul.addr %s189, 4
      %s191 = scalar_lea.vmem %s4, %s190
      %s192 = smul.u32 8, %s16
      %p193 = scmp.lt.s32.totalorder %s192, 15
      %s194 = scalar_select %p193, %s192, 15
      %s195 = smul.addr %s194, 7
      %s196 = smul.addr %s195, 4
      %s197 = scalar_lea.vmem %s0, %s196
      %s198 = smul.u32 8, %s16
      %s199 = smul.u32 2, %s16
      %p200 = scmp.lt.s32.totalorder %s199, 3
      %s201 = scalar_select %p200, %s199, 3
      %s202 = smul.addr %s201, 4
      %s203 = scalar_lea.vmem %s4, %s202
      %s204 = smul.u32 2, %s16
      %v206 = vld [vmem:[%s197] sm:$0xff]
      %v207 = vld [vmem:[%s197 + $0x8] sm:$0xff]
      %v208 = vld [vmem:[%s197 + $0x10] sm:$0xff]
      %v209 = vld [vmem:[%s197 + $0x18] sm:$0xf]
      %v210 = vld [vmem:[%s197 + $0x1c] sm:$0xff]
      %v211 = vld [vmem:[%s197 + $0x24] sm:$0xff]
      %v212 = vld [vmem:[%s197 + $0x2c] sm:$0xff]
      %v213 = vld [vmem:[%s197 + $0x34] sm:$0xf]
      %v214 = vld [vmem:[%s197 + $0x38] sm:$0xff]
      %v215 = vld [vmem:[%s197 + $0x40] sm:$0xff]
      %v216 = vld [vmem:[%s197 + $0x48] sm:$0xff]
      %v217 = vld [vmem:[%s197 + $0x50] sm:$0xf]
      %v218 = vld [vmem:[%s197 + $0x54] sm:$0xff]
      %v219 = vld [vmem:[%s197 + $0x5c] sm:$0xff]
      %v220 = vld [vmem:[%s197 + $0x64] sm:$0xff]
      %v221 = vld [vmem:[%s197 + $0x6c] sm:$0xf]
      %v222 = vld [vmem:[%s197 + $0x70] sm:$0xff]
      %v223 = vld [vmem:[%s197 + $0x78] sm:$0xff]
      %v224 = vld [vmem:[%s197 + $0x80] sm:$0xff]
      %v225 = vld [vmem:[%s197 + $0x88] sm:$0xf]
      %v226 = vld [vmem:[%s197 + $0x8c] sm:$0xff]
      %v227 = vld [vmem:[%s197 + $0x94] sm:$0xff]
      %v228 = vld [vmem:[%s197 + $0x9c] sm:$0xff]
      %v229 = vld [vmem:[%s197 + $0xa4] sm:$0xf]
      %v230 = vld [vmem:[%s197 + $0xa8] sm:$0xff]
      %v231 = vld [vmem:[%s197 + $0xb0] sm:$0xff]
      %v232 = vld [vmem:[%s197 + $0xb8] sm:$0xff]
      %v233 = vld [vmem:[%s197 + $0xc0] sm:$0xf]
      %v234 = vld [vmem:[%s197 + $0xc4] sm:$0xff]
      %v235 = vld [vmem:[%s197 + $0xcc] sm:$0xff]
      %v236 = vld [vmem:[%s197 + $0xd4] sm:$0xff]
      %v237 = vld [vmem:[%s197 + $0xdc] sm:$0xf]
      %v238 = vld [vmem:[%s1] sm:$0xf]
      %v239 = vld [vmem:[%s1 + $0x4] sm:$0xf]
      %v240 = vld [vmem:[%s1 + $0x8] sm:$0xf]
      %v241 = vld [vmem:[%s1 + $0xc] sm:$0xf]
      %v242 = vld [vmem:[%s1 + $0x10] sm:$0xf]
      %v243 = vld [vmem:[%s1 + $0x14] sm:$0xf]
      %v244 = vld [vmem:[%s1 + $0x18] sm:$0xf]
      %v245 = vld [vmem:[%s1 + $0x1c] sm:$0xf]
      %v246 = vld [vmem:[%s1 + $0x20] sm:$0xf]
      %v247 = vld [vmem:[%s1 + $0x24] sm:$0xf]
      %v248 = vld [vmem:[%s1 + $0x28] sm:$0xf]
      %v249 = vld [vmem:[%s1 + $0x2c] sm:$0xf]
      %v250 = vld [vmem:[%s1 + $0x30] sm:$0xf]
      %v251 = vld [vmem:[%s1 + $0x34] sm:$0xf]
      %v252 = vld [vmem:[%s1 + $0x38] sm:$0xf]
      %v253 = vld [vmem:[%s1 + $0x3c] sm:$0xf]
      %v254 = vld [vmem:[%s1 + $0x40] sm:$0xf]
      %v255 = vld [vmem:[%s1 + $0x44] sm:$0xf]
      %v256 = vld [vmem:[%s1 + $0x48] sm:$0xf]
      %v257 = vld [vmem:[%s1 + $0x4c] sm:$0xf]
      %v258 = vld [vmem:[%s1 + $0x50] sm:$0xf]
      %v259 = vld [vmem:[%s1 + $0x54] sm:$0xf]
      %v260 = vld [vmem:[%s1 + $0x58] sm:$0xf]
      %v261 = vld [vmem:[%s1 + $0x5c] sm:$0xf]
      %v262 = vld [vmem:[%s1 + $0x60] sm:$0xf]
      %v263 = vld [vmem:[%s1 + $0x64] sm:$0xf]
      %v264 = vld [vmem:[%s1 + $0x68] sm:$0xf]
      %v265 = vld [vmem:[%s1 + $0x6c] sm:$0xf]
      %v266 = vld [vmem:[%s1 + $0x70] sm:$0xf]
      %v267 = vld [vmem:[%s1 + $0x74] sm:$0xf]
      %v268 = vld [vmem:[%s1 + $0x78] sm:$0xf]
      %v269 = vld [vmem:[%s1 + $0x7c] sm:$0xf]
      %v270 = vld [vmem:[%s1 + $0x80] sm:$0xf]
      %v271 = vld [vmem:[%s1 + $0x84] sm:$0xf]
      %v272 = vld [vmem:[%s1 + $0x88] sm:$0xf]
      %v273 = vld [vmem:[%s1 + $0x8c] sm:$0xf]
      %v274 = vld [vmem:[%s1 + $0x90] sm:$0xf]
      %v275 = vld [vmem:[%s1 + $0x94] sm:$0xf]
      %v276 = vld [vmem:[%s1 + $0x98] sm:$0xf]
      %v277 = vld [vmem:[%s1 + $0x9c] sm:$0xf]
      %v278 = vld [vmem:[%s1 + $0xa0] sm:$0xf]
      %v279 = vld [vmem:[%s1 + $0xa4] sm:$0xf]
      %v280 = vld [vmem:[%s1 + $0xa8] sm:$0xf]
      %v281 = vld [vmem:[%s1 + $0xac] sm:$0xf]
      %v282 = vld [vmem:[%s1 + $0xb0] sm:$0xf]
      %v283 = vld [vmem:[%s1 + $0xb4] sm:$0xf]
      %v284 = vld [vmem:[%s1 + $0xb8] sm:$0xf]
      %v285 = vld [vmem:[%s1 + $0xbc] sm:$0xf]
      %v286 = vld [vmem:[%s1 + $0xc0] sm:$0xf]
      %v287 = vld [vmem:[%s1 + $0xc4] sm:$0xf]
      %v288 = vld [vmem:[%s1 + $0xc8] sm:$0xf]
      %v289 = vld [vmem:[%s1 + $0xcc] sm:$0xf]
      %v290 = vld [vmem:[%s1 + $0xd0] sm:$0xf]
      %v291 = vld [vmem:[%s1 + $0xd4] sm:$0xf]
      %v292 = vld [vmem:[%s1 + $0xd8] sm:$0xf]
      %v293 = vld [vmem:[%s1 + $0xdc] sm:$0xf]
      %v294 = vld [vmem:[%s1 + $0xe0] sm:$0xf]
      %v295 = vld [vmem:[%s1 + $0xe4] sm:$0xf]
      %v296 = vld [vmem:[%s1 + $0xe8] sm:$0xf]
      %v297 = vld [vmem:[%s1 + $0xec] sm:$0xf]
      %v298 = vld [vmem:[%s1 + $0xf0] sm:$0xf]
      %v299 = vld [vmem:[%s1 + $0xf4] sm:$0xf]
      %v300 = vld [vmem:[%s1 + $0xf8] sm:$0xf]
      %v301 = vld [vmem:[%s1 + $0xfc] sm:$0xf]
      %v302 = vld [vmem:[%s1 + $0x100] sm:$0xf]
      %v303 = vld [vmem:[%s1 + $0x104] sm:$0xf]
      %v304 = vld [vmem:[%s1 + $0x108] sm:$0xf]
      %v305 = vld [vmem:[%s1 + $0x10c] sm:$0xf]
      %v306 = vld [vmem:[%s1 + $0x110] sm:$0xf]
      %v307 = vld [vmem:[%s1 + $0x114] sm:$0xf]
      %v308 = vld [vmem:[%s1 + $0x118] sm:$0xf]
      %v309 = vld [vmem:[%s1 + $0x11c] sm:$0xf]
      %v310 = vld [vmem:[%s1 + $0x120] sm:$0xf]
      %v311 = vld [vmem:[%s1 + $0x124] sm:$0xf]
      %v312 = vld [vmem:[%s1 + $0x128] sm:$0xf]
      %v313 = vld [vmem:[%s1 + $0x12c] sm:$0xf]
      %v314 = vld [vmem:[%s1 + $0x130] sm:$0xf]
      %v315 = vld [vmem:[%s1 + $0x134] sm:$0xf]
      %v316 = vld [vmem:[%s1 + $0x138] sm:$0xf]
      %v317 = vld [vmem:[%s1 + $0x13c] sm:$0xf]
      %v318 = vld [vmem:[%s1 + $0x140] sm:$0xf]
      %v319 = vld [vmem:[%s1 + $0x144] sm:$0xf]
      %v320 = vld [vmem:[%s1 + $0x148] sm:$0xf]
      %v321 = vld [vmem:[%s1 + $0x14c] sm:$0xf]
      %v322 = vld [vmem:[%s1 + $0x150] sm:$0xf]
      %v323 = vld [vmem:[%s1 + $0x154] sm:$0xf]
      %v324 = vld [vmem:[%s1 + $0x158] sm:$0xf]
      %v325 = vld [vmem:[%s1 + $0x15c] sm:$0xf]
      %v326 = vld [vmem:[%s1 + $0x160] sm:$0xf]
      %v327 = vld [vmem:[%s1 + $0x164] sm:$0xf]
      %v328 = vld [vmem:[%s1 + $0x168] sm:$0xf]
      %v329 = vld [vmem:[%s1 + $0x16c] sm:$0xf]
      %v330 = vld [vmem:[%s1 + $0x170] sm:$0xf]
      %v331 = vld [vmem:[%s1 + $0x174] sm:$0xf]
      %v332 = vld [vmem:[%s1 + $0x178] sm:$0xf]
      %v333 = vld [vmem:[%s1 + $0x17c] sm:$0xf]
      %v334 = vld [vmem:[%s1 + $0x180] sm:$0xf]
      %v335 = vld [vmem:[%s1 + $0x184] sm:$0xf]
      %v336 = vld [vmem:[%s1 + $0x188] sm:$0xf]
      %v337 = vld [vmem:[%s1 + $0x18c] sm:$0xf]
      %v338 = vld [vmem:[%s2] sm:$0x1]
      %v340 = vlaneseq
      %v341 = vshrl.u32 %v340, 7
      %v342 = vsub.s32 0, %v341
      %v343 = vrot.slane %v338, %v342
      %v377 = vunpack.c.l.b16 %v206
      %v378 = vunpack.c.h.b16 %v206
      %v379 = vunpack.c.l.b16 %v207
      %v380 = vunpack.c.h.b16 %v207
      %v381 = vunpack.c.l.b16 %v208
      %v382 = vunpack.c.h.b16 %v208
      %v383 = vunpack.c.l.b16 %v209
      %v384 = vunpack.c.l.b16 %v210
      %v385 = vunpack.c.h.b16 %v210
      %v386 = vunpack.c.l.b16 %v211
      %v387 = vunpack.c.h.b16 %v211
      %v388 = vunpack.c.l.b16 %v212
      %v389 = vunpack.c.h.b16 %v212
      %v390 = vunpack.c.l.b16 %v213
      %v391 = vunpack.c.l.b16 %v214
      %v392 = vunpack.c.h.b16 %v214
      %v393 = vunpack.c.l.b16 %v215
      %v394 = vunpack.c.h.b16 %v215
      %v395 = vunpack.c.l.b16 %v216
      %v396 = vunpack.c.h.b16 %v216
      %v397 = vunpack.c.l.b16 %v217
      %v398 = vunpack.c.l.b16 %v218
      %v399 = vunpack.c.h.b16 %v218
      %v400 = vunpack.c.l.b16 %v219
      %v401 = vunpack.c.h.b16 %v219
      %v402 = vunpack.c.l.b16 %v220
      %v403 = vunpack.c.h.b16 %v220
      %v404 = vunpack.c.l.b16 %v221
      %v405 = vunpack.c.l.b16 %v222
      %v406 = vunpack.c.h.b16 %v222
      %v407 = vunpack.c.l.b16 %v223
      %v408 = vunpack.c.h.b16 %v223
      %v409 = vunpack.c.l.b16 %v224
      %v410 = vunpack.c.h.b16 %v224
      %v411 = vunpack.c.l.b16 %v225
      %v412 = vunpack.c.l.b16 %v226
      %v413 = vunpack.c.h.b16 %v226
      %v414 = vunpack.c.l.b16 %v227
      %v415 = vunpack.c.h.b16 %v227
      %v416 = vunpack.c.l.b16 %v228
      %v417 = vunpack.c.h.b16 %v228
      %v418 = vunpack.c.l.b16 %v229
      %v419 = vunpack.c.l.b16 %v230
      %v420 = vunpack.c.h.b16 %v230
      %v421 = vunpack.c.l.b16 %v231
      %v422 = vunpack.c.h.b16 %v231
      %v423 = vunpack.c.l.b16 %v232
      %v424 = vunpack.c.h.b16 %v232
      %v425 = vunpack.c.l.b16 %v233
      %v426 = vunpack.c.l.b16 %v234
      %v427 = vunpack.c.h.b16 %v234
      %v428 = vunpack.c.l.b16 %v235
      %v429 = vunpack.c.h.b16 %v235
      %v430 = vunpack.c.l.b16 %v236
      %v431 = vunpack.c.h.b16 %v236
      %v432 = vunpack.c.l.b16 %v237
      %v433 = vpack.c.b16 %v384, %v377
      %v434 = vpack.c.b16 %v385, %v378
      %v435 = vpack.c.b16 %v386, %v379
      %v436 = vpack.c.b16 %v387, %v380
      %v437 = vpack.c.b16 %v388, %v381
      %v438 = vpack.c.b16 %v389, %v382
      %v439 = vpack.c.b16 %v390, %v383
      %v440 = vpack.c.b16 %v398, %v391
      %v441 = vpack.c.b16 %v399, %v392
      %v442 = vpack.c.b16 %v400, %v393
      %v443 = vpack.c.b16 %v401, %v394
      %v444 = vpack.c.b16 %v402, %v395
      %v445 = vpack.c.b16 %v403, %v396
      %v446 = vpack.c.b16 %v404, %v397
      %v447 = vpack.c.b16 %v412, %v405
      %v448 = vpack.c.b16 %v413, %v406
      %v449 = vpack.c.b16 %v414, %v407
      %v450 = vpack.c.b16 %v415, %v408
      %v451 = vpack.c.b16 %v416, %v409
      %v452 = vpack.c.b16 %v417, %v410
      %v453 = vpack.c.b16 %v418, %v411
      %v454 = vpack.c.b16 %v426, %v419
      %v455 = vpack.c.b16 %v427, %v420
      %v456 = vpack.c.b16 %v428, %v421
      %v457 = vpack.c.b16 %v429, %v422
      %v458 = vpack.c.b16 %v430, %v423
      %v459 = vpack.c.b16 %v431, %v424
      %v460 = vpack.c.b16 %v432, %v425
      %v585 = vunpack.c.l.b16 %v238
      %v586 = vunpack.c.l.b16 %v239
      %v587 = vunpack.c.l.b16 %v240
      %v588 = vunpack.c.l.b16 %v241
      %v589 = vunpack.c.l.b16 %v242
      %v590 = vunpack.c.l.b16 %v243
      %v591 = vunpack.c.l.b16 %v244
      %v592 = vunpack.c.l.b16 %v245
      %v593 = vunpack.c.l.b16 %v246
      %v594 = vunpack.c.l.b16 %v247
      %v595 = vunpack.c.l.b16 %v248
      %v596 = vunpack.c.l.b16 %v249
      %v597 = vunpack.c.l.b16 %v250
      %v598 = vunpack.c.l.b16 %v251
      %v599 = vunpack.c.l.b16 %v252
      %v600 = vunpack.c.l.b16 %v253
      %v601 = vunpack.c.l.b16 %v254
      %v602 = vunpack.c.l.b16 %v255
      %v603 = vunpack.c.l.b16 %v256
      %v604 = vunpack.c.l.b16 %v257
      %v605 = vunpack.c.l.b16 %v258
      %v606 = vunpack.c.l.b16 %v259
      %v607 = vunpack.c.l.b16 %v260
      %v608 = vunpack.c.l.b16 %v261
      %v609 = vunpack.c.l.b16 %v262
      %v610 = vunpack.c.l.b16 %v263
      %v611 = vunpack.c.l.b16 %v264
      %v612 = vunpack.c.l.b16 %v265
      %v613 = vunpack.c.l.b16 %v266
      %v614 = vunpack.c.l.b16 %v267
      %v615 = vunpack.c.l.b16 %v268
      %v616 = vunpack.c.l.b16 %v269
      %v617 = vunpack.c.l.b16 %v270
      %v618 = vunpack.c.l.b16 %v271
      %v619 = vunpack.c.l.b16 %v272
      %v620 = vunpack.c.l.b16 %v273
      %v621 = vunpack.c.l.b16 %v274
      %v622 = vunpack.c.l.b16 %v275
      %v623 = vunpack.c.l.b16 %v276
      %v624 = vunpack.c.l.b16 %v277
      %v625 = vunpack.c.l.b16 %v278
      %v626 = vunpack.c.l.b16 %v279
      %v627 = vunpack.c.l.b16 %v280
      %v628 = vunpack.c.l.b16 %v281
      %v629 = vunpack.c.l.b16 %v282
      %v630 = vunpack.c.l.b16 %v283
      %v631 = vunpack.c.l.b16 %v284
      %v632 = vunpack.c.l.b16 %v285
      %v633 = vunpack.c.l.b16 %v286
      %v634 = vunpack.c.l.b16 %v287
      %v635 = vunpack.c.l.b16 %v288
      %v636 = vunpack.c.l.b16 %v289
      %v637 = vunpack.c.l.b16 %v290
      %v638 = vunpack.c.l.b16 %v291
      %v639 = vunpack.c.l.b16 %v292
      %v640 = vunpack.c.l.b16 %v293
      %v641 = vunpack.c.l.b16 %v294
      %v642 = vunpack.c.l.b16 %v295
      %v643 = vunpack.c.l.b16 %v296
      %v644 = vunpack.c.l.b16 %v297
      %v645 = vunpack.c.l.b16 %v298
      %v646 = vunpack.c.l.b16 %v299
      %v647 = vunpack.c.l.b16 %v300
      %v648 = vunpack.c.l.b16 %v301
      %v649 = vunpack.c.l.b16 %v302
      %v650 = vunpack.c.l.b16 %v303
      %v651 = vunpack.c.l.b16 %v304
      %v652 = vunpack.c.l.b16 %v305
      %v653 = vunpack.c.l.b16 %v306
      %v654 = vunpack.c.l.b16 %v307
      %v655 = vunpack.c.l.b16 %v308
      %v656 = vunpack.c.l.b16 %v309
      %v657 = vunpack.c.l.b16 %v310
      %v658 = vunpack.c.l.b16 %v311
      %v659 = vunpack.c.l.b16 %v312
      %v660 = vunpack.c.l.b16 %v313
      %v661 = vunpack.c.l.b16 %v314
      %v662 = vunpack.c.l.b16 %v315
      %v663 = vunpack.c.l.b16 %v316
      %v664 = vunpack.c.l.b16 %v317
      %v665 = vunpack.c.l.b16 %v318
      %v666 = vunpack.c.l.b16 %v319
      %v667 = vunpack.c.l.b16 %v320
      %v668 = vunpack.c.l.b16 %v321
      %v669 = vunpack.c.l.b16 %v322
      %v670 = vunpack.c.l.b16 %v323
      %v671 = vunpack.c.l.b16 %v324
      %v672 = vunpack.c.l.b16 %v325
      %v673 = vunpack.c.l.b16 %v326
      %v674 = vunpack.c.l.b16 %v327
      %v675 = vunpack.c.l.b16 %v328
      %v676 = vunpack.c.l.b16 %v329
      %v677 = vunpack.c.l.b16 %v330
      %v678 = vunpack.c.l.b16 %v331
      %v679 = vunpack.c.l.b16 %v332
      %v680 = vunpack.c.l.b16 %v333
      %v681 = vunpack.c.l.b16 %v334
      %v682 = vunpack.c.l.b16 %v335
      %v683 = vunpack.c.l.b16 %v336
      %v684 = vunpack.c.l.b16 %v337
      %v685 = vpack.c.b16 %v586, %v585
      %v686 = vpack.c.b16 %v588, %v587
      %v687 = vpack.c.b16 %v590, %v589
      %v688 = vpack.c.b16 %v592, %v591
      %v689 = vpack.c.b16 %v594, %v593
      %v690 = vpack.c.b16 %v596, %v595
      %v691 = vpack.c.b16 %v598, %v597
      %v692 = vpack.c.b16 %v600, %v599
      %v693 = vpack.c.b16 %v602, %v601
      %v694 = vpack.c.b16 %v604, %v603
      %v695 = vpack.c.b16 %v606, %v605
      %v696 = vpack.c.b16 %v608, %v607
      %v697 = vpack.c.b16 %v610, %v609
      %v698 = vpack.c.b16 %v612, %v611
      %v699 = vpack.c.b16 %v614, %v613
      %v700 = vpack.c.b16 %v616, %v615
      %v701 = vpack.c.b16 %v618, %v617
      %v702 = vpack.c.b16 %v620, %v619
      %v703 = vpack.c.b16 %v622, %v621
      %v704 = vpack.c.b16 %v624, %v623
      %v705 = vpack.c.b16 %v626, %v625
      %v706 = vpack.c.b16 %v628, %v627
      %v707 = vpack.c.b16 %v630, %v629
      %v708 = vpack.c.b16 %v632, %v631
      %v709 = vpack.c.b16 %v634, %v633
      %v710 = vpack.c.b16 %v636, %v635
      %v711 = vpack.c.b16 %v638, %v637
      %v712 = vpack.c.b16 %v640, %v639
      %v713 = vpack.c.b16 %v642, %v641
      %v714 = vpack.c.b16 %v644, %v643
      %v715 = vpack.c.b16 %v646, %v645
      %v716 = vpack.c.b16 %v648, %v647
      %v717 = vpack.c.b16 %v650, %v649
      %v718 = vpack.c.b16 %v652, %v651
      %v719 = vpack.c.b16 %v654, %v653
      %v720 = vpack.c.b16 %v656, %v655
      %v721 = vpack.c.b16 %v658, %v657
      %v722 = vpack.c.b16 %v660, %v659
      %v723 = vpack.c.b16 %v662, %v661
      %v724 = vpack.c.b16 %v664, %v663
      %v725 = vpack.c.b16 %v666, %v665
      %v726 = vpack.c.b16 %v668, %v667
      %v727 = vpack.c.b16 %v670, %v669
      %v728 = vpack.c.b16 %v672, %v671
      %v729 = vpack.c.b16 %v674, %v673
      %v730 = vpack.c.b16 %v676, %v675
      %v731 = vpack.c.b16 %v678, %v677
      %v732 = vpack.c.b16 %v680, %v679
      %v733 = vpack.c.b16 %v682, %v681
      %v734 = vpack.c.b16 %v684, %v683
      %vm785 = vcmask 261120
      %v787 = vsel %vm785, %v439, 0
      %v790 = vsel %vm785, %v446, 0
      %v793 = vsel %vm785, %v453, 0
      %v796 = vsel %vm785, %v460, 0
      %798 = vmatprep.subr.bf16.mxu0 0
      %799 = vmatpush1.bf16.msra.mxu0 %v685
      %800 = vmatprep.subr.bf16.mxu0 0
      %801 = vmatpush1.bf16.msra.mxu0 %v686
      %802 = vmatprep.subr.bf16.mxu0 0
      %803 = vmatpush1.bf16.msra.mxu0 %v687
      %804 = vmatprep.subr.bf16.mxu0 0
      %805 = vmatpush1.bf16.msra.mxu0 %v688
      %806 = vmatprep.subr.bf16.mxu0 0
      %807 = vmatpush1.bf16.msra.mxu0 %v689
      %808 = vmatprep.subr.bf16.mxu0 0
      %809 = vmatpush1.bf16.msra.mxu0 %v690
      %810 = vmatprep.subr.bf16.mxu0 0
      %811 = vmatpush1.bf16.msra.mxu0 %v691
      %812 = vmatprep.subr.bf16.mxu0 0
      %813 = vmatpush1.bf16.msra.mxu0 %v692
      %814 = vmatprep.subr.bf16.mxu0 0
      %815 = vmatpush1.bf16.msra.mxu0 %v693
      %816 = vmatprep.subr.bf16.mxu0 0
      %817 = vmatpush1.bf16.msra.mxu0 %v694
      %818 = vmatprep.subr.bf16.mxu0 0
      %819 = vmatpush1.bf16.msra.mxu0 %v695
      %820 = vmatprep.subr.bf16.mxu0 0
      %821 = vmatpush1.bf16.msra.mxu0 %v696
      %822 = vmatprep.subr.bf16.mxu0 0
      %823 = vmatpush1.bf16.msra.mxu0 %v697
      %824 = vmatprep.subr.bf16.mxu0 0
      %825 = vmatpush1.bf16.msra.mxu0 %v698
      %826 = vmatprep.subr.bf16.mxu0 0
      %827 = vmatpush1.bf16.msra.mxu0 %v699
      %828 = vmatprep.subr.bf16.mxu0 0
      %829 = vmatpush1.bf16.msra.mxu0 %v700
      %830 = vmatprep.mubr.bf16.mxu0 %v434
      %831 = vmatmul.mubr.bf16.gmra.mrb[0].mxu0 %v433
      %v832 = vpop.f32.mrb[0].mxu0
      %v833 = vadd.f32 %v343, %v832
      %v834 = vpop.f32.mrb[0].mxu0
      %v835 = vpop.f32.mrb[0].mxu0
      %v836 = vadd.f32 %v343, %v835
      %v837 = vpop.f32.mrb[0].mxu0
      %838 = vmatprep.mubr.bf16.mxu0 %v441
      %839 = vmatmul.mubr.bf16.gmra.mrb[0].mxu0 %v440
      %v840 = vpop.f32.mrb[0].mxu0
      %v841 = vadd.f32 %v343, %v840
      %v842 = vpop.f32.mrb[0].mxu0
      %v843 = vpop.f32.mrb[0].mxu0
      %v844 = vadd.f32 %v343, %v843
      %v845 = vpop.f32.mrb[0].mxu0
      %846 = vmatprep.mubr.bf16.mxu0 %v448
      %847 = vmatmul.mubr.bf16.gmra.mrb[0].mxu0 %v447
      %v848 = vpop.f32.mrb[0].mxu0
      %v849 = vadd.f32 %v343, %v848
      %v850 = vpop.f32.mrb[0].mxu0
      %v851 = vpop.f32.mrb[0].mxu0
      %v852 = vadd.f32 %v343, %v851
      %v853 = vpop.f32.mrb[0].mxu0
      %854 = vmatprep.mubr.bf16.mxu0 %v455
      %855 = vmatmul.mubr.bf16.gmra.mrb[0].mxu0 %v454
      %v856 = vpop.f32.mrb[0].mxu0
      %v857 = vadd.f32 %v343, %v856
      %v858 = vpop.f32.mrb[0].mxu0
      %v859 = vpop.f32.mrb[0].mxu0
      %v860 = vadd.f32 %v343, %v859
      %v861 = vpop.f32.mrb[0].mxu0
      %862 = vdwg.mxu0
      %863 = vmatprep.subr.bf16.mxu0 0
      %864 = vmatpush1.bf16.msra.mxu0 %v701
      %865 = vmatprep.subr.bf16.mxu0 0
      %866 = vmatpush1.bf16.msra.mxu0 %v702
      %867 = vmatprep.subr.bf16.mxu0 0
      %868 = vmatpush1.bf16.msra.mxu0 %v703
      %869 = vmatprep.subr.bf16.mxu0 0
      %870 = vmatpush1.bf16.msra.mxu0 %v704
      %871 = vmatprep.subr.bf16.mxu0 0
      %872 = vmatpush1.bf16.msra.mxu0 %v705
      %873 = vmatprep.subr.bf16.mxu0 0
      %874 = vmatpush1.bf16.msra.mxu0 %v706
      %875 = vmatprep.subr.bf16.mxu0 0
      %876 = vmatpush1.bf16.msra.mxu0 %v707
      %877 = vmatprep.subr.bf16.mxu0 0
      %878 = vmatpush1.bf16.msra.mxu0 %v708
      %879 = vmatprep.subr.bf16.mxu0 0
      %880 = vmatpush1.bf16.msra.mxu0 %v709
      %881 = vmatprep.subr.bf16.mxu0 0
      %882 = vmatpush1.bf16.msra.mxu0 %v710
      %883 = vmatprep.subr.bf16.mxu0 0
      %884 = vmatpush1.bf16.msra.mxu0 %v711
      %885 = vmatprep.subr.bf16.mxu0 0
      %886 = vmatpush1.bf16.msra.mxu0 %v712
      %887 = vmatprep.subr.bf16.mxu0 0
      %888 = vmatpush1.bf16.msra.mxu0 %v713
      %889 = vmatprep.subr.bf16.mxu0 0
      %890 = vmatpush1.bf16.msra.mxu0 %v714
      %891 = vmatprep.subr.bf16.mxu0 0
      %892 = vmatpush1.bf16.msra.mxu0 %v715
      %893 = vmatprep.subr.bf16.mxu0 0
      %894 = vmatpush1.bf16.msra.mxu0 %v716
      %895 = vmatprep.mubr.bf16.mxu0 %v436
      %896 = vmatmul.mubr.bf16.gmra.mrb[0].mxu0 %v435
      %v897 = vpop.f32.mrb[0].mxu0
      %v898 = vadd.f32 %v833, %v897
      %v899 = vpop.f32.mrb[0].mxu0
      %v900 = vpop.f32.mrb[0].mxu0
      %v901 = vadd.f32 %v836, %v900
      %v902 = vpop.f32.mrb[0].mxu0
      %903 = vmatprep.mubr.bf16.mxu0 %v443
      %904 = vmatmul.mubr.bf16.gmra.mrb[0].mxu0 %v442
      %v905 = vpop.f32.mrb[0].mxu0
      %v906 = vadd.f32 %v841, %v905
      %v907 = vpop.f32.mrb[0].mxu0
      %v908 = vpop.f32.mrb[0].mxu0
      %v909 = vadd.f32 %v844, %v908
      %v910 = vpop.f32.mrb[0].mxu0
      %911 = vmatprep.mubr.bf16.mxu0 %v450
      %912 = vmatmul.mubr.bf16.gmra.mrb[0].mxu0 %v449
      %v913 = vpop.f32.mrb[0].mxu0
      %v914 = vadd.f32 %v849, %v913
      %v915 = vpop.f32.mrb[0].mxu0
      %v916 = vpop.f32.mrb[0].mxu0
      %v917 = vadd.f32 %v852, %v916
      %v918 = vpop.f32.mrb[0].mxu0
      %919 = vmatprep.mubr.bf16.mxu0 %v457
      %920 = vmatmul.mubr.bf16.gmra.mrb[0].mxu0 %v456
      %v921 = vpop.f32.mrb[0].mxu0
      %v922 = vadd.f32 %v857, %v921
      %v923 = vpop.f32.mrb[0].mxu0
      %v924 = vpop.f32.mrb[0].mxu0
      %v925 = vadd.f32 %v860, %v924
      %v926 = vpop.f32.mrb[0].mxu0
      %927 = vdwg.mxu0
      %928 = vmatprep.subr.bf16.mxu0 0
      %929 = vmatpush1.bf16.msra.mxu0 %v717
      %930 = vmatprep.subr.bf16.mxu0 0
      %931 = vmatpush1.bf16.msra.mxu0 %v718
      %932 = vmatprep.subr.bf16.mxu0 0
      %933 = vmatpush1.bf16.msra.mxu0 %v719
      %934 = vmatprep.subr.bf16.mxu0 0
      %935 = vmatpush1.bf16.msra.mxu0 %v720
      %936 = vmatprep.subr.bf16.mxu0 0
      %937 = vmatpush1.bf16.msra.mxu0 %v721
      %938 = vmatprep.subr.bf16.mxu0 0
      %939 = vmatpush1.bf16.msra.mxu0 %v722
      %940 = vmatprep.subr.bf16.mxu0 0
      %941 = vmatpush1.bf16.msra.mxu0 %v723
      %942 = vmatprep.subr.bf16.mxu0 0
      %943 = vmatpush1.bf16.msra.mxu0 %v724
      %944 = vmatprep.subr.bf16.mxu0 0
      %945 = vmatpush1.bf16.msra.mxu0 %v725
      %946 = vmatprep.subr.bf16.mxu0 0
      %947 = vmatpush1.bf16.msra.mxu0 %v726
      %948 = vmatprep.subr.bf16.mxu0 0
      %949 = vmatpush1.bf16.msra.mxu0 %v727
      %950 = vmatprep.subr.bf16.mxu0 0
      %951 = vmatpush1.bf16.msra.mxu0 %v728
      %952 = vmatprep.subr.bf16.mxu0 0
      %953 = vmatpush1.bf16.msra.mxu0 %v729
      %954 = vmatprep.subr.bf16.mxu0 0
      %955 = vmatpush1.bf16.msra.mxu0 %v730
      %956 = vmatprep.subr.bf16.mxu0 0
      %957 = vmatpush1.bf16.msra.mxu0 %v731
      %958 = vmatprep.subr.bf16.mxu0 0
      %959 = vmatpush1.bf16.msra.mxu0 %v732
      %960 = vmatprep.mubr.bf16.mxu0 %v438
      %961 = vmatmul.mubr.bf16.gmra.mrb[0].mxu0 %v437
      %v962 = vpop.f32.mrb[0].mxu0
      %v963 = vadd.f32 %v898, %v962
      %v964 = vpop.f32.mrb[0].mxu0
      %v965 = vpop.f32.mrb[0].mxu0
      %v966 = vadd.f32 %v901, %v965
      %v967 = vpop.f32.mrb[0].mxu0
      %968 = vmatprep.mubr.bf16.mxu0 %v445
      %969 = vmatmul.mubr.bf16.gmra.mrb[0].mxu0 %v444
      %v970 = vpop.f32.mrb[0].mxu0
      %v971 = vadd.f32 %v906, %v970
      %v972 = vpop.f32.mrb[0].mxu0
      %v973 = vpop.f32.mrb[0].mxu0
      %v974 = vadd.f32 %v909, %v973
      %v975 = vpop.f32.mrb[0].mxu0
      %976 = vmatprep.mubr.bf16.mxu0 %v452
      %977 = vmatmul.mubr.bf16.gmra.mrb[0].mxu0 %v451
      %v978 = vpop.f32.mrb[0].mxu0
      %v979 = vadd.f32 %v914, %v978
      %v980 = vpop.f32.mrb[0].mxu0
      %v981 = vpop.f32.mrb[0].mxu0
      %v982 = vadd.f32 %v917, %v981
      %v983 = vpop.f32.mrb[0].mxu0
      %984 = vmatprep.mubr.bf16.mxu0 %v459
      %985 = vmatmul.mubr.bf16.gmra.mrb[0].mxu0 %v458
      %v986 = vpop.f32.mrb[0].mxu0
      %v987 = vadd.f32 %v922, %v986
      %v988 = vpop.f32.mrb[0].mxu0
      %v989 = vpop.f32.mrb[0].mxu0
      %v990 = vadd.f32 %v925, %v989
      %v991 = vpop.f32.mrb[0].mxu0
      %992 = vdwg.mxu0
      %993 = vmatprep.subr.bf16.mxu0 0
      %994 = vmatpush1.bf16.msra.mxu0 %v733
      %995 = vmatprep.subr.bf16.mxu0 0
      %996 = vmatpush1.bf16.msra.mxu0 %v734
      %997 = vmatprep.subr.bf16.mxu0 0
      %998 = vmatpush1.bf16.msra.mxu0 0
      %999 = vmatprep.subr.bf16.mxu0 0
      %1000 = vmatpush1.bf16.msra.mxu0 0
      %1001 = vmatprep.subr.bf16.mxu0 0
      %1002 = vmatpush1.bf16.msra.mxu0 0
      %1003 = vmatprep.subr.bf16.mxu0 0
      %1004 = vmatpush1.bf16.msra.mxu0 0
      %1005 = vmatprep.subr.bf16.mxu0 0
      %1006 = vmatpush1.bf16.msra.mxu0 0
      %1007 = vmatprep.subr.bf16.mxu0 0
      %1008 = vmatpush1.bf16.msra.mxu0 0
      %1009 = vmatprep.subr.bf16.mxu0 0
      %1010 = vmatpush1.bf16.msra.mxu0 0
      %1011 = vmatprep.subr.bf16.mxu0 0
      %1012 = vmatpush1.bf16.msra.mxu0 0
      %1013 = vmatprep.subr.bf16.mxu0 0
      %1014 = vmatpush1.bf16.msra.mxu0 0
      %1015 = vmatprep.subr.bf16.mxu0 0
      %1016 = vmatpush1.bf16.msra.mxu0 0
      %1017 = vmatprep.subr.bf16.mxu0 0
      %1018 = vmatpush1.bf16.msra.mxu0 0
      %1019 = vmatprep.subr.bf16.mxu0 0
      %1020 = vmatpush1.bf16.msra.mxu0 0
      %1021 = vmatprep.subr.bf16.mxu0 0
      %1022 = vmatpush1.bf16.msra.mxu0 0
      %1023 = vmatprep.subr.bf16.mxu0 0
      %1024 = vmatpush1.bf16.msra.mxu0 0
      %1025 = vmatprep.mubr.bf16.mxu0 0
      %1026 = vmatmul.mubr.bf16.gmra.mrb[0].mxu0 %v787
      %v1027 = vpop.f32.mrb[0].mxu0
      %v1028 = vadd.f32 %v963, %v1027
      %v1029 = vpop.f32.mrb[0].mxu0
      %v1030 = vpop.f32.mrb[0].mxu0
      %v1031 = vadd.f32 %v966, %v1030
      %v1032 = vpop.f32.mrb[0].mxu0
      %1033 = vmatprep.mubr.bf16.mxu0 0
      %1034 = vmatmul.mubr.bf16.gmra.mrb[0].mxu0 %v790
      %v1035 = vpop.f32.mrb[0].mxu0
      %v1036 = vadd.f32 %v971, %v1035
      %v1037 = vpop.f32.mrb[0].mxu0
      %v1038 = vpop.f32.mrb[0].mxu0
      %v1039 = vadd.f32 %v974, %v1038
      %v1040 = vpop.f32.mrb[0].mxu0
      %1041 = vmatprep.mubr.bf16.mxu0 0
      %1042 = vmatmul.mubr.bf16.gmra.mrb[0].mxu0 %v793
      %v1043 = vpop.f32.mrb[0].mxu0
      %v1044 = vadd.f32 %v979, %v1043
      %v1045 = vpop.f32.mrb[0].mxu0
      %v1046 = vpop.f32.mrb[0].mxu0
      %v1047 = vadd.f32 %v982, %v1046
      %v1048 = vpop.f32.mrb[0].mxu0
      %1049 = vmatprep.mubr.bf16.mxu0 0
      %1050 = vmatmul.mubr.bf16.gmra.mrb[0].mxu0 %v796
      %v1051 = vpop.f32.mrb[0].mxu0
      %v1052 = vadd.f32 %v987, %v1051
      %v1053 = vpop.f32.mrb[0].mxu0
      %v1054 = vpop.f32.mrb[0].mxu0
      %v1055 = vadd.f32 %v990, %v1054
      %v1056 = vpop.f32.mrb[0].mxu0
      %1057 = vdwg.mxu0
      %s1058 = sld [smem:[#allocation2]]
      %vm1059 = vcmp.ge.f32.partialorder %v1028, 0.0
      %vm1060 = vcmp.ge.f32.partialorder %v1031, 0.0
      %vm1061 = vcmp.ge.f32.partialorder %v1036, 0.0
      %vm1062 = vcmp.ge.f32.partialorder %v1039, 0.0
      %vm1063 = vcmp.ge.f32.partialorder %v1044, 0.0
      %vm1064 = vcmp.ge.f32.partialorder %v1047, 0.0
      %vm1065 = vcmp.ge.f32.partialorder %v1052, 0.0
      %vm1066 = vcmp.ge.f32.partialorder %v1055, 0.0
      %v1067 = vstv %s1058
      %v1068 = vmul.f32 %v1067, %v1028
      %v1069 = vmul.f32 %v1067, %v1031
      %v1070 = vmul.f32 %v1067, %v1036
      %v1071 = vmul.f32 %v1067, %v1039
      %v1072 = vmul.f32 %v1067, %v1044
      %v1073 = vmul.f32 %v1067, %v1047
      %v1074 = vmul.f32 %v1067, %v1052
      %v1075 = vmul.f32 %v1067, %v1055
      %v1076 = vsel %vm1059, %v1028, %v1068
      %v1077 = vsel %vm1060, %v1031, %v1069
      %v1078 = vsel %vm1061, %v1036, %v1070
      %v1079 = vsel %vm1062, %v1039, %v1071
      %v1080 = vsel %vm1063, %v1044, %v1072
      %v1081 = vsel %vm1064, %v1047, %v1073
      %v1082 = vsel %vm1065, %v1052, %v1074
      %v1083 = vsel %vm1066, %v1055, %v1075
      %vm1084 = vcmask 523264
      %v1085 = vsel %vm1084, %v1076, -inf
      %v1086 = vsel %vm1084, %v1078, -inf
      %v1087 = vsel %vm1084, %v1080, -inf
      %v1088 = vmax.f32 %v1085, %v1087
      %v1089 = vsel %vm1084, %v1082, -inf
      %v1090 = vmax.f32 %v1086, %v1089
      %v1091 = vmax.f32 %v1088, %v1090
      %v1092 = vsel %vm1084, %v1077, -inf
      %v1093 = vsel %vm1084, %v1079, -inf
      %v1094 = vsel %vm1084, %v1081, -inf
      %v1095 = vmax.f32 %v1092, %v1094
      %v1096 = vsel %vm1084, %v1083, -inf
      %v1097 = vmax.f32 %v1093, %v1096
      %v1098 = vmax.f32 %v1095, %v1097
      %v1099 = vpack.c.bf16 %v1098, %v1091
      %v1101 = vunpack.c.l.b16 %v1099
      %v1102 = vunpack.c.h.b16 %v1099
      %v1103 = vpack.c.b16 %v1101, %v1101
      %v1104 = vpack.c.b16 %v1102, %v1102
      %vm1107 = vcmask 519168
      %1108 = vst.msk [vmem:[%s203] sm:$0xf] %vm1107, %v1103
      %1109 = vst.msk [vmem:[%s203 + $0x4] sm:$0xf] %vm1107, %v1104
      %s1110 = smul.u32 2, %s16
      %p1111 = scmp.lt.s32.totalorder %s1110, 3
      %s1112 = scalar_select %p1111, %s1110, 3
      %s1113 = smul.addr %s1112, 4
      %s1114 = scalar_lea.vmem %s4, %s1113
      // Predicated region
      $region37: #{classification_net_forward.4} parent=35 // pred_check
        %p1115 = pneg %p123
      $region38: #{classification_net_forward.4} parent=35 // pred_check_branch
        %1117 = sbr.rel (%p1115) target = $region40
      $region39: #{classification_net_forward.4} parent=35 // pred_region
        %s1118 = smul.u32 2, %s16
      $region40: #{classification_net_forward.4} parent=35 // pred_fallthru
        _
    $region36: #{classification_net_forward.4} parent=5 // pred_fallthru
      _
    %p1119 = scmp.le.s32.totalorder 2, %s11
    // Predicated region
    $region41: #{classification_net_forward.4} parent=5 // pred_check
      %p1120 = pneg %p1119
    $region42: #{classification_net_forward.4} parent=5 // pred_check_branch
      %1122 = sbr.rel (%p1120) target = $region44
    $region43: #{classification_net_forward.4} parent=5 // pred_region
      %s1123 = ssub.s32 %s11, 2
      // Predicated region
      $region45: #{classification_net_forward.4} parent=43 // pred_check
        %p1124 = pneg %p129
      $region46: #{classification_net_forward.4} parent=43 // pred_check_branch
        %1126 = sbr.rel (%p1124) target = $region48
      $region47: #{classification_net_forward.4} parent=43 // pred_region
        %s1127 = smul.u32 2, %s17
        %p1128 = scmp.lt.s32.totalorder %s1127, 3
        %s1129 = scalar_select %p1128, %s1127, 3
        %s1130 = smul.addr %s1129, 4
        %s1131 = scalar_lea.vmem %s4, %s1130
      $region48: #{classification_net_forward.4} parent=43 // pred_fallthru
        _
    $region44: #{classification_net_forward.4} parent=5 // pred_fallthru
      _
  $region6: #{classification_net_forward.4} parent=0 // loop_footer
    %s15 = sadd.s32 1, %s11
  $region7: #{classification_net_forward.4} parent=0 // loop_footer_branch
    %10 = sbr.rel target = $region3
  $region8: #{classification_net_forward.4} parent=0 // loop_exit
    _

// kernel: classification_net_forward.5
$region0: #{classification_net_forward.5}
  #allocation0 [shape = 'u32[]', space=smem, size = 0x4, offset = 0x4, fixed_abs, tag = 'smem constant byte address 0x4 - core index']
  #allocation1 [shape = 'u32[144,128]{1,0:T(1,128)}', space=vmem, size = 0x12000, scoped, tag = 'internal scratch']
  %s0 = inlined_call_operand.vmem [shape: bf16[8,1024], index: 0, kind: input, shape index: {}]
  %s1 = inlined_call_operand.vmem [shape: bf16[1024,256], index: 1, kind: input, shape index: {}]
  %s2 = inlined_call_operand.vmem [shape: f32[1,256], index: 2, kind: input, shape index: {}]
  %s3 = inlined_call_operand.vmem [shape: bf16[256,256], index: 3, kind: input, shape index: {}]
  %s4 = inlined_call_operand.vmem [shape: f32[1,256], index: 4, kind: input, shape index: {}]
  %s5 = inlined_call_operand.vmem [shape: f32[256,128], index: 5, kind: input, shape index: {}]
  %s6 = inlined_call_operand.vmem [shape: f32[1,128], index: 6, kind: input, shape index: {}]
  %s7 = inlined_call_operand.vmem [shape: f32[128,128], index: 7, kind: input, shape index: {}]
  %s8 = inlined_call_operand.vmem [shape: f32[1,128], index: 8, kind: input, shape index: {}]
  %s9 = inlined_call_operand.vmem [shape: f32[3], index: 9, kind: input, shape index: {}]
  %s10 = inlined_call_operand.vmem [shape: f32[8,128], index: 10, kind: output, shape index: {}]
  %s11 = sld [smem:[#allocation0]]
  $region54: #{classification_net_forward.5} parent=0
    _
  %s13 = ssub.s32 1, %s11
  %s14 = scalar_select 0, %s13, %s11
  $region1: #{classification_net_forward.5} parent=0
    #allocation2 [shape = 'u8[512]{0}', space=smem, size = 0x200, scoped, tag = 'input window, operand 9, single buffered']
    #allocation3 [shape = 's32[1]{0}', space=sflag, size = 0x4, scoped, tag = 'scoped memory for classification_net_forward.5']
    %15 = vsyncpa [#allocation3], 0
    // Predicated region
    $region2: #{classification_net_forward.5} parent=1 // pred_check
      _
    $region3: #{classification_net_forward.5} parent=1 // pred_check_branch
      %17 = sbr.rel (0) target = $region5
    $region4: #{classification_net_forward.5} parent=1 // pred_region
      _
    $region5: #{classification_net_forward.5} parent=1 // pred_fallthru
      _
    // Predicated region
    $region6: #{classification_net_forward.5} parent=1 // pred_check
      _
    $region7: #{classification_net_forward.5} parent=1 // pred_check_branch
      %19 = sbr.rel (0) target = $region9
    $region8: #{classification_net_forward.5} parent=1 // pred_region
      _
    $region9: #{classification_net_forward.5} parent=1 // pred_fallthru
      _
    // Predicated region
    $region10: #{classification_net_forward.5} parent=1 // pred_check
      _
    $region11: #{classification_net_forward.5} parent=1 // pred_check_branch
      %21 = sbr.rel (0) target = $region13
    $region12: #{classification_net_forward.5} parent=1 // pred_region
      _
    $region13: #{classification_net_forward.5} parent=1 // pred_fallthru
      _
    // Predicated region
    $region14: #{classification_net_forward.5} parent=1 // pred_check
      _
    $region15: #{classification_net_forward.5} parent=1 // pred_check_branch
      %23 = sbr.rel (0) target = $region17
    $region16: #{classification_net_forward.5} parent=1 // pred_region
      _
    $region17: #{classification_net_forward.5} parent=1 // pred_fallthru
      _
    // Predicated region
    $region18: #{classification_net_forward.5} parent=1 // pred_check
      _
    $region19: #{classification_net_forward.5} parent=1 // pred_check_branch
      %25 = sbr.rel (0) target = $region21
    $region20: #{classification_net_forward.5} parent=1 // pred_region
      _
    $region21: #{classification_net_forward.5} parent=1 // pred_fallthru
      _
    // Predicated region
    $region22: #{classification_net_forward.5} parent=1 // pred_check
      _
    $region23: #{classification_net_forward.5} parent=1 // pred_check_branch
      %27 = sbr.rel (0) target = $region25
    $region24: #{classification_net_forward.5} parent=1 // pred_region
      _
    $region25: #{classification_net_forward.5} parent=1 // pred_fallthru
      _
    // Predicated region
    $region26: #{classification_net_forward.5} parent=1 // pred_check
      _
    $region27: #{classification_net_forward.5} parent=1 // pred_check_branch
      %29 = sbr.rel (0) target = $region29
    $region28: #{classification_net_forward.5} parent=1 // pred_region
      _
    $region29: #{classification_net_forward.5} parent=1 // pred_fallthru
      _
    // Predicated region
    $region30: #{classification_net_forward.5} parent=1 // pred_check
      _
    $region31: #{classification_net_forward.5} parent=1 // pred_check_branch
      %31 = sbr.rel (0) target = $region33
    $region32: #{classification_net_forward.5} parent=1 // pred_region
      _
    $region33: #{classification_net_forward.5} parent=1 // pred_fallthru
      _
    // Predicated region
    $region34: #{classification_net_forward.5} parent=1 // pred_check
      _
    $region35: #{classification_net_forward.5} parent=1 // pred_check_branch
      %33 = sbr.rel (0) target = $region37
    $region36: #{classification_net_forward.5} parent=1 // pred_region
      _
    $region37: #{classification_net_forward.5} parent=1 // pred_fallthru
      _
    // Predicated region
    $region38: #{classification_net_forward.5} parent=1 // pred_check
      _
    $region39: #{classification_net_forward.5} parent=1 // pred_check_branch
      %35 = sbr.rel (0) target = $region41
    $region40: #{classification_net_forward.5} parent=1 // pred_region
      %s37 = ssub.s32 16, 16
      %38 = vsyncadd [#allocation3], %s37
      %s40 = sshll.u32 %s9, 4
      %s41 = int_to_ptr.vmem [resolvable:$true] %s40
      %43 = dma.vmem_to_smem %s41, 16, [#allocation2], [#allocation3]
    $region41: #{classification_net_forward.5} parent=1 // pred_fallthru
      _
    // Predicated region
    $region42: #{classification_net_forward.5} parent=1 // pred_check
      _
    $region43: #{classification_net_forward.5} parent=1 // pred_check_branch
      %45 = sbr.rel (0) target = $region45
    $region44: #{classification_net_forward.5} parent=1 // pred_region
      %46 = dma.done [#allocation3], 16
    $region45: #{classification_net_forward.5} parent=1 // pred_fallthru
      _
    %47 = sfence
    %s48 = sld [smem:[#allocation2]]
    %s49 = sld [smem:[#allocation2 + $0x1]]
    %s50 = sld [smem:[#allocation2 + $0x2]]
    %v51 = vld [vmem:[%s0] sm:$0xff]
    %v52 = vld [vmem:[%s0 + $0x8] sm:$0xff]
    %v53 = vld [vmem:[%s0 + $0x10] sm:$0xff]
    %v54 = vld [vmem:[%s0 + $0x18] sm:$0xff]
    %v55 = vld [vmem:[%s1] sm:$0xff]
    %v56 = vld [vmem:[%s1 + $0x8] sm:$0xff]
    %v57 = vld [vmem:[%s1 + $0x10] sm:$0xff]
    %v58 = vld [vmem:[%s1 + $0x18] sm:$0xff]
    %v59 = vld [vmem:[%s1 + $0x20] sm:$0xff]
    %v60 = vld [vmem:[%s1 + $0x28] sm:$0xff]
    %v61 = vld [vmem:[%s1 + $0x30] sm:$0xff]
    %v62 = vld [vmem:[%s1 + $0x38] sm:$0xff]
    %v63 = vld [vmem:[%s1 + $0x40] sm:$0xff]
    %v64 = vld [vmem:[%s1 + $0x48] sm:$0xff]
    %v65 = vld [vmem:[%s1 + $0x50] sm:$0xff]
    %v66 = vld [vmem:[%s1 + $0x58] sm:$0xff]
    %v67 = vld [vmem:[%s1 + $0x60] sm:$0xff]
    %v68 = vld [vmem:[%s1 + $0x68] sm:$0xff]
    %v69 = vld [vmem:[%s1 + $0x70] sm:$0xff]
    %v70 = vld [vmem:[%s1 + $0x78] sm:$0xff]
    %v71 = vld [vmem:[%s1 + $0x80] sm:$0xff]
    %v72 = vld [vmem:[%s1 + $0x88] sm:$0xff]
    %v73 = vld [vmem:[%s1 + $0x90] sm:$0xff]
    %v74 = vld [vmem:[%s1 + $0x98] sm:$0xff]
    %v75 = vld [vmem:[%s1 + $0xa0] sm:$0xff]
    %v76 = vld [vmem:[%s1 + $0xa8] sm:$0xff]
    %v77 = vld [vmem:[%s1 + $0xb0] sm:$0xff]
    %v78 = vld [vmem:[%s1 + $0xb8] sm:$0xff]
    %v79 = vld [vmem:[%s1 + $0xc0] sm:$0xff]
    %v80 = vld [vmem:[%s1 + $0xc8] sm:$0xff]
    %v81 = vld [vmem:[%s1 + $0xd0] sm:$0xff]
    %v82 = vld [vmem:[%s1 + $0xd8] sm:$0xff]
    %v83 = vld [vmem:[%s1 + $0xe0] sm:$0xff]
    %v84 = vld [vmem:[%s1 + $0xe8] sm:$0xff]
    %v85 = vld [vmem:[%s1 + $0xf0] sm:$0xff]
    %v86 = vld [vmem:[%s1 + $0xf8] sm:$0xff]
    %v87 = vld [vmem:[%s1 + $0x100] sm:$0xff]
    %v88 = vld [vmem:[%s1 + $0x108] sm:$0xff]
    %v89 = vld [vmem:[%s1 + $0x110] sm:$0xff]
    %v90 = vld [vmem:[%s1 + $0x118] sm:$0xff]
    %v91 = vld [vmem:[%s1 + $0x120] sm:$0xff]
    %v92 = vld [vmem:[%s1 + $0x128] sm:$0xff]
    %v93 = vld [vmem:[%s1 + $0x130] sm:$0xff]
    %v94 = vld [vmem:[%s1 + $0x138] sm:$0xff]
    %v95 = vld [vmem:[%s1 + $0x140] sm:$0xff]
    %v96 = vld [vmem:[%s1 + $0x148] sm:$0xff]
    %v97 = vld [vmem:[%s1 + $0x150] sm:$0xff]
    %v98 = vld [vmem:[%s1 + $0x158] sm:$0xff]
    %v99 = vld [vmem:[%s1 + $0x160] sm:$0xff]
    %v100 = vld [vmem:[%s1 + $0x168] sm:$0xff]
    %v101 = vld [vmem:[%s1 + $0x170] sm:$0xff]
    %v102 = vld [vmem:[%s1 + $0x178] sm:$0xff]
    %v103 = vld [vmem:[%s1 + $0x180] sm:$0xff]
    %v104 = vld [vmem:[%s1 + $0x188] sm:$0xff]
    %v105 = vld [vmem:[%s1 + $0x190] sm:$0xff]
    %v106 = vld [vmem:[%s1 + $0x198] sm:$0xff]
    %v107 = vld [vmem:[%s1 + $0x1a0] sm:$0xff]
    %v108 = vld [vmem:[%s1 + $0x1a8] sm:$0xff]
    %v109 = vld [vmem:[%s1 + $0x1b0] sm:$0xff]
    %v110 = vld [vmem:[%s1 + $0x1b8] sm:$0xff]
    %v111 = vld [vmem:[%s1 + $0x1c0] sm:$0xff]
    %v112 = vld [vmem:[%s1 + $0x1c8] sm:$0xff]
    %v113 = vld [vmem:[%s1 + $0x1d0] sm:$0xff]
    %v114 = vld [vmem:[%s1 + $0x1d8] sm:$0xff]
    %v115 = vld [vmem:[%s1 + $0x1e0] sm:$0xff]
    %v116 = vld [vmem:[%s1 + $0x1e8] sm:$0xff]
    %v117 = vld [vmem:[%s1 + $0x1f0] sm:$0xff]
    %v118 = vld [vmem:[%s1 + $0x1f8] sm:$0xff]
    %v119 = vld [vmem:[%s1 + $0x200] sm:$0xff]
    %v120 = vld [vmem:[%s1 + $0x208] sm:$0xff]
    %v121 = vld [vmem:[%s1 + $0x210] sm:$0xff]
    %v122 = vld [vmem:[%s1 + $0x218] sm:$0xff]
    %v123 = vld [vmem:[%s1 + $0x220] sm:$0xff]
    %v124 = vld [vmem:[%s1 + $0x228] sm:$0xff]
    %v125 = vld [vmem:[%s1 + $0x230] sm:$0xff]
    %v126 = vld [vmem:[%s1 + $0x238] sm:$0xff]
    %v127 = vld [vmem:[%s1 + $0x240] sm:$0xff]
    %v128 = vld [vmem:[%s1 + $0x248] sm:$0xff]
    %v129 = vld [vmem:[%s1 + $0x250] sm:$0xff]
    %v130 = vld [vmem:[%s1 + $0x258] sm:$0xff]
    %v131 = vld [vmem:[%s1 + $0x260] sm:$0xff]
    %v132 = vld [vmem:[%s1 + $0x268] sm:$0xff]
    %v133 = vld [vmem:[%s1 + $0x270] sm:$0xff]
    %v134 = vld [vmem:[%s1 + $0x278] sm:$0xff]
    %v135 = vld [vmem:[%s1 + $0x280] sm:$0xff]
    %v136 = vld [vmem:[%s1 + $0x288] sm:$0xff]
    %v137 = vld [vmem:[%s1 + $0x290] sm:$0xff]
    %v138 = vld [vmem:[%s1 + $0x298] sm:$0xff]
    %v139 = vld [vmem:[%s1 + $0x2a0] sm:$0xff]
    %v140 = vld [vmem:[%s1 + $0x2a8] sm:$0xff]
    %v141 = vld [vmem:[%s1 + $0x2b0] sm:$0xff]
    %v142 = vld [vmem:[%s1 + $0x2b8] sm:$0xff]
    %v143 = vld [vmem:[%s1 + $0x2c0] sm:$0xff]
    %v144 = vld [vmem:[%s1 + $0x2c8] sm:$0xff]
    %v145 = vld [vmem:[%s1 + $0x2d0] sm:$0xff]
    %v146 = vld [vmem:[%s1 + $0x2d8] sm:$0xff]
    %v147 = vld [vmem:[%s1 + $0x2e0] sm:$0xff]
    %v148 = vld [vmem:[%s1 + $0x2e8] sm:$0xff]
    %v149 = vld [vmem:[%s1 + $0x2f0] sm:$0xff]
    %v150 = vld [vmem:[%s1 + $0x2f8] sm:$0xff]
    %v151 = vld [vmem:[%s1 + $0x300] sm:$0xff]
    %v152 = vld [vmem:[%s1 + $0x308] sm:$0xff]
    %v153 = vld [vmem:[%s1 + $0x310] sm:$0xff]
    %v154 = vld [vmem:[%s1 + $0x318] sm:$0xff]
    %v155 = vld [vmem:[%s1 + $0x320] sm:$0xff]
    %v156 = vld [vmem:[%s1 + $0x328] sm:$0xff]
    %v157 = vld [vmem:[%s1 + $0x330] sm:$0xff]
    %v158 = vld [vmem:[%s1 + $0x338] sm:$0xff]
    %v159 = vld [vmem:[%s1 + $0x340] sm:$0xff]
    %v160 = vld [vmem:[%s1 + $0x348] sm:$0xff]
    %v161 = vld [vmem:[%s1 + $0x350] sm:$0xff]
    %v162 = vld [vmem:[%s1 + $0x358] sm:$0xff]
    %v163 = vld [vmem:[%s1 + $0x360] sm:$0xff]
    %v164 = vld [vmem:[%s1 + $0x368] sm:$0xff]
    %v165 = vld [vmem:[%s1 + $0x370] sm:$0xff]
    %v166 = vld [vmem:[%s1 + $0x378] sm:$0xff]
    %v167 = vld [vmem:[%s1 + $0x380] sm:$0xff]
    %v168 = vld [vmem:[%s1 + $0x388] sm:$0xff]
    %v169 = vld [vmem:[%s1 + $0x390] sm:$0xff]
    %v170 = vld [vmem:[%s1 + $0x398] sm:$0xff]
    %v171 = vld [vmem:[%s1 + $0x3a0] sm:$0xff]
    %v172 = vld [vmem:[%s1 + $0x3a8] sm:$0xff]
    %v173 = vld [vmem:[%s1 + $0x3b0] sm:$0xff]
    %v174 = vld [vmem:[%s1 + $0x3b8] sm:$0xff]
    %v175 = vld [vmem:[%s1 + $0x3c0] sm:$0xff]
    %v176 = vld [vmem:[%s1 + $0x3c8] sm:$0xff]
    %v177 = vld [vmem:[%s1 + $0x3d0] sm:$0xff]
    %v178 = vld [vmem:[%s1 + $0x3d8] sm:$0xff]
    %v179 = vld [vmem:[%s1 + $0x3e0] sm:$0xff]
    %v180 = vld [vmem:[%s1 + $0x3e8] sm:$0xff]
    %v181 = vld [vmem:[%s1 + $0x3f0] sm:$0xff]
    %v182 = vld [vmem:[%s1 + $0x3f8] sm:$0xff]
    %v183 = vld [vmem:[%s2] sm:$0x3]
    %v185 = vlaneseq
    %v186 = vshrl.u32 %v185, 7
    %v187 = vsub.s32 0, %v186
    %v188 = vrot.slane %v183, %v187
    %v189 = vlaneseq
    %v190 = vshrl.u32 %v189, 7
    %v191 = vsub.s32 1, %v190
    %v192 = vrot.slane %v183, %v191
    %v199 = vunpack.c.l.b16 %v51
    %v200 = vunpack.c.h.b16 %v51
    %v201 = vunpack.c.l.b16 %v52
    %v202 = vunpack.c.h.b16 %v52
    %v203 = vunpack.c.l.b16 %v53
    %v204 = vunpack.c.h.b16 %v53
    %v205 = vunpack.c.l.b16 %v54
    %v206 = vunpack.c.h.b16 %v54
    %v207 = vpack.c.b16 %v199, %v199
    %v208 = vpack.c.b16 %v200, %v200
    %v209 = vpack.c.b16 %v201, %v201
    %v210 = vpack.c.b16 %v202, %v202
    %v211 = vpack.c.b16 %v203, %v203
    %v212 = vpack.c.b16 %v204, %v204
    %v213 = vpack.c.b16 %v205, %v205
    %v214 = vpack.c.b16 %v206, %v206
    %v351 = vunpack.c.l.b16 %v55
    %v352 = vunpack.c.h.b16 %v55
    %v353 = vunpack.c.l.b16 %v56
    %v354 = vunpack.c.h.b16 %v56
    %v355 = vunpack.c.l.b16 %v57
    %v356 = vunpack.c.h.b16 %v57
    %v357 = vunpack.c.l.b16 %v58
    %v358 = vunpack.c.h.b16 %v58
    %v359 = vunpack.c.l.b16 %v59
    %v360 = vunpack.c.h.b16 %v59
    %v361 = vunpack.c.l.b16 %v60
    %v362 = vunpack.c.h.b16 %v60
    %v363 = vunpack.c.l.b16 %v61
    %v364 = vunpack.c.h.b16 %v61
    %v365 = vunpack.c.l.b16 %v62
    %v366 = vunpack.c.h.b16 %v62
    %v367 = vunpack.c.l.b16 %v63
    %v368 = vunpack.c.h.b16 %v63
    %v369 = vunpack.c.l.b16 %v64
    %v370 = vunpack.c.h.b16 %v64
    %v371 = vunpack.c.l.b16 %v65
    %v372 = vunpack.c.h.b16 %v65
    %v373 = vunpack.c.l.b16 %v66
    %v374 = vunpack.c.h.b16 %v66
    %v375 = vunpack.c.l.b16 %v67
    %v376 = vunpack.c.h.b16 %v67
    %v377 = vunpack.c.l.b16 %v68
    %v378 = vunpack.c.h.b16 %v68
    %v379 = vunpack.c.l.b16 %v69
    %v380 = vunpack.c.h.b16 %v69
    %v381 = vunpack.c.l.b16 %v70
    %v382 = vunpack.c.h.b16 %v70
    %v383 = vunpack.c.l.b16 %v71
    %v384 = vunpack.c.h.b16 %v71
    %v385 = vunpack.c.l.b16 %v72
    %v386 = vunpack.c.h.b16 %v72
    %v387 = vunpack.c.l.b16 %v73
    %v388 = vunpack.c.h.b16 %v73
    %v389 = vunpack.c.l.b16 %v74
    %v390 = vunpack.c.h.b16 %v74
    %v391 = vunpack.c.l.b16 %v75
    %v392 = vunpack.c.h.b16 %v75
    %v393 = vunpack.c.l.b16 %v76
    %v394 = vunpack.c.h.b16 %v76
    %v395 = vunpack.c.l.b16 %v77
    %v396 = vunpack.c.h.b16 %v77
    %v397 = vunpack.c.l.b16 %v78
    %v398 = vunpack.c.h.b16 %v78
    %v399 = vunpack.c.l.b16 %v79
    %v400 = vunpack.c.h.b16 %v79
    %v401 = vunpack.c.l.b16 %v80
    %v402 = vunpack.c.h.b16 %v80
    %v403 = vunpack.c.l.b16 %v81
    %v404 = vunpack.c.h.b16 %v81
    %v405 = vunpack.c.l.b16 %v82
    %v406 = vunpack.c.h.b16 %v82
    %v407 = vunpack.c.l.b16 %v83
    %v408 = vunpack.c.h.b16 %v83
    %v409 = vunpack.c.l.b16 %v84
    %v410 = vunpack.c.h.b16 %v84
    %v411 = vunpack.c.l.b16 %v85
    %v412 = vunpack.c.h.b16 %v85
    %v413 = vunpack.c.l.b16 %v86
    %v414 = vunpack.c.h.b16 %v86
    %v415 = vunpack.c.l.b16 %v87
    %v416 = vunpack.c.h.b16 %v87
    %v417 = vunpack.c.l.b16 %v88
    %v418 = vunpack.c.h.b16 %v88
    %v419 = vunpack.c.l.b16 %v89
    %v420 = vunpack.c.h.b16 %v89
    %v421 = vunpack.c.l.b16 %v90
    %v422 = vunpack.c.h.b16 %v90
    %v423 = vunpack.c.l.b16 %v91
    %v424 = vunpack.c.h.b16 %v91
    %v425 = vunpack.c.l.b16 %v92
    %v426 = vunpack.c.h.b16 %v92
    %v427 = vunpack.c.l.b16 %v93
    %v428 = vunpack.c.h.b16 %v93
    %v429 = vunpack.c.l.b16 %v94
    %v430 = vunpack.c.h.b16 %v94
    %v431 = vunpack.c.l.b16 %v95
    %v432 = vunpack.c.h.b16 %v95
    %v433 = vunpack.c.l.b16 %v96
    %v434 = vunpack.c.h.b16 %v96
    %v435 = vunpack.c.l.b16 %v97
    %v436 = vunpack.c.h.b16 %v97
    %v437 = vunpack.c.l.b16 %v98
    %v438 = vunpack.c.h.b16 %v98
    %v439 = vunpack.c.l.b16 %v99
    %v440 = vunpack.c.h.b16 %v99
    %v441 = vunpack.c.l.b16 %v100
    %v442 = vunpack.c.h.b16 %v100
    %v443 = vunpack.c.l.b16 %v101
    %v444 = vunpack.c.h.b16 %v101
    %v445 = vunpack.c.l.b16 %v102
    %v446 = vunpack.c.h.b16 %v102
    %v447 = vunpack.c.l.b16 %v103
    %v448 = vunpack.c.h.b16 %v103
    %v449 = vunpack.c.l.b16 %v104
    %v450 = vunpack.c.h.b16 %v104
    %v451 = vunpack.c.l.b16 %v105
    %v452 = vunpack.c.h.b16 %v105
    %v453 = vunpack.c.l.b16 %v106
    %v454 = vunpack.c.h.b16 %v106
    %v455 = vunpack.c.l.b16 %v107
    %v456 = vunpack.c.h.b16 %v107
    %v457 = vunpack.c.l.b16 %v108
    %v458 = vunpack.c.h.b16 %v108
    %v459 = vunpack.c.l.b16 %v109
    %v460 = vunpack.c.h.b16 %v109
    %v461 = vunpack.c.l.b16 %v110
    %v462 = vunpack.c.h.b16 %v110
    %v463 = vunpack.c.l.b16 %v111
    %v464 = vunpack.c.h.b16 %v111
    %v465 = vunpack.c.l.b16 %v112
    %v466 = vunpack.c.h.b16 %v112
    %v467 = vunpack.c.l.b16 %v113
    %v468 = vunpack.c.h.b16 %v113
    %v469 = vunpack.c.l.b16 %v114
    %v470 = vunpack.c.h.b16 %v114
    %v471 = vunpack.c.l.b16 %v115
    %v472 = vunpack.c.h.b16 %v115
    %v473 = vunpack.c.l.b16 %v116
    %v474 = vunpack.c.h.b16 %v116
    %v475 = vunpack.c.l.b16 %v117
    %v476 = vunpack.c.h.b16 %v117
    %v477 = vunpack.c.l.b16 %v118
    %v478 = vunpack.c.h.b16 %v118
    %v479 = vunpack.c.l.b16 %v119
    %v480 = vunpack.c.h.b16 %v119
    %v481 = vunpack.c.l.b16 %v120
    %v482 = vunpack.c.h.b16 %v120
    %v483 = vunpack.c.l.b16 %v121
    %v484 = vunpack.c.h.b16 %v121
    %v485 = vunpack.c.l.b16 %v122
    %v486 = vunpack.c.h.b16 %v122
    %v487 = vunpack.c.l.b16 %v123
    %v488 = vunpack.c.h.b16 %v123
    %v489 = vunpack.c.l.b16 %v124
    %v490 = vunpack.c.h.b16 %v124
    %v491 = vunpack.c.l.b16 %v125
    %v492 = vunpack.c.h.b16 %v125
    %v493 = vunpack.c.l.b16 %v126
    %v494 = vunpack.c.h.b16 %v126
    %v495 = vunpack.c.l.b16 %v127
    %v496 = vunpack.c.h.b16 %v127
    %v497 = vunpack.c.l.b16 %v128
    %v498 = vunpack.c.h.b16 %v128
    %v499 = vunpack.c.l.b16 %v129
    %v500 = vunpack.c.h.b16 %v129
    %v501 = vunpack.c.l.b16 %v130
    %v502 = vunpack.c.h.b16 %v130
    %v503 = vunpack.c.l.b16 %v131
    %v504 = vunpack.c.h.b16 %v131
    %v505 = vunpack.c.l.b16 %v132
    %v506 = vunpack.c.h.b16 %v132
    %v507 = vunpack.c.l.b16 %v133
    %v508 = vunpack.c.h.b16 %v133
    %v509 = vunpack.c.l.b16 %v134
    %v510 = vunpack.c.h.b16 %v134
    %v511 = vunpack.c.l.b16 %v135
    %v512 = vunpack.c.h.b16 %v135
    %v513 = vunpack.c.l.b16 %v136
    %v514 = vunpack.c.h.b16 %v136
    %v515 = vunpack.c.l.b16 %v137
    %v516 = vunpack.c.h.b16 %v137
    %v517 = vunpack.c.l.b16 %v138
    %v518 = vunpack.c.h.b16 %v138
    %v519 = vunpack.c.l.b16 %v139
    %v520 = vunpack.c.h.b16 %v139
    %v521 = vunpack.c.l.b16 %v140
    %v522 = vunpack.c.h.b16 %v140
    %v523 = vunpack.c.l.b16 %v141
    %v524 = vunpack.c.h.b16 %v141
    %v525 = vunpack.c.l.b16 %v142
    %v526 = vunpack.c.h.b16 %v142
    %v527 = vunpack.c.l.b16 %v143
    %v528 = vunpack.c.h.b16 %v143
    %v529 = vunpack.c.l.b16 %v144
    %v530 = vunpack.c.h.b16 %v144
    %v531 = vunpack.c.l.b16 %v145
    %v532 = vunpack.c.h.b16 %v145
    %v533 = vunpack.c.l.b16 %v146
    %v534 = vunpack.c.h.b16 %v146
    %v535 = vunpack.c.l.b16 %v147
    %v536 = vunpack.c.h.b16 %v147
    %v537 = vunpack.c.l.b16 %v148
    %v538 = vunpack.c.h.b16 %v148
    %v539 = vunpack.c.l.b16 %v149
    %v540 = vunpack.c.h.b16 %v149
    %v541 = vunpack.c.l.b16 %v150
    %v542 = vunpack.c.h.b16 %v150
    %v543 = vunpack.c.l.b16 %v151
    %v544 = vunpack.c.h.b16 %v151
    %v545 = vunpack.c.l.b16 %v152
    %v546 = vunpack.c.h.b16 %v152
    %v547 = vunpack.c.l.b16 %v153
    %v548 = vunpack.c.h.b16 %v153
    %v549 = vunpack.c.l.b16 %v154
    %v550 = vunpack.c.h.b16 %v154
    %v551 = vunpack.c.l.b16 %v155
    %v552 = vunpack.c.h.b16 %v155
    %v553 = vunpack.c.l.b16 %v156
    %v554 = vunpack.c.h.b16 %v156
    %v555 = vunpack.c.l.b16 %v157
    %v556 = vunpack.c.h.b16 %v157
    %v557 = vunpack.c.l.b16 %v158
    %v558 = vunpack.c.h.b16 %v158
    %v559 = vunpack.c.l.b16 %v159
    %v560 = vunpack.c.h.b16 %v159
    %v561 = vunpack.c.l.b16 %v160
    %v562 = vunpack.c.h.b16 %v160
    %v563 = vunpack.c.l.b16 %v161
    %v564 = vunpack.c.h.b16 %v161
    %v565 = vunpack.c.l.b16 %v162
    %v566 = vunpack.c.h.b16 %v162
    %v567 = vunpack.c.l.b16 %v163
    %v568 = vunpack.c.h.b16 %v163
    %v569 = vunpack.c.l.b16 %v164
    %v570 = vunpack.c.h.b16 %v164
    %v571 = vunpack.c.l.b16 %v165
    %v572 = vunpack.c.h.b16 %v165
    %v573 = vunpack.c.l.b16 %v166
    %v574 = vunpack.c.h.b16 %v166
    %v575 = vunpack.c.l.b16 %v167
    %v576 = vunpack.c.h.b16 %v167
    %v577 = vunpack.c.l.b16 %v168
    %v578 = vunpack.c.h.b16 %v168
    %v579 = vunpack.c.l.b16 %v169
    %v580 = vunpack.c.h.b16 %v169
    %v581 = vunpack.c.l.b16 %v170
    %v582 = vunpack.c.h.b16 %v170
    %v583 = vunpack.c.l.b16 %v171
    %v584 = vunpack.c.h.b16 %v171
    %v585 = vunpack.c.l.b16 %v172
    %v586 = vunpack.c.h.b16 %v172
    %v587 = vunpack.c.l.b16 %v173
    %v588 = vunpack.c.h.b16 %v173
    %v589 = vunpack.c.l.b16 %v174
    %v590 = vunpack.c.h.b16 %v174
    %v591 = vunpack.c.l.b16 %v175
    %v592 = vunpack.c.h.b16 %v175
    %v593 = vunpack.c.l.b16 %v176
    %v594 = vunpack.c.h.b16 %v176
    %v595 = vunpack.c.l.b16 %v177
    %v596 = vunpack.c.h.b16 %v177
    %v597 = vunpack.c.l.b16 %v178
    %v598 = vunpack.c.h.b16 %v178
    %v599 = vunpack.c.l.b16 %v179
    %v600 = vunpack.c.h.b16 %v179
    %v601 = vunpack.c.l.b16 %v180
    %v602 = vunpack.c.h.b16 %v180
    %v603 = vunpack.c.l.b16 %v181
    %v604 = vunpack.c.h.b16 %v181
    %v605 = vunpack.c.l.b16 %v182
    %v606 = vunpack.c.h.b16 %v182
    %v607 = vpack.c.b16 %v353, %v351
    %v608 = vpack.c.b16 %v354, %v352
    %v609 = vpack.c.b16 %v357, %v355
    %v610 = vpack.c.b16 %v358, %v356
    %v611 = vpack.c.b16 %v361, %v359
    %v612 = vpack.c.b16 %v362, %v360
    %v613 = vpack.c.b16 %v365, %v363
    %v614 = vpack.c.b16 %v366, %v364
    %v615 = vpack.c.b16 %v369, %v367
    %v616 = vpack.c.b16 %v370, %v368
    %v617 = vpack.c.b16 %v373, %v371
    %v618 = vpack.c.b16 %v374, %v372
    %v619 = vpack.c.b16 %v377, %v375
    %v620 = vpack.c.b16 %v378, %v376
    %v621 = vpack.c.b16 %v381, %v379
    %v622 = vpack.c.b16 %v382, %v380
    %v623 = vpack.c.b16 %v385, %v383
    %v624 = vpack.c.b16 %v386, %v384
    %v625 = vpack.c.b16 %v389, %v387
    %v626 = vpack.c.b16 %v390, %v388
    %v627 = vpack.c.b16 %v393, %v391
    %v628 = vpack.c.b16 %v394, %v392
    %v629 = vpack.c.b16 %v397, %v395
    %v630 = vpack.c.b16 %v398, %v396
    %v631 = vpack.c.b16 %v401, %v399
    %v632 = vpack.c.b16 %v402, %v400
    %v633 = vpack.c.b16 %v405, %v403
    %v634 = vpack.c.b16 %v406, %v404
    %v635 = vpack.c.b16 %v409, %v407
    %v636 = vpack.c.b16 %v410, %v408
    %v637 = vpack.c.b16 %v413, %v411
    %v638 = vpack.c.b16 %v414, %v412
    %v639 = vpack.c.b16 %v417, %v415
    %v640 = vpack.c.b16 %v418, %v416
    %v641 = vpack.c.b16 %v421, %v419
    %v642 = vpack.c.b16 %v422, %v420
    %v643 = vpack.c.b16 %v425, %v423
    %v644 = vpack.c.b16 %v426, %v424
    %v645 = vpack.c.b16 %v429, %v427
    %v646 = vpack.c.b16 %v430, %v428
    %v647 = vpack.c.b16 %v433, %v431
    %v648 = vpack.c.b16 %v434, %v432
    %v649 = vpack.c.b16 %v437, %v435
    %v650 = vpack.c.b16 %v438, %v436
    %v651 = vpack.c.b16 %v441, %v439
    %v652 = vpack.c.b16 %v442, %v440
    %v653 = vpack.c.b16 %v445, %v443
    %v654 = vpack.c.b16 %v446, %v444
    %v655 = vpack.c.b16 %v449, %v447
    %v656 = vpack.c.b16 %v450, %v448
    %v657 = vpack.c.b16 %v453, %v451
    %v658 = vpack.c.b16 %v454, %v452
    %v659 = vpack.c.b16 %v457, %v455
    %v660 = vpack.c.b16 %v458, %v456
    %v661 = vpack.c.b16 %v461, %v459
    %v662 = vpack.c.b16 %v462, %v460
    %v663 = vpack.c.b16 %v465, %v463
    %v664 = vpack.c.b16 %v466, %v464
    %v665 = vpack.c.b16 %v469, %v467
    %v666 = vpack.c.b16 %v470, %v468
    %v667 = vpack.c.b16 %v473, %v471
    %v668 = vpack.c.b16 %v474, %v472
    %v669 = vpack.c.b16 %v477, %v475
    %v670 = vpack.c.b16 %v478, %v476
    %v671 = vpack.c.b16 %v481, %v479
    %v672 = vpack.c.b16 %v482, %v480
    %v673 = vpack.c.b16 %v485, %v483
    %v674 = vpack.c.b16 %v486, %v484
    %v675 = vpack.c.b16 %v489, %v487
    %v676 = vpack.c.b16 %v490, %v488
    %v677 = vpack.c.b16 %v493, %v491
    %v678 = vpack.c.b16 %v494, %v492
    %v679 = vpack.c.b16 %v497, %v495
    %v680 = vpack.c.b16 %v498, %v496
    %v681 = vpack.c.b16 %v501, %v499
    %v682 = vpack.c.b16 %v502, %v500
    %v683 = vpack.c.b16 %v505, %v503
    %v684 = vpack.c.b16 %v506, %v504
    %v685 = vpack.c.b16 %v509, %v507
    %v686 = vpack.c.b16 %v510, %v508
    %v687 = vpack.c.b16 %v513, %v511
    %v688 = vpack.c.b16 %v514, %v512
    %v689 = vpack.c.b16 %v517, %v515
    %v690 = vpack.c.b16 %v518, %v516
    %v691 = vpack.c.b16 %v521, %v519
    %v692 = vpack.c.b16 %v522, %v520
    %v693 = vpack.c.b16 %v525, %v523
    %v694 = vpack.c.b16 %v526, %v524
    %v695 = vpack.c.b16 %v529, %v527
    %v696 = vpack.c.b16 %v530, %v528
    %v697 = vpack.c.b16 %v533, %v531
    %v698 = vpack.c.b16 %v534, %v532
    %v699 = vpack.c.b16 %v537, %v535
    %v700 = vpack.c.b16 %v538, %v536
    %v701 = vpack.c.b16 %v541, %v539
    %v702 = vpack.c.b16 %v542, %v540
    %v703 = vpack.c.b16 %v545, %v543
    %v704 = vpack.c.b16 %v546, %v544
    %v705 = vpack.c.b16 %v549, %v547
    %v706 = vpack.c.b16 %v550, %v548
    %v707 = vpack.c.b16 %v553, %v551
    %v708 = vpack.c.b16 %v554, %v552
    %v709 = vpack.c.b16 %v557, %v555
    %v710 = vpack.c.b16 %v558, %v556
    %v711 = vpack.c.b16 %v561, %v559
    %v712 = vpack.c.b16 %v562, %v560
    %v713 = vpack.c.b16 %v565, %v563
    %v714 = vpack.c.b16 %v566, %v564
    %v715 = vpack.c.b16 %v569, %v567
    %v716 = vpack.c.b16 %v570, %v568
    %v717 = vpack.c.b16 %v573, %v571
    %v718 = vpack.c.b16 %v574, %v572
    %v719 = vpack.c.b16 %v577, %v575
    %v720 = vpack.c.b16 %v578, %v576
    %v721 = vpack.c.b16 %v581, %v579
    %v722 = vpack.c.b16 %v582, %v580
    %v723 = vpack.c.b16 %v585, %v583
    %v724 = vpack.c.b16 %v586, %v584
    %v725 = vpack.c.b16 %v589, %v587
    %v726 = vpack.c.b16 %v590, %v588
    %v727 = vpack.c.b16 %v593, %v591
    %v728 = vpack.c.b16 %v594, %v592
    %v729 = vpack.c.b16 %v597, %v595
    %v730 = vpack.c.b16 %v598, %v596
    %v731 = vpack.c.b16 %v601, %v599
    %v732 = vpack.c.b16 %v602, %v600
    %v733 = vpack.c.b16 %v605, %v603
    %v734 = vpack.c.b16 %v606, %v604
    %863 = vmatprep.subr.bf16.mxu0 %v608
    %864 = vmatpush1.bf16.msra.mxu0 %v607
    %865 = vmatprep.subr.bf16.mxu0 %v610
    %866 = vmatpush1.bf16.msra.mxu0 %v609
    %867 = vmatprep.subr.bf16.mxu0 %v612
    %868 = vmatpush1.bf16.msra.mxu0 %v611
    %869 = vmatprep.subr.bf16.mxu0 %v614
    %870 = vmatpush1.bf16.msra.mxu0 %v613
    %871 = vmatprep.subr.bf16.mxu0 %v616
    %872 = vmatpush1.bf16.msra.mxu0 %v615
    %873 = vmatprep.subr.bf16.mxu0 %v618
    %874 = vmatpush1.bf16.msra.mxu0 %v617
    %875 = vmatprep.subr.bf16.mxu0 %v620
    %876 = vmatpush1.bf16.msra.mxu0 %v619
    %877 = vmatprep.subr.bf16.mxu0 %v622
    %878 = vmatpush1.bf16.msra.mxu0 %v621
    %879 = vmatprep.subr.bf16.mxu0 %v624
    %880 = vmatpush1.bf16.msra.mxu0 %v623
    %881 = vmatprep.subr.bf16.mxu0 %v626
    %882 = vmatpush1.bf16.msra.mxu0 %v625
    %883 = vmatprep.subr.bf16.mxu0 %v628
    %884 = vmatpush1.bf16.msra.mxu0 %v627
    %885 = vmatprep.subr.bf16.mxu0 %v630
    %886 = vmatpush1.bf16.msra.mxu0 %v629
    %887 = vmatprep.subr.bf16.mxu0 %v632
    %888 = vmatpush1.bf16.msra.mxu0 %v631
    %889 = vmatprep.subr.bf16.mxu0 %v634
    %890 = vmatpush1.bf16.msra.mxu0 %v633
    %891 = vmatprep.subr.bf16.mxu0 %v636
    %892 = vmatpush1.bf16.msra.mxu0 %v635
    %893 = vmatprep.subr.bf16.mxu0 %v638
    %894 = vmatpush1.bf16.msra.mxu0 %v637
    %895 = vmatprep.mubr.bf16.mxu0 %v208
    %896 = vmatmul.mubr.bf16.gmra.mrb[0].mxu0 %v207
    %v897 = vpop.f32.mrb[0].mxu0
    %v898 = vadd.f32 %v188, %v897
    %v899 = vpop.f32.mrb[0].mxu0
    %v900 = vadd.f32 %v192, %v899
    %v901 = vpop.f32.mrb[0].mxu0
    %v902 = vpop.f32.mrb[0].mxu0
    %903 = vdwg.mxu0
    %904 = vmatprep.subr.bf16.mxu0 %v640
    %905 = vmatpush1.bf16.msra.mxu0 %v639
    %906 = vmatprep.subr.bf16.mxu0 %v642
    %907 = vmatpush1.bf16.msra.mxu0 %v641
    %908 = vmatprep.subr.bf16.mxu0 %v644
    %909 = vmatpush1.bf16.msra.mxu0 %v643
    %910 = vmatprep.subr.bf16.mxu0 %v646
    %911 = vmatpush1.bf16.msra.mxu0 %v645
    %912 = vmatprep.subr.bf16.mxu0 %v648
    %913 = vmatpush1.bf16.msra.mxu0 %v647
    %914 = vmatprep.subr.bf16.mxu0 %v650
    %915 = vmatpush1.bf16.msra.mxu0 %v649
    %916 = vmatprep.subr.bf16.mxu0 %v652
    %917 = vmatpush1.bf16.msra.mxu0 %v651
    %918 = vmatprep.subr.bf16.mxu0 %v654
    %919 = vmatpush1.bf16.msra.mxu0 %v653
    %920 = vmatprep.subr.bf16.mxu0 %v656
    %921 = vmatpush1.bf16.msra.mxu0 %v655
    %922 = vmatprep.subr.bf16.mxu0 %v658
    %923 = vmatpush1.bf16.msra.mxu0 %v657
    %924 = vmatprep.subr.bf16.mxu0 %v660
    %925 = vmatpush1.bf16.msra.mxu0 %v659
    %926 = vmatprep.subr.bf16.mxu0 %v662
    %927 = vmatpush1.bf16.msra.mxu0 %v661
    %928 = vmatprep.subr.bf16.mxu0 %v664
    %929 = vmatpush1.bf16.msra.mxu0 %v663
    %930 = vmatprep.subr.bf16.mxu0 %v666
    %931 = vmatpush1.bf16.msra.mxu0 %v665
    %932 = vmatprep.subr.bf16.mxu0 %v668
    %933 = vmatpush1.bf16.msra.mxu0 %v667
    %934 = vmatprep.subr.bf16.mxu0 %v670
    %935 = vmatpush1.bf16.msra.mxu0 %v669
    %936 = vmatprep.mubr.bf16.mxu0 %v210
    %937 = vmatmul.mubr.bf16.gmra.mrb[0].mxu0 %v209
    %v938 = vpop.f32.mrb[0].mxu0
    %v939 = vadd.f32 %v898, %v938
    %v940 = vpop.f32.mrb[0].mxu0
    %v941 = vadd.f32 %v900, %v940
    %v942 = vpop.f32.mrb[0].mxu0
    %v943 = vpop.f32.mrb[0].mxu0
    %944 = vdwg.mxu0
    %945 = vmatprep.subr.bf16.mxu0 %v672
    %946 = vmatpush1.bf16.msra.mxu0 %v671
    %947 = vmatprep.subr.bf16.mxu0 %v674
    %948 = vmatpush1.bf16.msra.mxu0 %v673
    %949 = vmatprep.subr.bf16.mxu0 %v676
    %950 = vmatpush1.bf16.msra.mxu0 %v675
    %951 = vmatprep.subr.bf16.mxu0 %v678
    %952 = vmatpush1.bf16.msra.mxu0 %v677
    %953 = vmatprep.subr.bf16.mxu0 %v680
    %954 = vmatpush1.bf16.msra.mxu0 %v679
    %955 = vmatprep.subr.bf16.mxu0 %v682
    %956 = vmatpush1.bf16.msra.mxu0 %v681
    %957 = vmatprep.subr.bf16.mxu0 %v684
    %958 = vmatpush1.bf16.msra.mxu0 %v683
    %959 = vmatprep.subr.bf16.mxu0 %v686
    %960 = vmatpush1.bf16.msra.mxu0 %v685
    %961 = vmatprep.subr.bf16.mxu0 %v688
    %962 = vmatpush1.bf16.msra.mxu0 %v687
    %963 = vmatprep.subr.bf16.mxu0 %v690
    %964 = vmatpush1.bf16.msra.mxu0 %v689
    %965 = vmatprep.subr.bf16.mxu0 %v692
    %966 = vmatpush1.bf16.msra.mxu0 %v691
    %967 = vmatprep.subr.bf16.mxu0 %v694
    %968 = vmatpush1.bf16.msra.mxu0 %v693
    %969 = vmatprep.subr.bf16.mxu0 %v696
    %970 = vmatpush1.bf16.msra.mxu0 %v695
    %971 = vmatprep.subr.bf16.mxu0 %v698
    %972 = vmatpush1.bf16.msra.mxu0 %v697
    %973 = vmatprep.subr.bf16.mxu0 %v700
    %974 = vmatpush1.bf16.msra.mxu0 %v699
    %975 = vmatprep.subr.bf16.mxu0 %v702
    %976 = vmatpush1.bf16.msra.mxu0 %v701
    %977 = vmatprep.mubr.bf16.mxu0 %v212
    %978 = vmatmul.mubr.bf16.gmra.mrb[0].mxu0 %v211
    %v979 = vpop.f32.mrb[0].mxu0
    %v980 = vadd.f32 %v939, %v979
    %v981 = vpop.f32.mrb[0].mxu0
    %v982 = vadd.f32 %v941, %v981
    %v983 = vpop.f32.mrb[0].mxu0
    %v984 = vpop.f32.mrb[0].mxu0
    %985 = vdwg.mxu0
    %986 = vmatprep.subr.bf16.mxu0 %v704
    %987 = vmatpush1.bf16.msra.mxu0 %v703
    %988 = vmatprep.subr.bf16.mxu0 %v706
    %989 = vmatpush1.bf16.msra.mxu0 %v705
    %990 = vmatprep.subr.bf16.mxu0 %v708
    %991 = vmatpush1.bf16.msra.mxu0 %v707
    %992 = vmatprep.subr.bf16.mxu0 %v710
    %993 = vmatpush1.bf16.msra.mxu0 %v709
    %994 = vmatprep.subr.bf16.mxu0 %v712
    %995 = vmatpush1.bf16.msra.mxu0 %v711
    %996 = vmatprep.subr.bf16.mxu0 %v714
    %997 = vmatpush1.bf16.msra.mxu0 %v713
    %998 = vmatprep.subr.bf16.mxu0 %v716
    %999 = vmatpush1.bf16.msra.mxu0 %v715
    %1000 = vmatprep.subr.bf16.mxu0 %v718
    %1001 = vmatpush1.bf16.msra.mxu0 %v717
    %1002 = vmatprep.subr.bf16.mxu0 %v720
    %1003 = vmatpush1.bf16.msra.mxu0 %v719
    %1004 = vmatprep.subr.bf16.mxu0 %v722
    %1005 = vmatpush1.bf16.msra.mxu0 %v721
    %1006 = vmatprep.subr.bf16.mxu0 %v724
    %1007 = vmatpush1.bf16.msra.mxu0 %v723
    %1008 = vmatprep.subr.bf16.mxu0 %v726
    %1009 = vmatpush1.bf16.msra.mxu0 %v725
    %1010 = vmatprep.subr.bf16.mxu0 %v728
    %1011 = vmatpush1.bf16.msra.mxu0 %v727
    %1012 = vmatprep.subr.bf16.mxu0 %v730
    %1013 = vmatpush1.bf16.msra.mxu0 %v729
    %1014 = vmatprep.subr.bf16.mxu0 %v732
    %1015 = vmatpush1.bf16.msra.mxu0 %v731
    %1016 = vmatprep.subr.bf16.mxu0 %v734
    %1017 = vmatpush1.bf16.msra.mxu0 %v733
    %1018 = vmatprep.mubr.bf16.mxu0 %v214
    %1019 = vmatmul.mubr.bf16.gmra.mrb[0].mxu0 %v213
    %v1020 = vpop.f32.mrb[0].mxu0
    %v1021 = vadd.f32 %v980, %v1020
    %v1022 = vpop.f32.mrb[0].mxu0
    %v1023 = vadd.f32 %v982, %v1022
    %v1024 = vpop.f32.mrb[0].mxu0
    %v1025 = vpop.f32.mrb[0].mxu0
    %1026 = vdwg.mxu0
    %vm1027 = vcmp.ge.f32.partialorder %v1021, 0.0
    %vm1028 = vcmp.ge.f32.partialorder %v1023, 0.0
    %v1029 = vstv %s48
    %v1030 = vmul.f32 %v1029, %v1021
    %v1031 = vmul.f32 %v1029, %v1023
    %v1032 = vsel %vm1027, %v1021, %v1030
    %v1033 = vsel %vm1028, %v1023, %v1031
    %v1034 = vpack.c.bf16 %v1032, %v1032
    %v1035 = vpack.c.bf16 %v1033, %v1033
    %v1036 = vld [vmem:[%s3] sm:$0xff]
    %v1037 = vld [vmem:[%s3 + $0x8] sm:$0xff]
    %v1038 = vld [vmem:[%s3 + $0x10] sm:$0xff]
    %v1039 = vld [vmem:[%s3 + $0x18] sm:$0xff]
    %v1040 = vld [vmem:[%s3 + $0x20] sm:$0xff]
    %v1041 = vld [vmem:[%s3 + $0x28] sm:$0xff]
    %v1042 = vld [vmem:[%s3 + $0x30] sm:$0xff]
    %v1043 = vld [vmem:[%s3 + $0x38] sm:$0xff]
    %v1044 = vld [vmem:[%s3 + $0x40] sm:$0xff]
    %v1045 = vld [vmem:[%s3 + $0x48] sm:$0xff]
    %v1046 = vld [vmem:[%s3 + $0x50] sm:$0xff]
    %v1047 = vld [vmem:[%s3 + $0x58] sm:$0xff]
    %v1048 = vld [vmem:[%s3 + $0x60] sm:$0xff]
    %v1049 = vld [vmem:[%s3 + $0x68] sm:$0xff]
    %v1050 = vld [vmem:[%s3 + $0x70] sm:$0xff]
    %v1051 = vld [vmem:[%s3 + $0x78] sm:$0xff]
    %v1052 = vld [vmem:[%s3 + $0x80] sm:$0xff]
    %v1053 = vld [vmem:[%s3 + $0x88] sm:$0xff]
    %v1054 = vld [vmem:[%s3 + $0x90] sm:$0xff]
    %v1055 = vld [vmem:[%s3 + $0x98] sm:$0xff]
    %v1056 = vld [vmem:[%s3 + $0xa0] sm:$0xff]
    %v1057 = vld [vmem:[%s3 + $0xa8] sm:$0xff]
    %v1058 = vld [vmem:[%s3 + $0xb0] sm:$0xff]
    %v1059 = vld [vmem:[%s3 + $0xb8] sm:$0xff]
    %v1060 = vld [vmem:[%s3 + $0xc0] sm:$0xff]
    %v1061 = vld [vmem:[%s3 + $0xc8] sm:$0xff]
    %v1062 = vld [vmem:[%s3 + $0xd0] sm:$0xff]
    %v1063 = vld [vmem:[%s3 + $0xd8] sm:$0xff]
    %v1064 = vld [vmem:[%s3 + $0xe0] sm:$0xff]
    %v1065 = vld [vmem:[%s3 + $0xe8] sm:$0xff]
    %v1066 = vld [vmem:[%s3 + $0xf0] sm:$0xff]
    %v1067 = vld [vmem:[%s3 + $0xf8] sm:$0xff]
    %v1068 = vld [vmem:[%s4] sm:$0x3]
    %v1070 = vlaneseq
    %v1071 = vshrl.u32 %v1070, 7
    %v1072 = vsub.s32 0, %v1071
    %v1073 = vrot.slane %v1068, %v1072
    %v1074 = vlaneseq
    %v1075 = vshrl.u32 %v1074, 7
    %v1076 = vsub.s32 1, %v1075
    %v1077 = vrot.slane %v1068, %v1076
    %v1112 = vunpack.c.l.b16 %v1036
    %v1113 = vunpack.c.h.b16 %v1036
    %v1114 = vunpack.c.l.b16 %v1037
    %v1115 = vunpack.c.h.b16 %v1037
    %v1116 = vunpack.c.l.b16 %v1038
    %v1117 = vunpack.c.h.b16 %v1038
    %v1118 = vunpack.c.l.b16 %v1039
    %v1119 = vunpack.c.h.b16 %v1039
    %v1120 = vunpack.c.l.b16 %v1040
    %v1121 = vunpack.c.h.b16 %v1040
    %v1122 = vunpack.c.l.b16 %v1041
    %v1123 = vunpack.c.h.b16 %v1041
    %v1124 = vunpack.c.l.b16 %v1042
    %v1125 = vunpack.c.h.b16 %v1042
    %v1126 = vunpack.c.l.b16 %v1043
    %v1127 = vunpack.c.h.b16 %v1043
    %v1128 = vunpack.c.l.b16 %v1044
    %v1129 = vunpack.c.h.b16 %v1044
    %v1130 = vunpack.c.l.b16 %v1045
    %v1131 = vunpack.c.h.b16 %v1045
    %v1132 = vunpack.c.l.b16 %v1046
    %v1133 = vunpack.c.h.b16 %v1046
    %v1134 = vunpack.c.l.b16 %v1047
    %v1135 = vunpack.c.h.b16 %v1047
    %v1136 = vunpack.c.l.b16 %v1048
    %v1137 = vunpack.c.h.b16 %v1048
    %v1138 = vunpack.c.l.b16 %v1049
    %v1139 = vunpack.c.h.b16 %v1049
    %v1140 = vunpack.c.l.b16 %v1050
    %v1141 = vunpack.c.h.b16 %v1050
    %v1142 = vunpack.c.l.b16 %v1051
    %v1143 = vunpack.c.h.b16 %v1051
    %v1144 = vunpack.c.l.b16 %v1052
    %v1145 = vunpack.c.h.b16 %v1052
    %v1146 = vunpack.c.l.b16 %v1053
    %v1147 = vunpack.c.h.b16 %v1053
    %v1148 = vunpack.c.l.b16 %v1054
    %v1149 = vunpack.c.h.b16 %v1054
    %v1150 = vunpack.c.l.b16 %v1055
    %v1151 = vunpack.c.h.b16 %v1055
    %v1152 = vunpack.c.l.b16 %v1056
    %v1153 = vunpack.c.h.b16 %v1056
    %v1154 = vunpack.c.l.b16 %v1057
    %v1155 = vunpack.c.h.b16 %v1057
    %v1156 = vunpack.c.l.b16 %v1058
    %v1157 = vunpack.c.h.b16 %v1058
    %v1158 = vunpack.c.l.b16 %v1059
    %v1159 = vunpack.c.h.b16 %v1059
    %v1160 = vunpack.c.l.b16 %v1060
    %v1161 = vunpack.c.h.b16 %v1060
    %v1162 = vunpack.c.l.b16 %v1061
    %v1163 = vunpack.c.h.b16 %v1061
    %v1164 = vunpack.c.l.b16 %v1062
    %v1165 = vunpack.c.h.b16 %v1062
    %v1166 = vunpack.c.l.b16 %v1063
    %v1167 = vunpack.c.h.b16 %v1063
    %v1168 = vunpack.c.l.b16 %v1064
    %v1169 = vunpack.c.h.b16 %v1064
    %v1170 = vunpack.c.l.b16 %v1065
    %v1171 = vunpack.c.h.b16 %v1065
    %v1172 = vunpack.c.l.b16 %v1066
    %v1173 = vunpack.c.h.b16 %v1066
    %v1174 = vunpack.c.l.b16 %v1067
    %v1175 = vunpack.c.h.b16 %v1067
    %v1176 = vpack.c.b16 %v1114, %v1112
    %v1177 = vpack.c.b16 %v1115, %v1113
    %v1178 = vpack.c.b16 %v1118, %v1116
    %v1179 = vpack.c.b16 %v1119, %v1117
    %v1180 = vpack.c.b16 %v1122, %v1120
    %v1181 = vpack.c.b16 %v1123, %v1121
    %v1182 = vpack.c.b16 %v1126, %v1124
    %v1183 = vpack.c.b16 %v1127, %v1125
    %v1184 = vpack.c.b16 %v1130, %v1128
    %v1185 = vpack.c.b16 %v1131, %v1129
    %v1186 = vpack.c.b16 %v1134, %v1132
    %v1187 = vpack.c.b16 %v1135, %v1133
    %v1188 = vpack.c.b16 %v1138, %v1136
    %v1189 = vpack.c.b16 %v1139, %v1137
    %v1190 = vpack.c.b16 %v1142, %v1140
    %v1191 = vpack.c.b16 %v1143, %v1141
    %v1192 = vpack.c.b16 %v1146, %v1144
    %v1193 = vpack.c.b16 %v1147, %v1145
    %v1194 = vpack.c.b16 %v1150, %v1148
    %v1195 = vpack.c.b16 %v1151, %v1149
    %v1196 = vpack.c.b16 %v1154, %v1152
    %v1197 = vpack.c.b16 %v1155, %v1153
    %v1198 = vpack.c.b16 %v1158, %v1156
    %v1199 = vpack.c.b16 %v1159, %v1157
    %v1200 = vpack.c.b16 %v1162, %v1160
    %v1201 = vpack.c.b16 %v1163, %v1161
    %v1202 = vpack.c.b16 %v1166, %v1164
    %v1203 = vpack.c.b16 %v1167, %v1165
    %v1204 = vpack.c.b16 %v1170, %v1168
    %v1205 = vpack.c.b16 %v1171, %v1169
    %v1206 = vpack.c.b16 %v1174, %v1172
    %v1207 = vpack.c.b16 %v1175, %v1173
    %1240 = vmatprep.subr.bf16.mxu0 %v1177
    %1241 = vmatpush1.bf16.msra.mxu0 %v1176
    %1242 = vmatprep.subr.bf16.mxu0 %v1179
    %1243 = vmatpush1.bf16.msra.mxu0 %v1178
    %1244 = vmatprep.subr.bf16.mxu0 %v1181
    %1245 = vmatpush1.bf16.msra.mxu0 %v1180
    %1246 = vmatprep.subr.bf16.mxu0 %v1183
    %1247 = vmatpush1.bf16.msra.mxu0 %v1182
    %1248 = vmatprep.subr.bf16.mxu0 %v1185
    %1249 = vmatpush1.bf16.msra.mxu0 %v1184
    %1250 = vmatprep.subr.bf16.mxu0 %v1187
    %1251 = vmatpush1.bf16.msra.mxu0 %v1186
    %1252 = vmatprep.subr.bf16.mxu0 %v1189
    %1253 = vmatpush1.bf16.msra.mxu0 %v1188
    %1254 = vmatprep.subr.bf16.mxu0 %v1191
    %1255 = vmatpush1.bf16.msra.mxu0 %v1190
    %1256 = vmatprep.subr.bf16.mxu0 %v1193
    %1257 = vmatpush1.bf16.msra.mxu0 %v1192
    %1258 = vmatprep.subr.bf16.mxu0 %v1195
    %1259 = vmatpush1.bf16.msra.mxu0 %v1194
    %1260 = vmatprep.subr.bf16.mxu0 %v1197
    %1261 = vmatpush1.bf16.msra.mxu0 %v1196
    %1262 = vmatprep.subr.bf16.mxu0 %v1199
    %1263 = vmatpush1.bf16.msra.mxu0 %v1198
    %1264 = vmatprep.subr.bf16.mxu0 %v1201
    %1265 = vmatpush1.bf16.msra.mxu0 %v1200
    %1266 = vmatprep.subr.bf16.mxu0 %v1203
    %1267 = vmatpush1.bf16.msra.mxu0 %v1202
    %1268 = vmatprep.subr.bf16.mxu0 %v1205
    %1269 = vmatpush1.bf16.msra.mxu0 %v1204
    %1270 = vmatprep.subr.bf16.mxu0 %v1207
    %1271 = vmatpush1.bf16.msra.mxu0 %v1206
    %1272 = vmatprep.mubr.bf16.mxu0 %v1035
    %1273 = vmatmul.mubr.bf16.gmra.mrb[0].mxu0 %v1034
    %v1274 = vpop.f32.mrb[0].mxu0
    %v1275 = vadd.f32 %v1073, %v1274
    %v1276 = vpop.f32.mrb[0].mxu0
    %v1277 = vadd.f32 %v1077, %v1276
    %v1278 = vpop.f32.mrb[0].mxu0
    %v1279 = vpop.f32.mrb[0].mxu0
    %1280 = vdwg.mxu0
    %vm1281 = vcmp.ge.f32.partialorder %v1275, 0.0
    %vm1282 = vcmp.ge.f32.partialorder %v1277, 0.0
    %v1283 = vstv %s49
    %v1284 = vmul.f32 %v1283, %v1275
    %v1285 = vmul.f32 %v1283, %v1277
    %v1286 = vsel %vm1281, %v1275, %v1284
    %v1287 = vsel %vm1282, %v1277, %v1285
    %v1288 = vld [vmem:[%s5] sm:$0xff]
    %v1289 = vld [vmem:[%s5 + $0x8] sm:$0xff]
    %v1290 = vld [vmem:[%s5 + $0x10] sm:$0xff]
    %v1291 = vld [vmem:[%s5 + $0x18] sm:$0xff]
    %v1292 = vld [vmem:[%s5 + $0x20] sm:$0xff]
    %v1293 = vld [vmem:[%s5 + $0x28] sm:$0xff]
    %v1294 = vld [vmem:[%s5 + $0x30] sm:$0xff]
    %v1295 = vld [vmem:[%s5 + $0x38] sm:$0xff]
    %v1296 = vld [vmem:[%s5 + $0x40] sm:$0xff]
    %v1297 = vld [vmem:[%s5 + $0x48] sm:$0xff]
    %v1298 = vld [vmem:[%s5 + $0x50] sm:$0xff]
    %v1299 = vld [vmem:[%s5 + $0x58] sm:$0xff]
    %v1300 = vld [vmem:[%s5 + $0x60] sm:$0xff]
    %v1301 = vld [vmem:[%s5 + $0x68] sm:$0xff]
    %v1302 = vld [vmem:[%s5 + $0x70] sm:$0xff]
    %v1303 = vld [vmem:[%s5 + $0x78] sm:$0xff]
    %v1304 = vld [vmem:[%s5 + $0x80] sm:$0xff]
    %v1305 = vld [vmem:[%s5 + $0x88] sm:$0xff]
    %v1306 = vld [vmem:[%s5 + $0x90] sm:$0xff]
    %v1307 = vld [vmem:[%s5 + $0x98] sm:$0xff]
    %v1308 = vld [vmem:[%s5 + $0xa0] sm:$0xff]
    %v1309 = vld [vmem:[%s5 + $0xa8] sm:$0xff]
    %v1310 = vld [vmem:[%s5 + $0xb0] sm:$0xff]
    %v1311 = vld [vmem:[%s5 + $0xb8] sm:$0xff]
    %v1312 = vld [vmem:[%s5 + $0xc0] sm:$0xff]
    %v1313 = vld [vmem:[%s5 + $0xc8] sm:$0xff]
    %v1314 = vld [vmem:[%s5 + $0xd0] sm:$0xff]
    %v1315 = vld [vmem:[%s5 + $0xd8] sm:$0xff]
    %v1316 = vld [vmem:[%s5 + $0xe0] sm:$0xff]
    %v1317 = vld [vmem:[%s5 + $0xe8] sm:$0xff]
    %v1318 = vld [vmem:[%s5 + $0xf0] sm:$0xff]
    %v1319 = vld [vmem:[%s5 + $0xf8] sm:$0xff]
    %v1320 = vld [vmem:[%s6] sm:$0x1]
    %v1322 = vlaneseq
    %v1323 = vshrl.u32 %v1322, 7
    %v1324 = vsub.s32 0, %v1323
    %v1325 = vrot.slane %v1320, %v1324
    %1327 = vmatprep.subr.mxu0 0.0
    %1328 = vmatpush1.msra.mxu0 %v1288
    %1329 = vmatprep.subr.mxu0 0.0
    %1330 = vmatpush1.msra.mxu0 %v1289
    %1331 = vmatprep.subr.mxu0 0.0
    %1332 = vmatpush1.msra.mxu0 %v1290
    %1333 = vmatprep.subr.mxu0 0.0
    %1334 = vmatpush1.msra.mxu0 %v1291
    %1335 = vmatprep.subr.mxu0 0.0
    %1336 = vmatpush1.msra.mxu0 %v1292
    %1337 = vmatprep.subr.mxu0 0.0
    %1338 = vmatpush1.msra.mxu0 %v1293
    %1339 = vmatprep.subr.mxu0 0.0
    %1340 = vmatpush1.msra.mxu0 %v1294
    %1341 = vmatprep.subr.mxu0 0.0
    %1342 = vmatpush1.msra.mxu0 %v1295
    %1343 = vmatprep.subr.mxu0 0.0
    %1344 = vmatpush1.msra.mxu0 %v1296
    %1345 = vmatprep.subr.mxu0 0.0
    %1346 = vmatpush1.msra.mxu0 %v1297
    %1347 = vmatprep.subr.mxu0 0.0
    %1348 = vmatpush1.msra.mxu0 %v1298
    %1349 = vmatprep.subr.mxu0 0.0
    %1350 = vmatpush1.msra.mxu0 %v1299
    %1351 = vmatprep.subr.mxu0 0.0
    %1352 = vmatpush1.msra.mxu0 %v1300
    %1353 = vmatprep.subr.mxu0 0.0
    %1354 = vmatpush1.msra.mxu0 %v1301
    %1355 = vmatprep.subr.mxu0 0.0
    %1356 = vmatpush1.msra.mxu0 %v1302
    %1357 = vmatprep.subr.mxu0 0.0
    %1358 = vmatpush1.msra.mxu0 %v1303
    %1359 = vmatprep.subr.mxu0 0.0
    %1360 = vmatpush1.msra.mxu0 %v1304
    %1361 = vmatprep.subr.mxu0 0.0
    %1362 = vmatpush1.msra.mxu0 %v1305
    %1363 = vmatprep.subr.mxu0 0.0
    %1364 = vmatpush1.msra.mxu0 %v1306
    %1365 = vmatprep.subr.mxu0 0.0
    %1366 = vmatpush1.msra.mxu0 %v1307
    %1367 = vmatprep.subr.mxu0 0.0
    %1368 = vmatpush1.msra.mxu0 %v1308
    %1369 = vmatprep.subr.mxu0 0.0
    %1370 = vmatpush1.msra.mxu0 %v1309
    %1371 = vmatprep.subr.mxu0 0.0
    %1372 = vmatpush1.msra.mxu0 %v1310
    %1373 = vmatprep.subr.mxu0 0.0
    %1374 = vmatpush1.msra.mxu0 %v1311
    %1375 = vmatprep.subr.mxu0 0.0
    %1376 = vmatpush1.msra.mxu0 %v1312
    %1377 = vmatprep.subr.mxu0 0.0
    %1378 = vmatpush1.msra.mxu0 %v1313
    %1379 = vmatprep.subr.mxu0 0.0
    %1380 = vmatpush1.msra.mxu0 %v1314
    %1381 = vmatprep.subr.mxu0 0.0
    %1382 = vmatpush1.msra.mxu0 %v1315
    %1383 = vmatprep.subr.mxu0 0.0
    %1384 = vmatpush1.msra.mxu0 %v1316
    %1385 = vmatprep.subr.mxu0 0.0
    %1386 = vmatpush1.msra.mxu0 %v1317
    %1387 = vmatprep.subr.mxu0 0.0
    %1388 = vmatpush1.msra.mxu0 %v1318
    %1389 = vmatprep.subr.mxu0 0.0
    %1390 = vmatpush1.msra.mxu0 %v1319
    %1391 = vmatprep.mubr.f32.mxu0 %v1287
    %1392 = vmatmul.mubr.f32.gmra.mrb[0].mxu0 %v1286
    %v1393 = vpop.f32.mrb[0].mxu0
    %v1394 = vadd.f32 %v1325, %v1393
    %v1395 = vpop.f32.mrb[0].mxu0
    %1396 = vdwg.mxu0
    %vm1397 = vcmp.ge.f32.partialorder %v1394, 0.0
    %v1398 = vstv %s50
    %v1399 = vmul.f32 %v1398, %v1394
    %v1400 = vsel %vm1397, %v1394, %v1399
    %v1401 = vld [vmem:[%s7] sm:$0xff]
    %v1402 = vld [vmem:[%s7 + $0x8] sm:$0xff]
    %v1403 = vld [vmem:[%s7 + $0x10] sm:$0xff]
    %v1404 = vld [vmem:[%s7 + $0x18] sm:$0xff]
    %v1405 = vld [vmem:[%s7 + $0x20] sm:$0xff]
    %v1406 = vld [vmem:[%s7 + $0x28] sm:$0xff]
    %v1407 = vld [vmem:[%s7 + $0x30] sm:$0xff]
    %v1408 = vld [vmem:[%s7 + $0x38] sm:$0xff]
    %v1409 = vld [vmem:[%s7 + $0x40] sm:$0xff]
    %v1410 = vld [vmem:[%s7 + $0x48] sm:$0xff]
    %v1411 = vld [vmem:[%s7 + $0x50] sm:$0xff]
    %v1412 = vld [vmem:[%s7 + $0x58] sm:$0xff]
    %v1413 = vld [vmem:[%s7 + $0x60] sm:$0xff]
    %v1414 = vld [vmem:[%s7 + $0x68] sm:$0xff]
    %v1415 = vld [vmem:[%s7 + $0x70] sm:$0xff]
    %v1416 = vld [vmem:[%s7 + $0x78] sm:$0xff]
    %v1417 = vld [vmem:[%s8] sm:$0x1]
    %v1419 = vlaneseq
    %v1420 = vshrl.u32 %v1419, 7
    %v1421 = vsub.s32 0, %v1420
    %v1422 = vrot.slane %v1417, %v1421
    %1424 = vmatprep.subr.mxu0 0.0
    %1425 = vmatpush1.msra.mxu0 %v1401
    %1426 = vmatprep.subr.mxu0 0.0
    %1427 = vmatpush1.msra.mxu0 %v1402
    %1428 = vmatprep.subr.mxu0 0.0
    %1429 = vmatpush1.msra.mxu0 %v1403
    %1430 = vmatprep.subr.mxu0 0.0
    %1431 = vmatpush1.msra.mxu0 %v1404
    %1432 = vmatprep.subr.mxu0 0.0
    %1433 = vmatpush1.msra.mxu0 %v1405
    %1434 = vmatprep.subr.mxu0 0.0
    %1435 = vmatpush1.msra.mxu0 %v1406
    %1436 = vmatprep.subr.mxu0 0.0
    %1437 = vmatpush1.msra.mxu0 %v1407
    %1438 = vmatprep.subr.mxu0 0.0
    %1439 = vmatpush1.msra.mxu0 %v1408
    %1440 = vmatprep.subr.mxu0 0.0
    %1441 = vmatpush1.msra.mxu0 %v1409
    %1442 = vmatprep.subr.mxu0 0.0
    %1443 = vmatpush1.msra.mxu0 %v1410
    %1444 = vmatprep.subr.mxu0 0.0
    %1445 = vmatpush1.msra.mxu0 %v1411
    %1446 = vmatprep.subr.mxu0 0.0
    %1447 = vmatpush1.msra.mxu0 %v1412
    %1448 = vmatprep.subr.mxu0 0.0
    %1449 = vmatpush1.msra.mxu0 %v1413
    %1450 = vmatprep.subr.mxu0 0.0
    %1451 = vmatpush1.msra.mxu0 %v1414
    %1452 = vmatprep.subr.mxu0 0.0
    %1453 = vmatpush1.msra.mxu0 %v1415
    %1454 = vmatprep.subr.mxu0 0.0
    %1455 = vmatpush1.msra.mxu0 %v1416
    %1456 = vmatprep.subr.mxu0 0.0
    %1457 = vmatpush1.msra.mxu0 0.0
    %1458 = vmatprep.subr.mxu0 0.0
    %1459 = vmatpush1.msra.mxu0 0.0
    %1460 = vmatprep.subr.mxu0 0.0
    %1461 = vmatpush1.msra.mxu0 0.0
    %1462 = vmatprep.subr.mxu0 0.0
    %1463 = vmatpush1.msra.mxu0 0.0
    %1464 = vmatprep.subr.mxu0 0.0
    %1465 = vmatpush1.msra.mxu0 0.0
    %1466 = vmatprep.subr.mxu0 0.0
    %1467 = vmatpush1.msra.mxu0 0.0
    %1468 = vmatprep.subr.mxu0 0.0
    %1469 = vmatpush1.msra.mxu0 0.0
    %1470 = vmatprep.subr.mxu0 0.0
    %1471 = vmatpush1.msra.mxu0 0.0
    %1472 = vmatprep.subr.mxu0 0.0
    %1473 = vmatpush1.msra.mxu0 0.0
    %1474 = vmatprep.subr.mxu0 0.0
    %1475 = vmatpush1.msra.mxu0 0.0
    %1476 = vmatprep.subr.mxu0 0.0
    %1477 = vmatpush1.msra.mxu0 0.0
    %1478 = vmatprep.subr.mxu0 0.0
    %1479 = vmatpush1.msra.mxu0 0.0
    %1480 = vmatprep.subr.mxu0 0.0
    %1481 = vmatpush1.msra.mxu0 0.0
    %1482 = vmatprep.subr.mxu0 0.0
    %1483 = vmatpush1.msra.mxu0 0.0
    %1484 = vmatprep.subr.mxu0 0.0
    %1485 = vmatpush1.msra.mxu0 0.0
    %1486 = vmatprep.subr.mxu0 0.0
    %1487 = vmatpush1.msra.mxu0 0.0
    %1488 = vmatprep.mubr.f32.mxu0 0.0
    %1489 = vmatmul.mubr.f32.gmra.mrb[0].mxu0 %v1400
    %v1490 = vpop.f32.mrb[0].mxu0
    %v1491 = vadd.f32 %v1422, %v1490
    %v1492 = vpop.f32.mrb[0].mxu0
    %1493 = vdwg.mxu0
    %1494 = vmax.xlane.f32.xlu0 %v1491
    %v1495 = vpop.xlane.xlu0 %1494
    %v1496 = vsub.f32 %v1491, %v1495
    %v1497 = vmul.f32 %v1496, 1.442695
    %v1498 = vpow.pop %v1497
    %1499 = vadd.xlane.f32.xlu0 %v1498
    %v1500 = vpop.xlane.xlu0 %1499
    %v1501 = vlog2.pop %v1500
    %v1502 = vmul.f32 %v1501, 0.6931472
    %v1503 = vadd.f32 %v1502, %v1495
    %v1504 = vsub.f32 %v1491, %v1503
    %1505 = vst [vmem:[%s10] sm:$0xff] %v1504
    // Predicated region
    $region46: #{classification_net_forward.5} parent=1 // pred_check
      _
    $region47: #{classification_net_forward.5} parent=1 // pred_check_branch
      %1507 = sbr.rel (0) target = $region49
    $region48: #{classification_net_forward.5} parent=1 // pred_region
      _
    $region49: #{classification_net_forward.5} parent=1 // pred_fallthru
      _
    // Predicated region
    $region50: #{classification_net_forward.5} parent=1 // pred_check
      _
    $region51: #{classification_net_forward.5} parent=1 // pred_check_branch
      %1509 = sbr.rel (0) target = $region53
    $region52: #{classification_net_forward.5} parent=1 // pred_region
      _
    $region53: #{classification_net_forward.5} parent=1 // pred_fallthru
      _
    %1510 = vsyncpa [#allocation3], 1

</llo_original>
